<compile_context>
chip_gen: v7x
topology: tpu7x:2x2x1
jax: 0.10.0
libtpu: 0.0.40
codegen_flags: <defaults>
</compile_context>

<pallas_src>
import functools
import math

import jax
import jax.numpy as jnp
from jax.experimental import pallas as pl
from jax.experimental.pallas import tpu as pltpu

# ----------------------------- config (small "base"-like) ---------------------
VOCAB = 32
HIDDEN = 32
NUM_LAYERS = 2
NUM_HEADS = 4
HEAD_DIM = HIDDEN // NUM_HEADS
INTERMEDIATE = 64
MAX_POS = 16
TYPE_VOCAB = 2
LN_EPS = 1e-12
BF16 = jnp.bfloat16


# ----------------------------- in-kernel helpers ------------------------------
def _mm(x, w):
    """MXU matmul: cast the activation to the weight dtype (bf16), f32 accum."""
    return jnp.dot(x.astype(w.dtype), w, preferred_element_type=jnp.float32)


def _ln(x, gamma, beta, eps=LN_EPS):
    """LayerNorm over the last axis; gamma/beta are [1,H], broadcast in-kernel."""
    mean = jnp.mean(x, axis=-1, keepdims=True)
    xc = x - mean
    var = jnp.mean(xc * xc, axis=-1, keepdims=True)
    return xc * jax.lax.rsqrt(var + eps) * gamma + beta


def _gelu(x):
    # BERT gelu (tanh approximation of the erf form)
    return 0.5 * x * (1.0 + jnp.tanh(0.7978845608028654 * (x + 0.044715 * x * x * x)))


# ----------------------------- fused encoder kernel ---------------------------
def _encoder_kernel(x_ref, mask_ref, emb_g_ref, emb_b_ref,
                    wqkv_ref, bqkv_ref, wo_ref, bo_ref, ln1g_ref, ln1b_ref,
                    wi_ref, bi_ref, wo2_ref, bo2_ref, ln2g_ref, ln2b_ref,
                    o_ref):
    """One grid step = (one batch slab [S,H]) x (one encoder layer).

    The output block index depends only on the batch axis, so activations stay
    resident in VMEM across the inner ("arbitrary") layer axis: layer l reads
    what layer l-1 wrote — no HBM round trip between layers.
    """
    layer = pl.program_id(1)

    @pl.when(layer == 0)
    def _():                                   # embedding LayerNorm, once per batch
        o_ref[...] = _ln(x_ref[...], emb_g_ref[...], emb_b_ref[...])

    h = o_ref[...]                             # [S, H] f32 (resident activations)
    bias = mask_ref[0]                         # [1, S] additive key-mask bias
    scale = 1.0 / math.sqrt(HEAD_DIM)

    # --- fused QKV projection: single [S,H] @ [H,3H] matmul ---
    qkv = _mm(h, wqkv_ref[0]) + bqkv_ref[0]    # [S, 3H] f32

    # --- multi-head self-attention, all heads inside this one kernel ---
    ctx_heads = []
    for hd in range(NUM_HEADS):
        lo = hd * HEAD_DIM
        q_h = qkv[:, lo:lo + HEAD_DIM]                              # [S, Dh]
        k_h = qkv[:, HIDDEN + lo:HIDDEN + lo + HEAD_DIM]            # [S, Dh]
        v_h = qkv[:, 2 * HIDDEN + lo:2 * HIDDEN + lo + HEAD_DIM]    # [S, Dh]
        s = jnp.dot(q_h, k_h.T, preferred_element_type=jnp.float32) * scale + bias
        s = s - jnp.max(s, axis=-1, keepdims=True)
        p = jnp.exp(s)
        p = p * pl.reciprocal(jnp.sum(p, axis=-1, keepdims=True), approx=True)
        ctx_heads.append(jnp.dot(p, v_h, preferred_element_type=jnp.float32))
    ctx = jnp.concatenate(ctx_heads, axis=-1)                       # [S, H]

    attn_out = _mm(ctx, wo_ref[0]) + bo_ref[0]
    h1 = _ln(h + attn_out, ln1g_ref[0], ln1b_ref[0])

    # --- feed-forward ---
    inter = _gelu(_mm(h1, wi_ref[0]) + bi_ref[0])
    ffn_out = _mm(inter, wo2_ref[0]) + bo2_ref[0]
    o_ref[...] = _ln(h1 + ffn_out, ln2g_ref[0], ln2b_ref[0])


def encoder_forward(x, mask_bias, p):
    """x: [B*S, H] raw embedding sum; mask_bias: [B, 1, S]. One pallas_call."""
    M, H = x.shape
    B = mask_bias.shape[0]
    S = M // B
    L = NUM_LAYERS
    FF = INTERMEDIATE

    act_spec = pl.BlockSpec((S, H), lambda b, l: (b, 0))
    shared2 = lambda shape: pl.BlockSpec(shape, lambda b, l: (0, 0))
    per_layer = lambda shape: pl.BlockSpec(shape, lambda b, l: (l, 0, 0))

    return pl.pallas_call(
        _encoder_kernel,
        out_shape=jax.ShapeDtypeStruct((M, H), jnp.float32),
        grid=(B, L),
        in_specs=[
            act_spec,                                            # embeddings
            pl.BlockSpec((1, 1, S), lambda b, l: (b, 0, 0)),     # mask bias
            shared2((1, H)), shared2((1, H)),                    # embedding LN
            per_layer((1, H, 3 * H)), per_layer((1, 1, 3 * H)),  # fused QKV
            per_layer((1, H, H)), per_layer((1, 1, H)),          # attn out proj
            per_layer((1, 1, H)), per_layer((1, 1, H)),          # LN1
            per_layer((1, H, FF)), per_layer((1, 1, FF)),        # FFN in
            per_layer((1, FF, H)), per_layer((1, 1, H)),         # FFN out
            per_layer((1, 1, H)), per_layer((1, 1, H)),          # LN2
        ],
        out_specs=act_spec,
        compiler_params=pltpu.CompilerParams(
            dimension_semantics=("parallel", "arbitrary")),
    )(x, mask_bias, p["emb_ln_g"], p["emb_ln_b"],
      p["w_qkv"], p["b_qkv"], p["w_attn_out"], p["b_attn_out"],
      p["ln1_g"], p["ln1_b"],
      p["w_ffn_in"], p["b_ffn_in"], p["w_ffn_out"], p["b_ffn_out"],
      p["ln2_g"], p["ln2_b"])


# ----------------------------- fused heads kernel ------------------------------
def _head_kernel(seq_ref, cond_ref,
                 cln_wg_ref, cln_wb_ref, cln_g_ref, cln_b_ref,
                 pool_w_ref, pool_b_ref,
                 cls_tw_ref, cls_tb_ref, cls_lng_ref, cls_lnb_ref,
                 dec_w_ref, dec_b_ref,
                 logits_ref, pooled_ref):
    """Per-batch: pooler (dense+tanh on [CLS]), conditional LN, CLS/LM head."""
    seq = seq_ref[...]                         # [S, H] sequence output
    cond = cond_ref[0]                         # [1, H] condition vector

    # pooler on the pre-conditional-LN sequence output (row 0 = [CLS])
    cls = seq[0:1, :]
    pooled_ref[0] = jnp.tanh(_mm(cls, pool_w_ref[...]) + pool_b_ref[...])

    # conditional BertLayerNorm: gamma/beta shifted by zero-init dense(cond)
    gamma = cln_g_ref[...] + _mm(cond, cln_wg_ref[...])
    beta = cln_b_ref[...] + _mm(cond, cln_wb_ref[...])
    x = _ln(seq, gamma, beta)

    # CLS prediction head: dense + gelu + LN, then tied decoder
    t = _gelu(_mm(x, cls_tw_ref[...]) + cls_tb_ref[...])
    t = _ln(t, cls_lng_ref[...], cls_lnb_ref[...])
    logits_ref[...] = _mm(t, dec_w_ref[...]) + dec_b_ref[...]


def head_forward(seq, cond_vec, p):
    M, H = seq.shape
    B = cond_vec.shape[0]
    S = M // B
    V = VOCAB

    cond3 = cond_vec.reshape(B, 1, H).astype(jnp.float32)
    shared = lambda shape: pl.BlockSpec(shape, lambda b: tuple(0 for _ in shape))

    logits, pooled = pl.pallas_call(
        _head_kernel,
        out_shape=(jax.ShapeDtypeStruct((M, V), jnp.float32),
                   jax.ShapeDtypeStruct((B, 1, H), jnp.float32)),
        grid=(B,),
        in_specs=[
            pl.BlockSpec((S, H), lambda b: (b, 0)),          # sequence output
            pl.BlockSpec((1, 1, H), lambda b: (b, 0, 0)),    # cond vector
            shared((H, H)), shared((H, H)),                  # cond-LN dense (zero init)
            shared((1, H)), shared((1, H)),                  # cond-LN gamma/beta
            shared((H, H)), shared((1, H)),                  # pooler
            shared((H, H)), shared((1, H)),                  # CLS transform
            shared((1, H)), shared((1, H)),                  # CLS LN
            shared((H, V)), shared((1, V)),                  # tied decoder + bias
        ],
        out_specs=(pl.BlockSpec((S, V), lambda b: (b, 0)),
                   pl.BlockSpec((1, 1, H), lambda b: (b, 0, 0))),
        compiler_params=pltpu.CompilerParams(dimension_semantics=("parallel",)),
    )(seq, cond3, p["cln_wg"], p["cln_wb"], p["cln_g"], p["cln_b"],
      p["pool_w"], p["pool_b"], p["cls_tw"], p["cls_tb"],
      p["cls_ln_g"], p["cls_ln_b"], p["dec_w"], p["dec_bias"])
    return logits, pooled.reshape(B, H)


# ----------------------------- parameter construction --------------------------
def init_params(seed=0):
    root = jax.random.PRNGKey(seed)
    ks = iter([jax.random.fold_in(root, i) for i in range(200)])

    def normal(shape, std=0.02):
        return jax.random.normal(next(ks), shape, dtype=jnp.float32) * std

    H, FF, L = HIDDEN, INTERMEDIATE, NUM_LAYERS
    word_emb = normal((VOCAB, H))

    # per-layer weights stacked on a leading layer axis (kernel indexes with l);
    # QKV fused into one [H, 3H] projection per layer.
    w_qkv, b_qkv, w_o, b_o, ln1_g, ln1_b = [], [], [], [], [], []
    w_i, b_i, w_o2, b_o2, ln2_g, ln2_b = [], [], [], [], [], []
    for _ in range(L):
        wq, wk, wv = normal((H, H)), normal((H, H)), normal((H, H))
        w_qkv.append(jnp.concatenate([wq, wk, wv], axis=1))
        b_qkv.append(jnp.zeros((1, 3 * H), jnp.float32))
        w_o.append(normal((H, H)))
        b_o.append(jnp.zeros((1, H), jnp.float32))
        ln1_g.append(jnp.ones((1, H), jnp.float32))
        ln1_b.append(jnp.zeros((1, H), jnp.float32))
        w_i.append(normal((H, FF)))
        b_i.append(jnp.zeros((1, FF), jnp.float32))
        w_o2.append(normal((FF, H)))
        b_o2.append(jnp.zeros((1, H), jnp.float32))
        ln2_g.append(jnp.ones((1, H), jnp.float32))
        ln2_b.append(jnp.zeros((1, H), jnp.float32))

    return {
        # embeddings (gather stays in JAX; table kept in f32)
        "word_emb": word_emb,
        "pos_emb": normal((MAX_POS, H)),
        "tok_emb": normal((TYPE_VOCAB, H)),
        "emb_ln_g": jnp.ones((1, H), jnp.float32),
        "emb_ln_b": jnp.zeros((1, H), jnp.float32),
        # encoder stacks: MXU weights in bf16, biases / LN params in f32
        "w_qkv": jnp.stack(w_qkv).astype(BF16),           # [L, H, 3H]
        "b_qkv": jnp.stack(b_qkv),                        # [L, 1, 3H]
        "w_attn_out": jnp.stack(w_o).astype(BF16),        # [L, H, H]
        "b_attn_out": jnp.stack(b_o),                     # [L, 1, H]
        "ln1_g": jnp.stack(ln1_g), "ln1_b": jnp.stack(ln1_b),
        "w_ffn_in": jnp.stack(w_i).astype(BF16),          # [L, H, FF]
        "b_ffn_in": jnp.stack(b_i),                       # [L, 1, FF]
        "w_ffn_out": jnp.stack(w_o2).astype(BF16),        # [L, FF, H]
        "b_ffn_out": jnp.stack(b_o2),                     # [L, 1, H]
        "ln2_g": jnp.stack(ln2_g), "ln2_b": jnp.stack(ln2_b),
        # pooler
        "pool_w": normal((H, H)).astype(BF16),
        "pool_b": jnp.zeros((1, H), jnp.float32),
        # conditional BertLayerNorm (zero-init dense layers, no bias)
        "cln_g": jnp.ones((1, H), jnp.float32),
        "cln_b": jnp.zeros((1, H), jnp.float32),
        "cln_wg": jnp.zeros((H, H), BF16),
        "cln_wb": jnp.zeros((H, H), BF16),
        # CLS prediction head (transform + LN + tied decoder)
        "cls_tw": normal((H, H)).astype(BF16),
        "cls_tb": jnp.zeros((1, H), jnp.float32),
        "cls_ln_g": jnp.ones((1, H), jnp.float32),
        "cls_ln_b": jnp.zeros((1, H), jnp.float32),
        # tied decoder weight pre-transposed ONCE at init (no per-forward .T)
        "dec_w": word_emb.T.astype(BF16),                 # [H, VOCAB]
        "dec_bias": jnp.zeros((1, VOCAB), jnp.float32),
    }


# ----------------------------- forward pass ------------------------------------
@jax.jit
def basic_bert_forward(params, input_ids, token_type_ids, cond_vec):
    B, S = input_ids.shape
    H = HIDDEN
    M = B * S

    # embeddings (gather + add stay in plain JAX)
    x = (params["word_emb"][input_ids]
         + params["pos_emb"][jnp.arange(S)][None, :, :]
         + params["tok_emb"][token_type_ids])
    x = x.reshape(M, H).astype(jnp.float32)

    # additive attention-mask bias (BERT convention: token valid iff id > 0)
    valid = (input_ids > 0).astype(jnp.float32)                  # [B, S]
    mask_bias = ((1.0 - valid) * -10000.0).reshape(B, 1, S)

    seq = encoder_forward(x, mask_bias, params)          # one pallas_call (all layers)
    logits, pooled = head_forward(seq, cond_vec, params)  # one pallas_call (all heads)
    return logits.reshape(B, S, VOCAB), pooled


# ----------------------------- main ---------------------------------------------
if __name__ == "__main__":
    word2ix = {f"tok{i}": i for i in range(VOCAB)}   # synthetic vocab
    assert len(word2ix) == VOCAB

    B, S = 2, 8
    key = jax.random.PRNGKey(0)
    k_ids, k_cond = jax.random.split(key)
    input_ids = jax.random.randint(k_ids, (B, S), minval=1, maxval=VOCAB, dtype=jnp.int32)
    token_type_ids = jnp.zeros((B, S), dtype=jnp.int32)
    cond_vec = jax.random.normal(k_cond, (B, HIDDEN), dtype=jnp.float32)

    params = init_params(seed=0)
    logits, pooled = basic_bert_forward(params, input_ids, token_type_ids, cond_vec)
    jax.block_until_ready((logits, pooled))
    assert logits.shape == (B, S, VOCAB) and pooled.shape == (B, HIDDEN)
    assert bool(jnp.all(jnp.isfinite(logits))) and bool(jnp.all(jnp.isfinite(pooled)))
    print("KERNEL_OK")
</pallas_src>

<mosaic_0001>
module attributes {stable_mosaic.version = 11 : i64} {
  func.func @_head_kernel(%arg0: i32, %arg1: memref<8x32xf32, #tpu.memory_space<vmem>>, %arg2: memref<1x1x32xf32, #tpu.memory_space<vmem>>, %arg3: memref<32x32xbf16, #tpu.memory_space<vmem>>, %arg4: memref<32x32xbf16, #tpu.memory_space<vmem>>, %arg5: memref<1x32xf32, #tpu.memory_space<vmem>>, %arg6: memref<1x32xf32, #tpu.memory_space<vmem>>, %arg7: memref<32x32xbf16, #tpu.memory_space<vmem>>, %arg8: memref<1x32xf32, #tpu.memory_space<vmem>>, %arg9: memref<32x32xbf16, #tpu.memory_space<vmem>>, %arg10: memref<1x32xf32, #tpu.memory_space<vmem>>, %arg11: memref<1x32xf32, #tpu.memory_space<vmem>>, %arg12: memref<1x32xf32, #tpu.memory_space<vmem>>, %arg13: memref<32x32xbf16, #tpu.memory_space<vmem>>, %arg14: memref<1x32xf32, #tpu.memory_space<vmem>>, %arg15: memref<8x32xf32, #tpu.memory_space<vmem>>, %arg16: memref<1x1x32xf32, #tpu.memory_space<vmem>>) attributes {dimension_semantics = [#tpu.dimension_semantics<parallel>], iteration_bounds = array<i64: 2>, scalar_prefetch = 0 : i64, scratch_operands = 0 : i64, tpu.core_type = #tpu.core_type<tc>, window_params = [{transform_indices = @transform_0, window_bounds = array<i64: 8, 32>}, {transform_indices = @transform_1, window_bounds = array<i64: 1, 1, 32>}, {pipeline_mode = #tpu.pipeline_mode<synchronous>, transform_indices = @transform_2, window_bounds = array<i64: 32, 32>}, {pipeline_mode = #tpu.pipeline_mode<synchronous>, transform_indices = @transform_3, window_bounds = array<i64: 32, 32>}, {pipeline_mode = #tpu.pipeline_mode<synchronous>, transform_indices = @transform_4, window_bounds = array<i64: 1, 32>}, {pipeline_mode = #tpu.pipeline_mode<synchronous>, transform_indices = @transform_5, window_bounds = array<i64: 1, 32>}, {pipeline_mode = #tpu.pipeline_mode<synchronous>, transform_indices = @transform_6, window_bounds = array<i64: 32, 32>}, {pipeline_mode = #tpu.pipeline_mode<synchronous>, transform_indices = @transform_7, window_bounds = array<i64: 1, 32>}, {pipeline_mode = #tpu.pipeline_mode<synchronous>, transform_indices = @transform_8, window_bounds = array<i64: 32, 32>}, {pipeline_mode = #tpu.pipeline_mode<synchronous>, transform_indices = @transform_9, window_bounds = array<i64: 1, 32>}, {pipeline_mode = #tpu.pipeline_mode<synchronous>, transform_indices = @transform_10, window_bounds = array<i64: 1, 32>}, {pipeline_mode = #tpu.pipeline_mode<synchronous>, transform_indices = @transform_11, window_bounds = array<i64: 1, 32>}, {pipeline_mode = #tpu.pipeline_mode<synchronous>, transform_indices = @transform_12, window_bounds = array<i64: 32, 32>}, {pipeline_mode = #tpu.pipeline_mode<synchronous>, transform_indices = @transform_13, window_bounds = array<i64: 1, 32>}, {transform_indices = @transform_14, window_bounds = array<i64: 8, 32>}, {transform_indices = @transform_15, window_bounds = array<i64: 1, 1, 32>}]} {
    %c0 = arith.constant 0 : index
    %c0_0 = arith.constant 0 : index
    %0 = vector.load %arg1[%c0, %c0_0] : memref<8x32xf32, #tpu.memory_space<vmem>>, vector<8x32xf32>
    %c0_1 = arith.constant 0 : index
    %c0_2 = arith.constant 0 : index
    %c0_3 = arith.constant 0 : index
    %1 = vector.load %arg2[%c0_1, %c0_2, %c0_3] : memref<1x1x32xf32, #tpu.memory_space<vmem>>, vector<1x1x32xf32>
    %2 = vector.shape_cast %1 : vector<1x1x32xf32> to vector<1x32xf32>
    %3 = vector.extract_strided_slice %0 {offsets = [0, 0], sizes = [1, 32], strides = [1, 1]} : vector<8x32xf32> to vector<1x32xf32>
    %c0_4 = arith.constant 0 : index
    %c0_5 = arith.constant 0 : index
    %4 = vector.load %arg7[%c0_4, %c0_5] : memref<32x32xbf16, #tpu.memory_space<vmem>>, vector<32x32xbf16>
    %5 = arith.truncf %3 : vector<1x32xf32> to vector<1x32xbf16>
    %cst = arith.constant dense<0.000000e+00> : vector<1x32xf32>
    %6 = tpu.matmul %5, %4, %cst {dimension_numbers = #tpu.dot_dimension_numbers<[1], [0], [0], [1], [0, 0, 1, 1], [], []>} : vector<1x32xbf16>, vector<32x32xbf16>, vector<1x32xf32> -> vector<1x32xf32>
    %c0_6 = arith.constant 0 : index
    %c0_7 = arith.constant 0 : index
    %7 = vector.load %arg8[%c0_6, %c0_7] : memref<1x32xf32, #tpu.memory_space<vmem>>, vector<1x32xf32>
    %8 = arith.addf %6, %7 : vector<1x32xf32>
    %9 = math.tanh %8 : vector<1x32xf32>
    %c0_8 = arith.constant 0 : index
    %c0_9 = arith.constant 0 : index
    %c0_10 = arith.constant 0 : index
    %10 = vector.load %arg16[%c0_8, %c0_9, %c0_10] : memref<1x1x32xf32, #tpu.memory_space<vmem>>, vector<1x1x32xf32>
    %11 = vector.shape_cast %10 : vector<1x1x32xf32> to vector<1x32xf32>
    %12 = vector.shape_cast %9 : vector<1x32xf32> to vector<1x1x32xf32>
    tpu.vector_store %arg16[%c0_8, %c0_9, %c0_10], %12 {strides = array<i32>} : memref<1x1x32xf32, #tpu.memory_space<vmem>>, vector<1x1x32xf32>,
    %c0_11 = arith.constant 0 : index
    %c0_12 = arith.constant 0 : index
    %13 = vector.load %arg5[%c0_11, %c0_12] : memref<1x32xf32, #tpu.memory_space<vmem>>, vector<1x32xf32>
    %c0_13 = arith.constant 0 : index
    %c0_14 = arith.constant 0 : index
    %14 = vector.load %arg3[%c0_13, %c0_14] : memref<32x32xbf16, #tpu.memory_space<vmem>>, vector<32x32xbf16>
    %15 = arith.truncf %2 : vector<1x32xf32> to vector<1x32xbf16>
    %cst_15 = arith.constant dense<0.000000e+00> : vector<1x32xf32>
    %16 = tpu.matmul %15, %14, %cst_15 {dimension_numbers = #tpu.dot_dimension_numbers<[1], [0], [0], [1], [0, 0, 1, 1], [], []>} : vector<1x32xbf16>, vector<32x32xbf16>, vector<1x32xf32> -> vector<1x32xf32>
    %17 = arith.addf %13, %16 : vector<1x32xf32>
    %c0_16 = arith.constant 0 : index
    %c0_17 = arith.constant 0 : index
    %18 = vector.load %arg6[%c0_16, %c0_17] : memref<1x32xf32, #tpu.memory_space<vmem>>, vector<1x32xf32>
    %c0_18 = arith.constant 0 : index
    %c0_19 = arith.constant 0 : index
    %19 = vector.load %arg4[%c0_18, %c0_19] : memref<32x32xbf16, #tpu.memory_space<vmem>>, vector<32x32xbf16>
    %20 = arith.truncf %2 : vector<1x32xf32> to vector<1x32xbf16>
    %cst_20 = arith.constant dense<0.000000e+00> : vector<1x32xf32>
    %21 = tpu.matmul %20, %19, %cst_20 {dimension_numbers = #tpu.dot_dimension_numbers<[1], [0], [0], [1], [0, 0, 1, 1], [], []>} : vector<1x32xbf16>, vector<32x32xbf16>, vector<1x32xf32> -> vector<1x32xf32>
    %22 = arith.addf %18, %21 : vector<1x32xf32>
    %cst_21 = arith.constant dense<0.000000e+00> : vector<8xf32>
    %23 = vector.multi_reduction <add>, %0, %cst_21 [1] : vector<8x32xf32> to vector<8xf32>
    %24 = vector.shape_cast %23 : vector<8xf32> to vector<8x1xf32>
    %cst_22 = arith.constant 3.200000e+01 : f32
    %25 = vector.broadcast %cst_22 : f32 to vector<8x1xf32>
    %26 = arith.divf %24, %25 : vector<8x1xf32>
    %27 = vector.broadcast %26 : vector<8x1xf32> to vector<8x32xf32>
    %28 = arith.subf %0, %27 : vector<8x32xf32>
    %29 = arith.mulf %28, %28 : vector<8x32xf32>
    %cst_23 = arith.constant dense<0.000000e+00> : vector<8xf32>
    %30 = vector.multi_reduction <add>, %29, %cst_23 [1] : vector<8x32xf32> to vector<8xf32>
    %31 = vector.shape_cast %30 : vector<8xf32> to vector<8x1xf32>
    %cst_24 = arith.constant 3.200000e+01 : f32
    %32 = vector.broadcast %cst_24 : f32 to vector<8x1xf32>
    %33 = arith.divf %31, %32 : vector<8x1xf32>
    %cst_25 = arith.constant 9.99999996E-13 : f32
    %34 = vector.broadcast %cst_25 : f32 to vector<8x1xf32>
    %35 = arith.addf %33, %34 : vector<8x1xf32>
    %36 = math.rsqrt %35 : vector<8x1xf32>
    %37 = vector.broadcast %36 : vector<8x1xf32> to vector<8x32xf32>
    %38 = arith.mulf %28, %37 : vector<8x32xf32>
    %39 = vector.broadcast %17 : vector<1x32xf32> to vector<8x32xf32>
    %40 = arith.mulf %38, %39 : vector<8x32xf32>
    %41 = vector.broadcast %22 : vector<1x32xf32> to vector<8x32xf32>
    %42 = arith.addf %40, %41 : vector<8x32xf32>
    %c0_26 = arith.constant 0 : index
    %c0_27 = arith.constant 0 : index
    %43 = vector.load %arg9[%c0_26, %c0_27] : memref<32x32xbf16, #tpu.memory_space<vmem>>, vector<32x32xbf16>
    %44 = arith.truncf %42 : vector<8x32xf32> to vector<8x32xbf16>
    %cst_28 = arith.constant dense<0.000000e+00> : vector<8x32xf32>
    %45 = tpu.matmul %44, %43, %cst_28 {dimension_numbers = #tpu.dot_dimension_numbers<[1], [0], [0], [1], [0, 0, 1, 1], [], []>} : vector<8x32xbf16>, vector<32x32xbf16>, vector<8x32xf32> -> vector<8x32xf32>
    %c0_29 = arith.constant 0 : index
    %c0_30 = arith.constant 0 : index
    %46 = vector.load %arg10[%c0_29, %c0_30] : memref<1x32xf32, #tpu.memory_space<vmem>>, vector<1x32xf32>
    %47 = vector.broadcast %46 : vector<1x32xf32> to vector<8x32xf32>
    %48 = arith.addf %45, %47 : vector<8x32xf32>
    %cst_31 = arith.constant 5.000000e-01 : f32
    %49 = vector.broadcast %cst_31 : f32 to vector<8x32xf32>
    %50 = arith.mulf %49, %48 : vector<8x32xf32>
    %cst_32 = arith.constant 4.471500e-02 : f32
    %51 = vector.broadcast %cst_32 : f32 to vector<8x32xf32>
    %52 = arith.mulf %51, %48 : vector<8x32xf32>
    %53 = arith.mulf %52, %48 : vector<8x32xf32>
    %54 = arith.mulf %53, %48 : vector<8x32xf32>
    %55 = arith.addf %48, %54 : vector<8x32xf32>
    %cst_33 = arith.constant 0.797884583 : f32
    %56 = vector.broadcast %cst_33 : f32 to vector<8x32xf32>
    %57 = arith.mulf %56, %55 : vector<8x32xf32>
    %58 = math.tanh %57 : vector<8x32xf32>
    %cst_34 = arith.constant 1.000000e+00 : f32
    %59 = vector.broadcast %cst_34 : f32 to vector<8x32xf32>
    %60 = arith.addf %59, %58 : vector<8x32xf32>
    %61 = arith.mulf %50, %60 : vector<8x32xf32>
    %c0_35 = arith.constant 0 : index
    %c0_36 = arith.constant 0 : index
    %62 = vector.load %arg11[%c0_35, %c0_36] : memref<1x32xf32, #tpu.memory_space<vmem>>, vector<1x32xf32>
    %c0_37 = arith.constant 0 : index
    %c0_38 = arith.constant 0 : index
    %63 = vector.load %arg12[%c0_37, %c0_38] : memref<1x32xf32, #tpu.memory_space<vmem>>, vector<1x32xf32>
    %cst_39 = arith.constant dense<0.000000e+00> : vector<8xf32>
    %64 = vector.multi_reduction <add>, %61, %cst_39 [1] : vector<8x32xf32> to vector<8xf32>
    %65 = vector.shape_cast %64 : vector<8xf32> to vector<8x1xf32>
    %cst_40 = arith.constant 3.200000e+01 : f32
    %66 = vector.broadcast %cst_40 : f32 to vector<8x1xf32>
    %67 = arith.divf %65, %66 : vector<8x1xf32>
    %68 = vector.broadcast %67 : vector<8x1xf32> to vector<8x32xf32>
    %69 = arith.subf %61, %68 : vector<8x32xf32>
    %70 = arith.mulf %69, %69 : vector<8x32xf32>
    %cst_41 = arith.constant dense<0.000000e+00> : vector<8xf32>
    %71 = vector.multi_reduction <add>, %70, %cst_41 [1] : vector<8x32xf32> to vector<8xf32>
    %72 = vector.shape_cast %71 : vector<8xf32> to vector<8x1xf32>
    %cst_42 = arith.constant 3.200000e+01 : f32
    %73 = vector.broadcast %cst_42 : f32 to vector<8x1xf32>
    %74 = arith.divf %72, %73 : vector<8x1xf32>
    %cst_43 = arith.constant 9.99999996E-13 : f32
    %75 = vector.broadcast %cst_43 : f32 to vector<8x1xf32>
    %76 = arith.addf %74, %75 : vector<8x1xf32>
    %77 = math.rsqrt %76 : vector<8x1xf32>
    %78 = vector.broadcast %77 : vector<8x1xf32> to vector<8x32xf32>
    %79 = arith.mulf %69, %78 : vector<8x32xf32>
    %80 = vector.broadcast %62 : vector<1x32xf32> to vector<8x32xf32>
    %81 = arith.mulf %79, %80 : vector<8x32xf32>
    %82 = vector.broadcast %63 : vector<1x32xf32> to vector<8x32xf32>
    %83 = arith.addf %81, %82 : vector<8x32xf32>
    %c0_44 = arith.constant 0 : index
    %c0_45 = arith.constant 0 : index
    %84 = vector.load %arg13[%c0_44, %c0_45] : memref<32x32xbf16, #tpu.memory_space<vmem>>, vector<32x32xbf16>
    %85 = arith.truncf %83 : vector<8x32xf32> to vector<8x32xbf16>
    %cst_46 = arith.constant dense<0.000000e+00> : vector<8x32xf32>
    %86 = tpu.matmul %85, %84, %cst_46 {dimension_numbers = #tpu.dot_dimension_numbers<[1], [0], [0], [1], [0, 0, 1, 1], [], []>} : vector<8x32xbf16>, vector<32x32xbf16>, vector<8x32xf32> -> vector<8x32xf32>
    %c0_47 = arith.constant 0 : index
    %c0_48 = arith.constant 0 : index
    %87 = vector.load %arg14[%c0_47, %c0_48] : memref<1x32xf32, #tpu.memory_space<vmem>>, vector<1x32xf32>
    %88 = vector.broadcast %87 : vector<1x32xf32> to vector<8x32xf32>
    %89 = arith.addf %86, %88 : vector<8x32xf32>
    %c0_49 = arith.constant 0 : index
    %c0_50 = arith.constant 0 : index
    %90 = vector.load %arg15[%c0_49, %c0_50] : memref<8x32xf32, #tpu.memory_space<vmem>>, vector<8x32xf32>
    tpu.vector_store %arg15[%c0_49, %c0_50], %89 {strides = array<i32>} : memref<8x32xf32, #tpu.memory_space<vmem>>, vector<8x32xf32>,
    return
  }
  func.func @transform_0(%arg0: i32) -> (i32, i32) {
    %c0_i32 = arith.constant 0 : i32
    %c0_i32_0 = arith.constant 0 : i32
    return %arg0, %c0_i32 : i32, i32
  }
  func.func @transform_1(%arg0: i32) -> (i32, i32, i32) {
    %c0_i32 = arith.constant 0 : i32
    %c0_i32_0 = arith.constant 0 : i32
    %c0_i32_1 = arith.constant 0 : i32
    return %arg0, %c0_i32, %c0_i32_0 : i32, i32, i32
  }
  func.func @transform_2(%arg0: i32) -> (i32, i32) {
    %c0_i32 = arith.constant 0 : i32
    %c0_i32_0 = arith.constant 0 : i32
    %c0_i32_1 = arith.constant 0 : i32
    return %c0_i32, %c0_i32_0 : i32, i32
  }
  func.func @transform_3(%arg0: i32) -> (i32, i32) {
    %c0_i32 = arith.constant 0 : i32
    %c0_i32_0 = arith.constant 0 : i32
    %c0_i32_1 = arith.constant 0 : i32
    return %c0_i32, %c0_i32_0 : i32, i32
  }
  func.func @transform_4(%arg0: i32) -> (i32, i32) {
    %c0_i32 = arith.constant 0 : i32
    %c0_i32_0 = arith.constant 0 : i32
    %c0_i32_1 = arith.constant 0 : i32
    return %c0_i32, %c0_i32_0 : i32, i32
  }
  func.func @transform_5(%arg0: i32) -> (i32, i32) {
    %c0_i32 = arith.constant 0 : i32
    %c0_i32_0 = arith.constant 0 : i32
    %c0_i32_1 = arith.constant 0 : i32
    return %c0_i32, %c0_i32_0 : i32, i32
  }
  func.func @transform_6(%arg0: i32) -> (i32, i32) {
    %c0_i32 = arith.constant 0 : i32
    %c0_i32_0 = arith.constant 0 : i32
    %c0_i32_1 = arith.constant 0 : i32
    return %c0_i32, %c0_i32_0 : i32, i32
  }
  func.func @transform_7(%arg0: i32) -> (i32, i32) {
    %c0_i32 = arith.constant 0 : i32
    %c0_i32_0 = arith.constant 0 : i32
    %c0_i32_1 = arith.constant 0 : i32
    return %c0_i32, %c0_i32_0 : i32, i32
  }
  func.func @transform_8(%arg0: i32) -> (i32, i32) {
    %c0_i32 = arith.constant 0 : i32
    %c0_i32_0 = arith.constant 0 : i32
    %c0_i32_1 = arith.constant 0 : i32
    return %c0_i32, %c0_i32_0 : i32, i32
  }
  func.func @transform_9(%arg0: i32) -> (i32, i32) {
    %c0_i32 = arith.constant 0 : i32
    %c0_i32_0 = arith.constant 0 : i32
    %c0_i32_1 = arith.constant 0 : i32
    return %c0_i32, %c0_i32_0 : i32, i32
  }
  func.func @transform_10(%arg0: i32) -> (i32, i32) {
    %c0_i32 = arith.constant 0 : i32
    %c0_i32_0 = arith.constant 0 : i32
    %c0_i32_1 = arith.constant 0 : i32
    return %c0_i32, %c0_i32_0 : i32, i32
  }
  func.func @transform_11(%arg0: i32) -> (i32, i32) {
    %c0_i32 = arith.constant 0 : i32
    %c0_i32_0 = arith.constant 0 : i32
    %c0_i32_1 = arith.constant 0 : i32
    return %c0_i32, %c0_i32_0 : i32, i32
  }
  func.func @transform_12(%arg0: i32) -> (i32, i32) {
    %c0_i32 = arith.constant 0 : i32
    %c0_i32_0 = arith.constant 0 : i32
    %c0_i32_1 = arith.constant 0 : i32
    return %c0_i32, %c0_i32_0 : i32, i32
  }
  func.func @transform_13(%arg0: i32) -> (i32, i32) {
    %c0_i32 = arith.constant 0 : i32
    %c0_i32_0 = arith.constant 0 : i32
    %c0_i32_1 = arith.constant 0 : i32
    return %c0_i32, %c0_i32_0 : i32, i32
  }
  func.func @transform_14(%arg0: i32) -> (i32, i32) {
    %c0_i32 = arith.constant 0 : i32
    %c0_i32_0 = arith.constant 0 : i32
    return %arg0, %c0_i32 : i32, i32
  }
  func.func @transform_15(%arg0: i32) -> (i32, i32, i32) {
    %c0_i32 = arith.constant 0 : i32
    %c0_i32_0 = arith.constant 0 : i32
    %c0_i32_1 = arith.constant 0 : i32
    return %arg0, %c0_i32, %c0_i32_0 : i32, i32, i32
  }
}

module attributes {stable_mosaic.version = 11 : i64} {
  func.func @_encoder_kernel(%arg0: i32, %arg1: i32, %arg2: memref<8x32xf32, #tpu.memory_space<vmem>>, %arg3: memref<1x1x8xf32, #tpu.memory_space<vmem>>, %arg4: memref<1x32xf32, #tpu.memory_space<vmem>>, %arg5: memref<1x32xf32, #tpu.memory_space<vmem>>, %arg6: memref<1x32x96xbf16, #tpu.memory_space<vmem>>, %arg7: memref<1x1x96xf32, #tpu.memory_space<vmem>>, %arg8: memref<1x32x32xbf16, #tpu.memory_space<vmem>>, %arg9: memref<1x1x32xf32, #tpu.memory_space<vmem>>, %arg10: memref<1x1x32xf32, #tpu.memory_space<vmem>>, %arg11: memref<1x1x32xf32, #tpu.memory_space<vmem>>, %arg12: memref<1x32x64xbf16, #tpu.memory_space<vmem>>, %arg13: memref<1x1x64xf32, #tpu.memory_space<vmem>>, %arg14: memref<1x64x32xbf16, #tpu.memory_space<vmem>>, %arg15: memref<1x1x32xf32, #tpu.memory_space<vmem>>, %arg16: memref<1x1x32xf32, #tpu.memory_space<vmem>>, %arg17: memref<1x1x32xf32, #tpu.memory_space<vmem>>, %arg18: memref<8x32xf32, #tpu.memory_space<vmem>>) attributes {dimension_semantics = [#tpu.dimension_semantics<parallel>, #tpu.dimension_semantics<arbitrary>], iteration_bounds = array<i64: 2, 2>, scalar_prefetch = 0 : i64, scratch_operands = 0 : i64, tpu.core_type = #tpu.core_type<tc>, window_params = [{transform_indices = @transform_0, window_bounds = array<i64: 8, 32>}, {transform_indices = @transform_1, window_bounds = array<i64: 1, 1, 8>}, {pipeline_mode = #tpu.pipeline_mode<synchronous>, transform_indices = @transform_2, window_bounds = array<i64: 1, 32>}, {pipeline_mode = #tpu.pipeline_mode<synchronous>, transform_indices = @transform_3, window_bounds = array<i64: 1, 32>}, {transform_indices = @transform_4, window_bounds = array<i64: 1, 32, 96>}, {transform_indices = @transform_5, window_bounds = array<i64: 1, 1, 96>}, {transform_indices = @transform_6, window_bounds = array<i64: 1, 32, 32>}, {transform_indices = @transform_7, window_bounds = array<i64: 1, 1, 32>}, {transform_indices = @transform_8, window_bounds = array<i64: 1, 1, 32>}, {transform_indices = @transform_9, window_bounds = array<i64: 1, 1, 32>}, {transform_indices = @transform_10, window_bounds = array<i64: 1, 32, 64>}, {transform_indices = @transform_11, window_bounds = array<i64: 1, 1, 64>}, {transform_indices = @transform_12, window_bounds = array<i64: 1, 64, 32>}, {transform_indices = @transform_13, window_bounds = array<i64: 1, 1, 32>}, {transform_indices = @transform_14, window_bounds = array<i64: 1, 1, 32>}, {transform_indices = @transform_15, window_bounds = array<i64: 1, 1, 32>}, {transform_indices = @transform_16, window_bounds = array<i64: 8, 32>}]} {
    %c0_i32 = arith.constant 0 : i32
    %0 = arith.cmpi eq, %arg1, %c0_i32 : i32
    %1 = arith.extui %0 : i1 to i32
    %c0_i32_0 = arith.constant 0 : i32
    %2 = arith.cmpi ne, %1, %c0_i32_0 : i32
    scf.if %2 {
      %c0_80 = arith.constant 0 : index
      %c0_81 = arith.constant 0 : index
      %183 = vector.load %arg2[%c0_80, %c0_81] : memref<8x32xf32, #tpu.memory_space<vmem>>, vector<8x32xf32>
      %c0_82 = arith.constant 0 : index
      %c0_83 = arith.constant 0 : index
      %184 = vector.load %arg4[%c0_82, %c0_83] : memref<1x32xf32, #tpu.memory_space<vmem>>, vector<1x32xf32>
      %c0_84 = arith.constant 0 : index
      %c0_85 = arith.constant 0 : index
      %185 = vector.load %arg5[%c0_84, %c0_85] : memref<1x32xf32, #tpu.memory_space<vmem>>, vector<1x32xf32>
      %cst_86 = arith.constant dense<0.000000e+00> : vector<8xf32>
      %186 = vector.multi_reduction <add>, %183, %cst_86 [1] : vector<8x32xf32> to vector<8xf32>
      %187 = vector.shape_cast %186 : vector<8xf32> to vector<8x1xf32>
      %cst_87 = arith.constant 3.200000e+01 : f32
      %188 = vector.broadcast %cst_87 : f32 to vector<8x1xf32>
      %189 = arith.divf %187, %188 : vector<8x1xf32>
      %190 = vector.broadcast %189 : vector<8x1xf32> to vector<8x32xf32>
      %191 = arith.subf %183, %190 : vector<8x32xf32>
      %192 = arith.mulf %191, %191 : vector<8x32xf32>
      %cst_88 = arith.constant dense<0.000000e+00> : vector<8xf32>
      %193 = vector.multi_reduction <add>, %192, %cst_88 [1] : vector<8x32xf32> to vector<8xf32>
      %194 = vector.shape_cast %193 : vector<8xf32> to vector<8x1xf32>
      %cst_89 = arith.constant 3.200000e+01 : f32
      %195 = vector.broadcast %cst_89 : f32 to vector<8x1xf32>
      %196 = arith.divf %194, %195 : vector<8x1xf32>
      %cst_90 = arith.constant 9.99999996E-13 : f32
      %197 = vector.broadcast %cst_90 : f32 to vector<8x1xf32>
      %198 = arith.addf %196, %197 : vector<8x1xf32>
      %199 = math.rsqrt %198 : vector<8x1xf32>
      %200 = vector.broadcast %199 : vector<8x1xf32> to vector<8x32xf32>
      %201 = arith.mulf %191, %200 : vector<8x32xf32>
      %202 = vector.broadcast %184 : vector<1x32xf32> to vector<8x32xf32>
      %203 = arith.mulf %201, %202 : vector<8x32xf32>
      %204 = vector.broadcast %185 : vector<1x32xf32> to vector<8x32xf32>
      %205 = arith.addf %203, %204 : vector<8x32xf32>
      %c0_91 = arith.constant 0 : index
      %c0_92 = arith.constant 0 : index
      %206 = vector.load %arg18[%c0_91, %c0_92] : memref<8x32xf32, #tpu.memory_space<vmem>>, vector<8x32xf32>
      tpu.vector_store %arg18[%c0_91, %c0_92], %205 {strides = array<i32>} : memref<8x32xf32, #tpu.memory_space<vmem>>, vector<8x32xf32>,
    } else {
    }
    %c0 = arith.constant 0 : index
    %c0_1 = arith.constant 0 : index
    %3 = vector.load %arg18[%c0, %c0_1] : memref<8x32xf32, #tpu.memory_space<vmem>>, vector<8x32xf32>
    %c0_2 = arith.constant 0 : index
    %c0_3 = arith.constant 0 : index
    %c0_4 = arith.constant 0 : index
    %4 = vector.load %arg3[%c0_2, %c0_3, %c0_4] : memref<1x1x8xf32, #tpu.memory_space<vmem>>, vector<1x1x8xf32>
    %5 = vector.shape_cast %4 : vector<1x1x8xf32> to vector<1x8xf32>
    %c0_5 = arith.constant 0 : index
    %c0_6 = arith.constant 0 : index
    %c0_7 = arith.constant 0 : index
    %6 = vector.load %arg6[%c0_5, %c0_6, %c0_7] : memref<1x32x96xbf16, #tpu.memory_space<vmem>>, vector<1x32x96xbf16>
    %7 = vector.shape_cast %6 : vector<1x32x96xbf16> to vector<32x96xbf16>
    %8 = arith.truncf %3 : vector<8x32xf32> to vector<8x32xbf16>
    %cst = arith.constant dense<0.000000e+00> : vector<8x96xf32>
    %9 = tpu.matmul %8, %7, %cst {dimension_numbers = #tpu.dot_dimension_numbers<[1], [0], [0], [1], [0, 0, 1, 1], [], []>} : vector<8x32xbf16>, vector<32x96xbf16>, vector<8x96xf32> -> vector<8x96xf32>
    %c0_8 = arith.constant 0 : index
    %c0_9 = arith.constant 0 : index
    %c0_10 = arith.constant 0 : index
    %10 = vector.load %arg7[%c0_8, %c0_9, %c0_10] : memref<1x1x96xf32, #tpu.memory_space<vmem>>, vector<1x1x96xf32>
    %11 = vector.shape_cast %10 : vector<1x1x96xf32> to vector<1x96xf32>
    %12 = vector.broadcast %11 : vector<1x96xf32> to vector<8x96xf32>
    %13 = arith.addf %9, %12 : vector<8x96xf32>
    %14 = vector.extract_strided_slice %13 {offsets = [0, 0], sizes = [8, 8], strides = [1, 1]} : vector<8x96xf32> to vector<8x8xf32>
    %15 = vector.extract_strided_slice %13 {offsets = [0, 32], sizes = [8, 8], strides = [1, 1]} : vector<8x96xf32> to vector<8x8xf32>
    %16 = vector.extract_strided_slice %13 {offsets = [0, 64], sizes = [8, 8], strides = [1, 1]} : vector<8x96xf32> to vector<8x8xf32>
    %17 = tpu.transpose %15, [1, 0] : vector<8x8xf32> -> vector<8x8xf32>
    %cst_11 = arith.constant dense<0.000000e+00> : vector<8x8xf32>
    %18 = tpu.matmul %14, %17, %cst_11 {dimension_numbers = #tpu.dot_dimension_numbers<[1], [0], [0], [1], [0, 0, 1, 1], [], []>} : vector<8x8xf32>, vector<8x8xf32>, vector<8x8xf32> -> vector<8x8xf32>
    %cst_12 = arith.constant 0.353553385 : f32
    %19 = vector.broadcast %cst_12 : f32 to vector<8x8xf32>
    %20 = arith.mulf %18, %19 : vector<8x8xf32>
    %21 = vector.broadcast %5 : vector<1x8xf32> to vector<8x8xf32>
    %22 = arith.addf %20, %21 : vector<8x8xf32>
    %cst_13 = arith.constant dense<0xFF800000> : vector<8xf32>
    %23 = vector.multi_reduction <maximumf>, %22, %cst_13 [1] : vector<8x8xf32> to vector<8xf32>
    %24 = vector.shape_cast %23 : vector<8xf32> to vector<8x1xf32>
    %25 = vector.broadcast %24 : vector<8x1xf32> to vector<8x8xf32>
    %26 = arith.subf %22, %25 : vector<8x8xf32>
    %27 = math.exp %26 : vector<8x8xf32>
    %cst_14 = arith.constant dense<0.000000e+00> : vector<8xf32>
    %28 = vector.multi_reduction <add>, %27, %cst_14 [1] : vector<8x8xf32> to vector<8xf32>
    %29 = vector.shape_cast %28 : vector<8xf32> to vector<8x1xf32>
    %30 = tpu.reciprocal %29 {approx = true} : vector<8x1xf32> -> vector<8x1xf32>
    %31 = vector.broadcast %30 : vector<8x1xf32> to vector<8x8xf32>
    %32 = arith.mulf %27, %31 : vector<8x8xf32>
    %cst_15 = arith.constant dense<0.000000e+00> : vector<8x8xf32>
    %33 = tpu.matmul %32, %16, %cst_15 {dimension_numbers = #tpu.dot_dimension_numbers<[1], [0], [0], [1], [0, 0, 1, 1], [], []>} : vector<8x8xf32>, vector<8x8xf32>, vector<8x8xf32> -> vector<8x8xf32>
    %34 = vector.extract_strided_slice %13 {offsets = [0, 8], sizes = [8, 8], strides = [1, 1]} : vector<8x96xf32> to vector<8x8xf32>
    %35 = vector.extract_strided_slice %13 {offsets = [0, 40], sizes = [8, 8], strides = [1, 1]} : vector<8x96xf32> to vector<8x8xf32>
    %36 = vector.extract_strided_slice %13 {offsets = [0, 72], sizes = [8, 8], strides = [1, 1]} : vector<8x96xf32> to vector<8x8xf32>
    %37 = tpu.transpose %35, [1, 0] : vector<8x8xf32> -> vector<8x8xf32>
    %cst_16 = arith.constant dense<0.000000e+00> : vector<8x8xf32>
    %38 = tpu.matmul %34, %37, %cst_16 {dimension_numbers = #tpu.dot_dimension_numbers<[1], [0], [0], [1], [0, 0, 1, 1], [], []>} : vector<8x8xf32>, vector<8x8xf32>, vector<8x8xf32> -> vector<8x8xf32>
    %cst_17 = arith.constant 0.353553385 : f32
    %39 = vector.broadcast %cst_17 : f32 to vector<8x8xf32>
    %40 = arith.mulf %38, %39 : vector<8x8xf32>
    %41 = vector.broadcast %5 : vector<1x8xf32> to vector<8x8xf32>
    %42 = arith.addf %40, %41 : vector<8x8xf32>
    %cst_18 = arith.constant dense<0xFF800000> : vector<8xf32>
    %43 = vector.multi_reduction <maximumf>, %42, %cst_18 [1] : vector<8x8xf32> to vector<8xf32>
    %44 = vector.shape_cast %43 : vector<8xf32> to vector<8x1xf32>
    %45 = vector.broadcast %44 : vector<8x1xf32> to vector<8x8xf32>
    %46 = arith.subf %42, %45 : vector<8x8xf32>
    %47 = math.exp %46 : vector<8x8xf32>
    %cst_19 = arith.constant dense<0.000000e+00> : vector<8xf32>
    %48 = vector.multi_reduction <add>, %47, %cst_19 [1] : vector<8x8xf32> to vector<8xf32>
    %49 = vector.shape_cast %48 : vector<8xf32> to vector<8x1xf32>
    %50 = tpu.reciprocal %49 {approx = true} : vector<8x1xf32> -> vector<8x1xf32>
    %51 = vector.broadcast %50 : vector<8x1xf32> to vector<8x8xf32>
    %52 = arith.mulf %47, %51 : vector<8x8xf32>
    %cst_20 = arith.constant dense<0.000000e+00> : vector<8x8xf32>
    %53 = tpu.matmul %52, %36, %cst_20 {dimension_numbers = #tpu.dot_dimension_numbers<[1], [0], [0], [1], [0, 0, 1, 1], [], []>} : vector<8x8xf32>, vector<8x8xf32>, vector<8x8xf32> -> vector<8x8xf32>
    %54 = vector.extract_strided_slice %13 {offsets = [0, 16], sizes = [8, 8], strides = [1, 1]} : vector<8x96xf32> to vector<8x8xf32>
    %55 = vector.extract_strided_slice %13 {offsets = [0, 48], sizes = [8, 8], strides = [1, 1]} : vector<8x96xf32> to vector<8x8xf32>
    %56 = vector.extract_strided_slice %13 {offsets = [0, 80], sizes = [8, 8], strides = [1, 1]} : vector<8x96xf32> to vector<8x8xf32>
    %57 = tpu.transpose %55, [1, 0] : vector<8x8xf32> -> vector<8x8xf32>
    %cst_21 = arith.constant dense<0.000000e+00> : vector<8x8xf32>
    %58 = tpu.matmul %54, %57, %cst_21 {dimension_numbers = #tpu.dot_dimension_numbers<[1], [0], [0], [1], [0, 0, 1, 1], [], []>} : vector<8x8xf32>, vector<8x8xf32>, vector<8x8xf32> -> vector<8x8xf32>
    %cst_22 = arith.constant 0.353553385 : f32
    %59 = vector.broadcast %cst_22 : f32 to vector<8x8xf32>
    %60 = arith.mulf %58, %59 : vector<8x8xf32>
    %61 = vector.broadcast %5 : vector<1x8xf32> to vector<8x8xf32>
    %62 = arith.addf %60, %61 : vector<8x8xf32>
    %cst_23 = arith.constant dense<0xFF800000> : vector<8xf32>
    %63 = vector.multi_reduction <maximumf>, %62, %cst_23 [1] : vector<8x8xf32> to vector<8xf32>
    %64 = vector.shape_cast %63 : vector<8xf32> to vector<8x1xf32>
    %65 = vector.broadcast %64 : vector<8x1xf32> to vector<8x8xf32>
    %66 = arith.subf %62, %65 : vector<8x8xf32>
    %67 = math.exp %66 : vector<8x8xf32>
    %cst_24 = arith.constant dense<0.000000e+00> : vector<8xf32>
    %68 = vector.multi_reduction <add>, %67, %cst_24 [1] : vector<8x8xf32> to vector<8xf32>
    %69 = vector.shape_cast %68 : vector<8xf32> to vector<8x1xf32>
    %70 = tpu.reciprocal %69 {approx = true} : vector<8x1xf32> -> vector<8x1xf32>
    %71 = vector.broadcast %70 : vector<8x1xf32> to vector<8x8xf32>
    %72 = arith.mulf %67, %71 : vector<8x8xf32>
    %cst_25 = arith.constant dense<0.000000e+00> : vector<8x8xf32>
    %73 = tpu.matmul %72, %56, %cst_25 {dimension_numbers = #tpu.dot_dimension_numbers<[1], [0], [0], [1], [0, 0, 1, 1], [], []>} : vector<8x8xf32>, vector<8x8xf32>, vector<8x8xf32> -> vector<8x8xf32>
    %74 = vector.extract_strided_slice %13 {offsets = [0, 24], sizes = [8, 8], strides = [1, 1]} : vector<8x96xf32> to vector<8x8xf32>
    %75 = vector.extract_strided_slice %13 {offsets = [0, 56], sizes = [8, 8], strides = [1, 1]} : vector<8x96xf32> to vector<8x8xf32>
    %76 = vector.extract_strided_slice %13 {offsets = [0, 88], sizes = [8, 8], strides = [1, 1]} : vector<8x96xf32> to vector<8x8xf32>
    %77 = tpu.transpose %75, [1, 0] : vector<8x8xf32> -> vector<8x8xf32>
    %cst_26 = arith.constant dense<0.000000e+00> : vector<8x8xf32>
    %78 = tpu.matmul %74, %77, %cst_26 {dimension_numbers = #tpu.dot_dimension_numbers<[1], [0], [0], [1], [0, 0, 1, 1], [], []>} : vector<8x8xf32>, vector<8x8xf32>, vector<8x8xf32> -> vector<8x8xf32>
    %cst_27 = arith.constant 0.353553385 : f32
    %79 = vector.broadcast %cst_27 : f32 to vector<8x8xf32>
    %80 = arith.mulf %78, %79 : vector<8x8xf32>
    %81 = vector.broadcast %5 : vector<1x8xf32> to vector<8x8xf32>
    %82 = arith.addf %80, %81 : vector<8x8xf32>
    %cst_28 = arith.constant dense<0xFF800000> : vector<8xf32>
    %83 = vector.multi_reduction <maximumf>, %82, %cst_28 [1] : vector<8x8xf32> to vector<8xf32>
    %84 = vector.shape_cast %83 : vector<8xf32> to vector<8x1xf32>
    %85 = vector.broadcast %84 : vector<8x1xf32> to vector<8x8xf32>
    %86 = arith.subf %82, %85 : vector<8x8xf32>
    %87 = math.exp %86 : vector<8x8xf32>
    %cst_29 = arith.constant dense<0.000000e+00> : vector<8xf32>
    %88 = vector.multi_reduction <add>, %87, %cst_29 [1] : vector<8x8xf32> to vector<8xf32>
    %89 = vector.shape_cast %88 : vector<8xf32> to vector<8x1xf32>
    %90 = tpu.reciprocal %89 {approx = true} : vector<8x1xf32> -> vector<8x1xf32>
    %91 = vector.broadcast %90 : vector<8x1xf32> to vector<8x8xf32>
    %92 = arith.mulf %87, %91 : vector<8x8xf32>
    %cst_30 = arith.constant dense<0.000000e+00> : vector<8x8xf32>
    %93 = tpu.matmul %92, %76, %cst_30 {dimension_numbers = #tpu.dot_dimension_numbers<[1], [0], [0], [1], [0, 0, 1, 1], [], []>} : vector<8x8xf32>, vector<8x8xf32>, vector<8x8xf32> -> vector<8x8xf32>
    %94 = tpu.concatenate %33, %53, %73, %93 in 1 : vector<8x8xf32>, vector<8x8xf32>, vector<8x8xf32>, vector<8x8xf32> -> vector<8x32xf32>
    %c0_31 = arith.constant 0 : index
    %c0_32 = arith.constant 0 : index
    %c0_33 = arith.constant 0 : index
    %95 = vector.load %arg8[%c0_31, %c0_32, %c0_33] : memref<1x32x32xbf16, #tpu.memory_space<vmem>>, vector<1x32x32xbf16>
    %96 = vector.shape_cast %95 : vector<1x32x32xbf16> to vector<32x32xbf16>
    %97 = arith.truncf %94 : vector<8x32xf32> to vector<8x32xbf16>
    %cst_34 = arith.constant dense<0.000000e+00> : vector<8x32xf32>
    %98 = tpu.matmul %97, %96, %cst_34 {dimension_numbers = #tpu.dot_dimension_numbers<[1], [0], [0], [1], [0, 0, 1, 1], [], []>} : vector<8x32xbf16>, vector<32x32xbf16>, vector<8x32xf32> -> vector<8x32xf32>
    %c0_35 = arith.constant 0 : index
    %c0_36 = arith.constant 0 : index
    %c0_37 = arith.constant 0 : index
    %99 = vector.load %arg9[%c0_35, %c0_36, %c0_37] : memref<1x1x32xf32, #tpu.memory_space<vmem>>, vector<1x1x32xf32>
    %100 = vector.shape_cast %99 : vector<1x1x32xf32> to vector<1x32xf32>
    %101 = vector.broadcast %100 : vector<1x32xf32> to vector<8x32xf32>
    %102 = arith.addf %98, %101 : vector<8x32xf32>
    %103 = arith.addf %3, %102 : vector<8x32xf32>
    %c0_38 = arith.constant 0 : index
    %c0_39 = arith.constant 0 : index
    %c0_40 = arith.constant 0 : index
    %104 = vector.load %arg10[%c0_38, %c0_39, %c0_40] : memref<1x1x32xf32, #tpu.memory_space<vmem>>, vector<1x1x32xf32>
    %105 = vector.shape_cast %104 : vector<1x1x32xf32> to vector<1x32xf32>
    %c0_41 = arith.constant 0 : index
    %c0_42 = arith.constant 0 : index
    %c0_43 = arith.constant 0 : index
    %106 = vector.load %arg11[%c0_41, %c0_42, %c0_43] : memref<1x1x32xf32, #tpu.memory_space<vmem>>, vector<1x1x32xf32>
    %107 = vector.shape_cast %106 : vector<1x1x32xf32> to vector<1x32xf32>
    %cst_44 = arith.constant dense<0.000000e+00> : vector<8xf32>
    %108 = vector.multi_reduction <add>, %103, %cst_44 [1] : vector<8x32xf32> to vector<8xf32>
    %109 = vector.shape_cast %108 : vector<8xf32> to vector<8x1xf32>
    %cst_45 = arith.constant 3.200000e+01 : f32
    %110 = vector.broadcast %cst_45 : f32 to vector<8x1xf32>
    %111 = arith.divf %109, %110 : vector<8x1xf32>
    %112 = vector.broadcast %111 : vector<8x1xf32> to vector<8x32xf32>
    %113 = arith.subf %103, %112 : vector<8x32xf32>
    %114 = arith.mulf %113, %113 : vector<8x32xf32>
    %cst_46 = arith.constant dense<0.000000e+00> : vector<8xf32>
    %115 = vector.multi_reduction <add>, %114, %cst_46 [1] : vector<8x32xf32> to vector<8xf32>
    %116 = vector.shape_cast %115 : vector<8xf32> to vector<8x1xf32>
    %cst_47 = arith.constant 3.200000e+01 : f32
    %117 = vector.broadcast %cst_47 : f32 to vector<8x1xf32>
    %118 = arith.divf %116, %117 : vector<8x1xf32>
    %cst_48 = arith.constant 9.99999996E-13 : f32
    %119 = vector.broadcast %cst_48 : f32 to vector<8x1xf32>
    %120 = arith.addf %118, %119 : vector<8x1xf32>
    %121 = math.rsqrt %120 : vector<8x1xf32>
    %122 = vector.broadcast %121 : vector<8x1xf32> to vector<8x32xf32>
    %123 = arith.mulf %113, %122 : vector<8x32xf32>
    %124 = vector.broadcast %105 : vector<1x32xf32> to vector<8x32xf32>
    %125 = arith.mulf %123, %124 : vector<8x32xf32>
    %126 = vector.broadcast %107 : vector<1x32xf32> to vector<8x32xf32>
    %127 = arith.addf %125, %126 : vector<8x32xf32>
    %c0_49 = arith.constant 0 : index
    %c0_50 = arith.constant 0 : index
    %c0_51 = arith.constant 0 : index
    %128 = vector.load %arg12[%c0_49, %c0_50, %c0_51] : memref<1x32x64xbf16, #tpu.memory_space<vmem>>, vector<1x32x64xbf16>
    %129 = vector.shape_cast %128 : vector<1x32x64xbf16> to vector<32x64xbf16>
    %130 = arith.truncf %127 : vector<8x32xf32> to vector<8x32xbf16>
    %cst_52 = arith.constant dense<0.000000e+00> : vector<8x64xf32>
    %131 = tpu.matmul %130, %129, %cst_52 {dimension_numbers = #tpu.dot_dimension_numbers<[1], [0], [0], [1], [0, 0, 1, 1], [], []>} : vector<8x32xbf16>, vector<32x64xbf16>, vector<8x64xf32> -> vector<8x64xf32>
    %c0_53 = arith.constant 0 : index
    %c0_54 = arith.constant 0 : index
    %c0_55 = arith.constant 0 : index
    %132 = vector.load %arg13[%c0_53, %c0_54, %c0_55] : memref<1x1x64xf32, #tpu.memory_space<vmem>>, vector<1x1x64xf32>
    %133 = vector.shape_cast %132 : vector<1x1x64xf32> to vector<1x64xf32>
    %134 = vector.broadcast %133 : vector<1x64xf32> to vector<8x64xf32>
    %135 = arith.addf %131, %134 : vector<8x64xf32>
    %cst_56 = arith.constant 5.000000e-01 : f32
    %136 = vector.broadcast %cst_56 : f32 to vector<8x64xf32>
    %137 = arith.mulf %136, %135 : vector<8x64xf32>
    %cst_57 = arith.constant 4.471500e-02 : f32
    %138 = vector.broadcast %cst_57 : f32 to vector<8x64xf32>
    %139 = arith.mulf %138, %135 : vector<8x64xf32>
    %140 = arith.mulf %139, %135 : vector<8x64xf32>
    %141 = arith.mulf %140, %135 : vector<8x64xf32>
    %142 = arith.addf %135, %141 : vector<8x64xf32>
    %cst_58 = arith.constant 0.797884583 : f32
    %143 = vector.broadcast %cst_58 : f32 to vector<8x64xf32>
    %144 = arith.mulf %143, %142 : vector<8x64xf32>
    %145 = math.tanh %144 : vector<8x64xf32>
    %cst_59 = arith.constant 1.000000e+00 : f32
    %146 = vector.broadcast %cst_59 : f32 to vector<8x64xf32>
    %147 = arith.addf %146, %145 : vector<8x64xf32>
    %148 = arith.mulf %137, %147 : vector<8x64xf32>
    %c0_60 = arith.constant 0 : index
    %c0_61 = arith.constant 0 : index
    %c0_62 = arith.constant 0 : index
    %149 = vector.load %arg14[%c0_60, %c0_61, %c0_62] : memref<1x64x32xbf16, #tpu.memory_space<vmem>>, vector<1x64x32xbf16>
    %150 = vector.shape_cast %149 : vector<1x64x32xbf16> to vector<64x32xbf16>
    %151 = arith.truncf %148 : vector<8x64xf32> to vector<8x64xbf16>
    %cst_63 = arith.constant dense<0.000000e+00> : vector<8x32xf32>
    %152 = tpu.matmul %151, %150, %cst_63 {dimension_numbers = #tpu.dot_dimension_numbers<[1], [0], [0], [1], [0, 0, 1, 1], [], []>} : vector<8x64xbf16>, vector<64x32xbf16>, vector<8x32xf32> -> vector<8x32xf32>
    %c0_64 = arith.constant 0 : index
    %c0_65 = arith.constant 0 : index
    %c0_66 = arith.constant 0 : index
    %153 = vector.load %arg15[%c0_64, %c0_65, %c0_66] : memref<1x1x32xf32, #tpu.memory_space<vmem>>, vector<1x1x32xf32>
    %154 = vector.shape_cast %153 : vector<1x1x32xf32> to vector<1x32xf32>
    %155 = vector.broadcast %154 : vector<1x32xf32> to vector<8x32xf32>
    %156 = arith.addf %152, %155 : vector<8x32xf32>
    %157 = arith.addf %127, %156 : vector<8x32xf32>
    %c0_67 = arith.constant 0 : index
    %c0_68 = arith.constant 0 : index
    %c0_69 = arith.constant 0 : index
    %158 = vector.load %arg16[%c0_67, %c0_68, %c0_69] : memref<1x1x32xf32, #tpu.memory_space<vmem>>, vector<1x1x32xf32>
    %159 = vector.shape_cast %158 : vector<1x1x32xf32> to vector<1x32xf32>
    %c0_70 = arith.constant 0 : index
    %c0_71 = arith.constant 0 : index
    %c0_72 = arith.constant 0 : index
    %160 = vector.load %arg17[%c0_70, %c0_71, %c0_72] : memref<1x1x32xf32, #tpu.memory_space<vmem>>, vector<1x1x32xf32>
    %161 = vector.shape_cast %160 : vector<1x1x32xf32> to vector<1x32xf32>
    %cst_73 = arith.constant dense<0.000000e+00> : vector<8xf32>
    %162 = vector.multi_reduction <add>, %157, %cst_73 [1] : vector<8x32xf32> to vector<8xf32>
    %163 = vector.shape_cast %162 : vector<8xf32> to vector<8x1xf32>
    %cst_74 = arith.constant 3.200000e+01 : f32
    %164 = vector.broadcast %cst_74 : f32 to vector<8x1xf32>
    %165 = arith.divf %163, %164 : vector<8x1xf32>
    %166 = vector.broadcast %165 : vector<8x1xf32> to vector<8x32xf32>
    %167 = arith.subf %157, %166 : vector<8x32xf32>
    %168 = arith.mulf %167, %167 : vector<8x32xf32>
    %cst_75 = arith.constant dense<0.000000e+00> : vector<8xf32>
    %169 = vector.multi_reduction <add>, %168, %cst_75 [1] : vector<8x32xf32> to vector<8xf32>
    %170 = vector.shape_cast %169 : vector<8xf32> to vector<8x1xf32>
    %cst_76 = arith.constant 3.200000e+01 : f32
    %171 = vector.broadcast %cst_76 : f32 to vector<8x1xf32>
    %172 = arith.divf %170, %171 : vector<8x1xf32>
    %cst_77 = arith.constant 9.99999996E-13 : f32
    %173 = vector.broadcast %cst_77 : f32 to vector<8x1xf32>
    %174 = arith.addf %172, %173 : vector<8x1xf32>
    %175 = math.rsqrt %174 : vector<8x1xf32>
    %176 = vector.broadcast %175 : vector<8x1xf32> to vector<8x32xf32>
    %177 = arith.mulf %167, %176 : vector<8x32xf32>
    %178 = vector.broadcast %159 : vector<1x32xf32> to vector<8x32xf32>
    %179 = arith.mulf %177, %178 : vector<8x32xf32>
    %180 = vector.broadcast %161 : vector<1x32xf32> to vector<8x32xf32>
    %181 = arith.addf %179, %180 : vector<8x32xf32>
    %c0_78 = arith.constant 0 : index
    %c0_79 = arith.constant 0 : index
    %182 = vector.load %arg18[%c0_78, %c0_79] : memref<8x32xf32, #tpu.memory_space<vmem>>, vector<8x32xf32>
    tpu.vector_store %arg18[%c0_78, %c0_79], %181 {strides = array<i32>} : memref<8x32xf32, #tpu.memory_space<vmem>>, vector<8x32xf32>,
    return
  }
  func.func @transform_0(%arg0: i32, %arg1: i32) -> (i32, i32) {
    %c0_i32 = arith.constant 0 : i32
    %c0_i32_0 = arith.constant 0 : i32
    return %arg0, %c0_i32 : i32, i32
  }
  func.func @transform_1(%arg0: i32, %arg1: i32) -> (i32, i32, i32) {
    %c0_i32 = arith.constant 0 : i32
    %c0_i32_0 = arith.constant 0 : i32
    %c0_i32_1 = arith.constant 0 : i32
    return %arg0, %c0_i32, %c0_i32_0 : i32, i32, i32
  }
  func.func @transform_2(%arg0: i32, %arg1: i32) -> (i32, i32) {
    %c0_i32 = arith.constant 0 : i32
    %c0_i32_0 = arith.constant 0 : i32
    %c0_i32_1 = arith.constant 0 : i32
    return %c0_i32, %c0_i32_0 : i32, i32
  }
  func.func @transform_3(%arg0: i32, %arg1: i32) -> (i32, i32) {
    %c0_i32 = arith.constant 0 : i32
    %c0_i32_0 = arith.constant 0 : i32
    %c0_i32_1 = arith.constant 0 : i32
    return %c0_i32, %c0_i32_0 : i32, i32
  }
  func.func @transform_4(%arg0: i32, %arg1: i32) -> (i32, i32, i32) {
    %c0_i32 = arith.constant 0 : i32
    %c0_i32_0 = arith.constant 0 : i32
    %c0_i32_1 = arith.constant 0 : i32
    return %arg1, %c0_i32, %c0_i32_0 : i32, i32, i32
  }
  func.func @transform_5(%arg0: i32, %arg1: i32) -> (i32, i32, i32) {
    %c0_i32 = arith.constant 0 : i32
    %c0_i32_0 = arith.constant 0 : i32
    %c0_i32_1 = arith.constant 0 : i32
    return %arg1, %c0_i32, %c0_i32_0 : i32, i32, i32
  }
  func.func @transform_6(%arg0: i32, %arg1: i32) -> (i32, i32, i32) {
    %c0_i32 = arith.constant 0 : i32
    %c0_i32_0 = arith.constant 0 : i32
    %c0_i32_1 = arith.constant 0 : i32
    return %arg1, %c0_i32, %c0_i32_0 : i32, i32, i32
  }
  func.func @transform_7(%arg0: i32, %arg1: i32) -> (i32, i32, i32) {
    %c0_i32 = arith.constant 0 : i32
    %c0_i32_0 = arith.constant 0 : i32
    %c0_i32_1 = arith.constant 0 : i32
    return %arg1, %c0_i32, %c0_i32_0 : i32, i32, i32
  }
  func.func @transform_8(%arg0: i32, %arg1: i32) -> (i32, i32, i32) {
    %c0_i32 = arith.constant 0 : i32
    %c0_i32_0 = arith.constant 0 : i32
    %c0_i32_1 = arith.constant 0 : i32
    return %arg1, %c0_i32, %c0_i32_0 : i32, i32, i32
  }
  func.func @transform_9(%arg0: i32, %arg1: i32) -> (i32, i32, i32) {
    %c0_i32 = arith.constant 0 : i32
    %c0_i32_0 = arith.constant 0 : i32
    %c0_i32_1 = arith.constant 0 : i32
    return %arg1, %c0_i32, %c0_i32_0 : i32, i32, i32
  }
  func.func @transform_10(%arg0: i32, %arg1: i32) -> (i32, i32, i32) {
    %c0_i32 = arith.constant 0 : i32
    %c0_i32_0 = arith.constant 0 : i32
    %c0_i32_1 = arith.constant 0 : i32
    return %arg1, %c0_i32, %c0_i32_0 : i32, i32, i32
  }
  func.func @transform_11(%arg0: i32, %arg1: i32) -> (i32, i32, i32) {
    %c0_i32 = arith.constant 0 : i32
    %c0_i32_0 = arith.constant 0 : i32
    %c0_i32_1 = arith.constant 0 : i32
    return %arg1, %c0_i32, %c0_i32_0 : i32, i32, i32
  }
  func.func @transform_12(%arg0: i32, %arg1: i32) -> (i32, i32, i32) {
    %c0_i32 = arith.constant 0 : i32
    %c0_i32_0 = arith.constant 0 : i32
    %c0_i32_1 = arith.constant 0 : i32
    return %arg1, %c0_i32, %c0_i32_0 : i32, i32, i32
  }
  func.func @transform_13(%arg0: i32, %arg1: i32) -> (i32, i32, i32) {
    %c0_i32 = arith.constant 0 : i32
    %c0_i32_0 = arith.constant 0 : i32
    %c0_i32_1 = arith.constant 0 : i32
    return %arg1, %c0_i32, %c0_i32_0 : i32, i32, i32
  }
  func.func @transform_14(%arg0: i32, %arg1: i32) -> (i32, i32, i32) {
    %c0_i32 = arith.constant 0 : i32
    %c0_i32_0 = arith.constant 0 : i32
    %c0_i32_1 = arith.constant 0 : i32
    return %arg1, %c0_i32, %c0_i32_0 : i32, i32, i32
  }
  func.func @transform_15(%arg0: i32, %arg1: i32) -> (i32, i32, i32) {
    %c0_i32 = arith.constant 0 : i32
    %c0_i32_0 = arith.constant 0 : i32
    %c0_i32_1 = arith.constant 0 : i32
    return %arg1, %c0_i32, %c0_i32_0 : i32, i32, i32
  }
  func.func @transform_16(%arg0: i32, %arg1: i32) -> (i32, i32) {
    %c0_i32 = arith.constant 0 : i32
    %c0_i32_0 = arith.constant 0 : i32
    return %arg0, %c0_i32 : i32, i32
  }
}

</mosaic_0001>

<llo_original>
// kernel: basic_bert_forward.3
$region0: #{basic_bert_forward.3}
  #allocation0 [shape = 'u32[]', space=smem, size = 0x4, offset = 0x4, fixed_abs, tag = 'smem constant byte address 0x4 - core index']
  #allocation1 [shape = 'u32[144,128]{1,0:T(1,128)}', space=vmem, size = 0x12000, scoped, tag = 'internal scratch']
  %s0 = inlined_call_operand.vmem [shape: f32[16,32], index: 0, kind: input, shape index: {}]
  %s1 = inlined_call_operand.vmem [shape: f32[2,1,32], index: 1, kind: input, shape index: {}]
  %s2 = inlined_call_operand.vmem [shape: bf16[32,32], index: 2, kind: input, shape index: {}]
  %s3 = inlined_call_operand.vmem [shape: bf16[32,32], index: 3, kind: input, shape index: {}]
  %s4 = inlined_call_operand.vmem [shape: f32[1,32], index: 4, kind: input, shape index: {}]
  %s5 = inlined_call_operand.vmem [shape: f32[1,32], index: 5, kind: input, shape index: {}]
  %s6 = inlined_call_operand.vmem [shape: bf16[32,32], index: 6, kind: input, shape index: {}]
  %s7 = inlined_call_operand.vmem [shape: f32[1,32], index: 7, kind: input, shape index: {}]
  %s8 = inlined_call_operand.vmem [shape: bf16[32,32], index: 8, kind: input, shape index: {}]
  %s9 = inlined_call_operand.vmem [shape: f32[1,32], index: 9, kind: input, shape index: {}]
  %s10 = inlined_call_operand.vmem [shape: f32[1,32], index: 10, kind: input, shape index: {}]
  %s11 = inlined_call_operand.vmem [shape: f32[1,32], index: 11, kind: input, shape index: {}]
  %s12 = inlined_call_operand.vmem [shape: bf16[32,32], index: 12, kind: input, shape index: {}]
  %s13 = inlined_call_operand.vmem [shape: f32[1,32], index: 13, kind: input, shape index: {}]
  %s14 = inlined_call_operand.hbm [shape: f32[16,32], index: 14, kind: output, shape index: {0}]
  %s15 = inlined_call_operand.hbm [shape: f32[2,1,32], index: 15, kind: output, shape index: {1}]
  %16 = xla_tuple %s14, %s15
  %s17 = sld [smem:[#allocation0]]
  $region97: #{basic_bert_forward.3} parent=0
    _
  %s19 = ssub.s32 1, %s17
  %s20 = scalar_select 0, %s19, %s17
  $region1: #{basic_bert_forward.3} parent=0
    #allocation2 [shape = 'u8[8192]{0}', space=vmem, size = 0x2000, scoped, tag = 'output window, operand 0']
    #allocation3 [shape = 's32[2]{0}', space=sflag, size = 0x8, scoped, tag = 'scoped memory for basic_bert_forward.3']
    #allocation4 [shape = 'u8[1024]{0}', space=vmem, size = 0x400, scoped, tag = 'output window, operand 1']
    #allocation5 [shape = 's32[2]{0}', space=sflag, size = 0x8, scoped, tag = 'scoped memory for basic_bert_forward.3']
    %21 = vsyncpa [#allocation3], 0
    %s22 = scalar_lea.sflag [#allocation3], 1
    %23 = vsyncpa %s22, 0
    %24 = vsyncpa [#allocation5], 0
    %s25 = scalar_lea.sflag [#allocation5], 1
    %26 = vsyncpa %s25, 0
    loop: start=0, step=1, limit=4
    $region2: #{basic_bert_forward.3} parent=1 // loop_pre_header
      _
    $region3: #{basic_bert_forward.3} parent=1 // loop_header
      %s28 = sphi 0, %s32
      %p29 = scmp.ge.s32.totalorder %s28, 4
      %s38 = sphi 0, %s40
      %s41 = sphi 0, %s38
      %s42 = sphi 0, %s41
      %s58 = sphi 0, %s42
      %s64 = sphi 0, %s66
      %s67 = sphi 0, %s64
      %s68 = sphi 0, %s67
      %s84 = sphi 0, %s68
      %s88 = sphi 0, %s88
      %s90 = sphi 0, %s88
      %s91 = sphi 0, %s90
      %s105 = sphi 0, %s91
      %s109 = sphi 0, %s109
      %s111 = sphi 0, %s109
      %s112 = sphi 0, %s111
      %s126 = sphi 0, %s112
      %s130 = sphi 0, %s130
      %s132 = sphi 0, %s130
      %s133 = sphi 0, %s132
      %s147 = sphi 0, %s133
      %s151 = sphi 0, %s151
      %s153 = sphi 0, %s151
      %s154 = sphi 0, %s153
      %s168 = sphi 0, %s154
      %s172 = sphi 0, %s172
      %s174 = sphi 0, %s172
      %s175 = sphi 0, %s174
      %s189 = sphi 0, %s175
      %s193 = sphi 0, %s193
      %s195 = sphi 0, %s193
      %s196 = sphi 0, %s195
      %s210 = sphi 0, %s196
      %s214 = sphi 0, %s214
      %s216 = sphi 0, %s214
      %s217 = sphi 0, %s216
      %s231 = sphi 0, %s217
      %s235 = sphi 0, %s235
      %s237 = sphi 0, %s235
      %s238 = sphi 0, %s237
      %s252 = sphi 0, %s238
      %s256 = sphi 0, %s256
      %s258 = sphi 0, %s256
      %s259 = sphi 0, %s258
      %s273 = sphi 0, %s259
      %s277 = sphi 0, %s277
      %s279 = sphi 0, %s277
      %s280 = sphi 0, %s279
      %s294 = sphi 0, %s280
      %s298 = sphi 0, %s298
      %s300 = sphi 0, %s298
      %s301 = sphi 0, %s300
      %s315 = sphi 0, %s301
      %s319 = sphi 0, %s319
      %s321 = sphi 0, %s319
      %s322 = sphi 0, %s321
      %s336 = sphi 0, %s322
      %s342 = sphi 0, %s344
      %s345 = sphi 0, %s342
      %s346 = sphi 0, %s345
      %s362 = sphi 0, %s346
      %s368 = sphi 0, %s370
      %s371 = sphi 0, %s368
      %s372 = sphi 0, %s371
      %s388 = sphi 0, %s372
    $region4: #{basic_bert_forward.3} parent=1 // loop_header_branch
      %31 = sbr.rel (%p29) target = $region8
    $region5: #{basic_bert_forward.3} parent=1 // loop_body
      %s33 = ssub.s32 %s28, 1
      %s34 = ssub.s32 %s28, 2
      %s35 = sadd.s32 %s28, 1
      %s36 = ssub.s32 %s28, %s35
      %p37 = scmp.eq.s32.totalorder %s36, 0
      %s39 = sadd.s32 %s38, 1
      %s40 = scalar_select %p37, %s38, %s39
      %p43 = pneg %p37
      %p44 = scmp.eq.s32.totalorder %s28, 1
      %p45 = por %p43, %p44
      %p46 = scmp.ne.s32.totalorder %s38, %s41
      %p47 = scmp.eq.s32.totalorder %s28, 0
      %p48 = por %p46, %p47
      %p49 = scmp.ne.s32.totalorder %s38, %s41
      %p50 = scmp.eq.s32.totalorder %s33, 1
      %p51 = por %p49, %p50
      %p52 = scmp.ne.s32.totalorder %s41, %s42
      %p53 = scmp.eq.s32.totalorder %s33, 0
      %p54 = por %p52, %p53
      %p55 = scmp.ne.s32.totalorder %s41, %s42
      %p56 = scmp.eq.s32.totalorder %s34, 1
      %p57 = por %p55, %p56
      %p59 = scmp.ne.s32.totalorder %s42, %s58
      %p60 = scmp.eq.s32.totalorder %s34, 0
      %p61 = por %p59, %p60
      %s62 = ssub.s32 %s28, %s35
      %p63 = scmp.eq.s32.totalorder %s62, 0
      %s65 = sadd.s32 %s64, 1
      %s66 = scalar_select %p63, %s64, %s65
      %p69 = pneg %p63
      %p70 = scmp.eq.s32.totalorder %s28, 1
      %p71 = por %p69, %p70
      %p72 = scmp.ne.s32.totalorder %s64, %s67
      %p73 = scmp.eq.s32.totalorder %s28, 0
      %p74 = por %p72, %p73
      %p75 = scmp.ne.s32.totalorder %s64, %s67
      %p76 = scmp.eq.s32.totalorder %s33, 1
      %p77 = por %p75, %p76
      %p78 = scmp.ne.s32.totalorder %s67, %s68
      %p79 = scmp.eq.s32.totalorder %s33, 0
      %p80 = por %p78, %p79
      %p81 = scmp.ne.s32.totalorder %s67, %s68
      %p82 = scmp.eq.s32.totalorder %s34, 1
      %p83 = por %p81, %p82
      %p85 = scmp.ne.s32.totalorder %s68, %s84
      %p86 = scmp.eq.s32.totalorder %s34, 0
      %p87 = por %p85, %p86
      %s89 = sadd.s32 %s88, 1
      %p92 = scmp.eq.s32.totalorder %s28, 1
      %p93 = scmp.ne.s32.totalorder %s88, %s90
      %p94 = scmp.eq.s32.totalorder %s28, 0
      %p95 = por %p93, %p94
      %p96 = scmp.ne.s32.totalorder %s88, %s90
      %p97 = scmp.eq.s32.totalorder %s33, 1
      %p98 = por %p96, %p97
      %p99 = scmp.ne.s32.totalorder %s90, %s91
      %p100 = scmp.eq.s32.totalorder %s33, 0
      %p101 = por %p99, %p100
      %p102 = scmp.ne.s32.totalorder %s90, %s91
      %p103 = scmp.eq.s32.totalorder %s34, 1
      %p104 = por %p102, %p103
      %p106 = scmp.ne.s32.totalorder %s91, %s105
      %p107 = scmp.eq.s32.totalorder %s34, 0
      %p108 = por %p106, %p107
      %s110 = sadd.s32 %s109, 1
      %p113 = scmp.eq.s32.totalorder %s28, 1
      %p114 = scmp.ne.s32.totalorder %s109, %s111
      %p115 = scmp.eq.s32.totalorder %s28, 0
      %p116 = por %p114, %p115
      %p117 = scmp.ne.s32.totalorder %s109, %s111
      %p118 = scmp.eq.s32.totalorder %s33, 1
      %p119 = por %p117, %p118
      %p120 = scmp.ne.s32.totalorder %s111, %s112
      %p121 = scmp.eq.s32.totalorder %s33, 0
      %p122 = por %p120, %p121
      %p123 = scmp.ne.s32.totalorder %s111, %s112
      %p124 = scmp.eq.s32.totalorder %s34, 1
      %p125 = por %p123, %p124
      %p127 = scmp.ne.s32.totalorder %s112, %s126
      %p128 = scmp.eq.s32.totalorder %s34, 0
      %p129 = por %p127, %p128
      %s131 = sadd.s32 %s130, 1
      %p134 = scmp.eq.s32.totalorder %s28, 1
      %p135 = scmp.ne.s32.totalorder %s130, %s132
      %p136 = scmp.eq.s32.totalorder %s28, 0
      %p137 = por %p135, %p136
      %p138 = scmp.ne.s32.totalorder %s130, %s132
      %p139 = scmp.eq.s32.totalorder %s33, 1
      %p140 = por %p138, %p139
      %p141 = scmp.ne.s32.totalorder %s132, %s133
      %p142 = scmp.eq.s32.totalorder %s33, 0
      %p143 = por %p141, %p142
      %p144 = scmp.ne.s32.totalorder %s132, %s133
      %p145 = scmp.eq.s32.totalorder %s34, 1
      %p146 = por %p144, %p145
      %p148 = scmp.ne.s32.totalorder %s133, %s147
      %p149 = scmp.eq.s32.totalorder %s34, 0
      %p150 = por %p148, %p149
      %s152 = sadd.s32 %s151, 1
      %p155 = scmp.eq.s32.totalorder %s28, 1
      %p156 = scmp.ne.s32.totalorder %s151, %s153
      %p157 = scmp.eq.s32.totalorder %s28, 0
      %p158 = por %p156, %p157
      %p159 = scmp.ne.s32.totalorder %s151, %s153
      %p160 = scmp.eq.s32.totalorder %s33, 1
      %p161 = por %p159, %p160
      %p162 = scmp.ne.s32.totalorder %s153, %s154
      %p163 = scmp.eq.s32.totalorder %s33, 0
      %p164 = por %p162, %p163
      %p165 = scmp.ne.s32.totalorder %s153, %s154
      %p166 = scmp.eq.s32.totalorder %s34, 1
      %p167 = por %p165, %p166
      %p169 = scmp.ne.s32.totalorder %s154, %s168
      %p170 = scmp.eq.s32.totalorder %s34, 0
      %p171 = por %p169, %p170
      %s173 = sadd.s32 %s172, 1
      %p176 = scmp.eq.s32.totalorder %s28, 1
      %p177 = scmp.ne.s32.totalorder %s172, %s174
      %p178 = scmp.eq.s32.totalorder %s28, 0
      %p179 = por %p177, %p178
      %p180 = scmp.ne.s32.totalorder %s172, %s174
      %p181 = scmp.eq.s32.totalorder %s33, 1
      %p182 = por %p180, %p181
      %p183 = scmp.ne.s32.totalorder %s174, %s175
      %p184 = scmp.eq.s32.totalorder %s33, 0
      %p185 = por %p183, %p184
      %p186 = scmp.ne.s32.totalorder %s174, %s175
      %p187 = scmp.eq.s32.totalorder %s34, 1
      %p188 = por %p186, %p187
      %p190 = scmp.ne.s32.totalorder %s175, %s189
      %p191 = scmp.eq.s32.totalorder %s34, 0
      %p192 = por %p190, %p191
      %s194 = sadd.s32 %s193, 1
      %p197 = scmp.eq.s32.totalorder %s28, 1
      %p198 = scmp.ne.s32.totalorder %s193, %s195
      %p199 = scmp.eq.s32.totalorder %s28, 0
      %p200 = por %p198, %p199
      %p201 = scmp.ne.s32.totalorder %s193, %s195
      %p202 = scmp.eq.s32.totalorder %s33, 1
      %p203 = por %p201, %p202
      %p204 = scmp.ne.s32.totalorder %s195, %s196
      %p205 = scmp.eq.s32.totalorder %s33, 0
      %p206 = por %p204, %p205
      %p207 = scmp.ne.s32.totalorder %s195, %s196
      %p208 = scmp.eq.s32.totalorder %s34, 1
      %p209 = por %p207, %p208
      %p211 = scmp.ne.s32.totalorder %s196, %s210
      %p212 = scmp.eq.s32.totalorder %s34, 0
      %p213 = por %p211, %p212
      %s215 = sadd.s32 %s214, 1
      %p218 = scmp.eq.s32.totalorder %s28, 1
      %p219 = scmp.ne.s32.totalorder %s214, %s216
      %p220 = scmp.eq.s32.totalorder %s28, 0
      %p221 = por %p219, %p220
      %p222 = scmp.ne.s32.totalorder %s214, %s216
      %p223 = scmp.eq.s32.totalorder %s33, 1
      %p224 = por %p222, %p223
      %p225 = scmp.ne.s32.totalorder %s216, %s217
      %p226 = scmp.eq.s32.totalorder %s33, 0
      %p227 = por %p225, %p226
      %p228 = scmp.ne.s32.totalorder %s216, %s217
      %p229 = scmp.eq.s32.totalorder %s34, 1
      %p230 = por %p228, %p229
      %p232 = scmp.ne.s32.totalorder %s217, %s231
      %p233 = scmp.eq.s32.totalorder %s34, 0
      %p234 = por %p232, %p233
      %s236 = sadd.s32 %s235, 1
      %p239 = scmp.eq.s32.totalorder %s28, 1
      %p240 = scmp.ne.s32.totalorder %s235, %s237
      %p241 = scmp.eq.s32.totalorder %s28, 0
      %p242 = por %p240, %p241
      %p243 = scmp.ne.s32.totalorder %s235, %s237
      %p244 = scmp.eq.s32.totalorder %s33, 1
      %p245 = por %p243, %p244
      %p246 = scmp.ne.s32.totalorder %s237, %s238
      %p247 = scmp.eq.s32.totalorder %s33, 0
      %p248 = por %p246, %p247
      %p249 = scmp.ne.s32.totalorder %s237, %s238
      %p250 = scmp.eq.s32.totalorder %s34, 1
      %p251 = por %p249, %p250
      %p253 = scmp.ne.s32.totalorder %s238, %s252
      %p254 = scmp.eq.s32.totalorder %s34, 0
      %p255 = por %p253, %p254
      %s257 = sadd.s32 %s256, 1
      %p260 = scmp.eq.s32.totalorder %s28, 1
      %p261 = scmp.ne.s32.totalorder %s256, %s258
      %p262 = scmp.eq.s32.totalorder %s28, 0
      %p263 = por %p261, %p262
      %p264 = scmp.ne.s32.totalorder %s256, %s258
      %p265 = scmp.eq.s32.totalorder %s33, 1
      %p266 = por %p264, %p265
      %p267 = scmp.ne.s32.totalorder %s258, %s259
      %p268 = scmp.eq.s32.totalorder %s33, 0
      %p269 = por %p267, %p268
      %p270 = scmp.ne.s32.totalorder %s258, %s259
      %p271 = scmp.eq.s32.totalorder %s34, 1
      %p272 = por %p270, %p271
      %p274 = scmp.ne.s32.totalorder %s259, %s273
      %p275 = scmp.eq.s32.totalorder %s34, 0
      %p276 = por %p274, %p275
      %s278 = sadd.s32 %s277, 1
      %p281 = scmp.eq.s32.totalorder %s28, 1
      %p282 = scmp.ne.s32.totalorder %s277, %s279
      %p283 = scmp.eq.s32.totalorder %s28, 0
      %p284 = por %p282, %p283
      %p285 = scmp.ne.s32.totalorder %s277, %s279
      %p286 = scmp.eq.s32.totalorder %s33, 1
      %p287 = por %p285, %p286
      %p288 = scmp.ne.s32.totalorder %s279, %s280
      %p289 = scmp.eq.s32.totalorder %s33, 0
      %p290 = por %p288, %p289
      %p291 = scmp.ne.s32.totalorder %s279, %s280
      %p292 = scmp.eq.s32.totalorder %s34, 1
      %p293 = por %p291, %p292
      %p295 = scmp.ne.s32.totalorder %s280, %s294
      %p296 = scmp.eq.s32.totalorder %s34, 0
      %p297 = por %p295, %p296
      %s299 = sadd.s32 %s298, 1
      %p302 = scmp.eq.s32.totalorder %s28, 1
      %p303 = scmp.ne.s32.totalorder %s298, %s300
      %p304 = scmp.eq.s32.totalorder %s28, 0
      %p305 = por %p303, %p304
      %p306 = scmp.ne.s32.totalorder %s298, %s300
      %p307 = scmp.eq.s32.totalorder %s33, 1
      %p308 = por %p306, %p307
      %p309 = scmp.ne.s32.totalorder %s300, %s301
      %p310 = scmp.eq.s32.totalorder %s33, 0
      %p311 = por %p309, %p310
      %p312 = scmp.ne.s32.totalorder %s300, %s301
      %p313 = scmp.eq.s32.totalorder %s34, 1
      %p314 = por %p312, %p313
      %p316 = scmp.ne.s32.totalorder %s301, %s315
      %p317 = scmp.eq.s32.totalorder %s34, 0
      %p318 = por %p316, %p317
      %s320 = sadd.s32 %s319, 1
      %p323 = scmp.eq.s32.totalorder %s28, 1
      %p324 = scmp.ne.s32.totalorder %s319, %s321
      %p325 = scmp.eq.s32.totalorder %s28, 0
      %p326 = por %p324, %p325
      %p327 = scmp.ne.s32.totalorder %s319, %s321
      %p328 = scmp.eq.s32.totalorder %s33, 1
      %p329 = por %p327, %p328
      %p330 = scmp.ne.s32.totalorder %s321, %s322
      %p331 = scmp.eq.s32.totalorder %s33, 0
      %p332 = por %p330, %p331
      %p333 = scmp.ne.s32.totalorder %s321, %s322
      %p334 = scmp.eq.s32.totalorder %s34, 1
      %p335 = por %p333, %p334
      %p337 = scmp.ne.s32.totalorder %s322, %s336
      %p338 = scmp.eq.s32.totalorder %s34, 0
      %p339 = por %p337, %p338
      %s340 = ssub.s32 %s28, %s35
      %p341 = scmp.eq.s32.totalorder %s340, 0
      %s343 = sadd.s32 %s342, 1
      %s344 = scalar_select %p341, %s342, %s343
      %p347 = pneg %p341
      %p348 = scmp.eq.s32.totalorder %s28, 1
      %p349 = por %p347, %p348
      %p350 = scmp.ne.s32.totalorder %s342, %s345
      %p351 = scmp.eq.s32.totalorder %s28, 0
      %p352 = por %p350, %p351
      %p353 = scmp.ne.s32.totalorder %s342, %s345
      %p354 = scmp.eq.s32.totalorder %s33, 1
      %p355 = por %p353, %p354
      %p356 = scmp.ne.s32.totalorder %s345, %s346
      %p357 = scmp.eq.s32.totalorder %s33, 0
      %p358 = por %p356, %p357
      %p359 = scmp.ne.s32.totalorder %s345, %s346
      %p360 = scmp.eq.s32.totalorder %s34, 1
      %p361 = por %p359, %p360
      %p363 = scmp.ne.s32.totalorder %s346, %s362
      %p364 = scmp.eq.s32.totalorder %s34, 0
      %p365 = por %p363, %p364
      %s366 = ssub.s32 %s28, %s35
      %p367 = scmp.eq.s32.totalorder %s366, 0
      %s369 = sadd.s32 %s368, 1
      %s370 = scalar_select %p367, %s368, %s369
      %p373 = pneg %p367
      %p374 = scmp.eq.s32.totalorder %s28, 1
      %p375 = por %p373, %p374
      %p376 = scmp.ne.s32.totalorder %s368, %s371
      %p377 = scmp.eq.s32.totalorder %s28, 0
      %p378 = por %p376, %p377
      %p379 = scmp.ne.s32.totalorder %s368, %s371
      %p380 = scmp.eq.s32.totalorder %s33, 1
      %p381 = por %p379, %p380
      %p382 = scmp.ne.s32.totalorder %s371, %s372
      %p383 = scmp.eq.s32.totalorder %s33, 0
      %p384 = por %p382, %p383
      %p385 = scmp.ne.s32.totalorder %s371, %s372
      %p386 = scmp.eq.s32.totalorder %s34, 1
      %p387 = por %p385, %p386
      %p389 = scmp.ne.s32.totalorder %s372, %s388
      %p390 = scmp.eq.s32.totalorder %s34, 0
      %p391 = por %p389, %p390
      %p392 = scmp.le.s32.totalorder 1, %s28
      %p393 = scmp.lt.s32.totalorder %s28, 3
      %p394 = pnand %p392, %p393
      %p395 = pneg %p394
      // Predicated region
      $region9: #{basic_bert_forward.3} parent=5 // pred_check
        _
      $region10: #{basic_bert_forward.3} parent=5 // pred_check_branch
        %397 = sbr.rel (%p394) target = $region12
      $region11: #{basic_bert_forward.3} parent=5 // pred_region
        %s398 = ssub.s32 %s28, 1
        // Predicated region
        $region13: #{basic_bert_forward.3} parent=11 // pred_check
          %p399 = pneg %p101
        $region14: #{basic_bert_forward.3} parent=11 // pred_check_branch
          %401 = sbr.rel (%p399) target = $region16
        $region15: #{basic_bert_forward.3} parent=11 // pred_region
          _
        $region16: #{basic_bert_forward.3} parent=11 // pred_fallthru
          _
        // Predicated region
        $region17: #{basic_bert_forward.3} parent=11 // pred_check
          %p402 = pneg %p122
        $region18: #{basic_bert_forward.3} parent=11 // pred_check_branch
          %404 = sbr.rel (%p402) target = $region20
        $region19: #{basic_bert_forward.3} parent=11 // pred_region
          _
        $region20: #{basic_bert_forward.3} parent=11 // pred_fallthru
          _
        // Predicated region
        $region21: #{basic_bert_forward.3} parent=11 // pred_check
          %p405 = pneg %p143
        $region22: #{basic_bert_forward.3} parent=11 // pred_check_branch
          %407 = sbr.rel (%p405) target = $region24
        $region23: #{basic_bert_forward.3} parent=11 // pred_region
          _
        $region24: #{basic_bert_forward.3} parent=11 // pred_fallthru
          _
        // Predicated region
        $region25: #{basic_bert_forward.3} parent=11 // pred_check
          %p408 = pneg %p164
        $region26: #{basic_bert_forward.3} parent=11 // pred_check_branch
          %410 = sbr.rel (%p408) target = $region28
        $region27: #{basic_bert_forward.3} parent=11 // pred_region
          _
        $region28: #{basic_bert_forward.3} parent=11 // pred_fallthru
          _
        // Predicated region
        $region29: #{basic_bert_forward.3} parent=11 // pred_check
          %p411 = pneg %p185
        $region30: #{basic_bert_forward.3} parent=11 // pred_check_branch
          %413 = sbr.rel (%p411) target = $region32
        $region31: #{basic_bert_forward.3} parent=11 // pred_region
          _
        $region32: #{basic_bert_forward.3} parent=11 // pred_fallthru
          _
        // Predicated region
        $region33: #{basic_bert_forward.3} parent=11 // pred_check
          %p414 = pneg %p206
        $region34: #{basic_bert_forward.3} parent=11 // pred_check_branch
          %416 = sbr.rel (%p414) target = $region36
        $region35: #{basic_bert_forward.3} parent=11 // pred_region
          _
        $region36: #{basic_bert_forward.3} parent=11 // pred_fallthru
          _
        // Predicated region
        $region37: #{basic_bert_forward.3} parent=11 // pred_check
          %p417 = pneg %p227
        $region38: #{basic_bert_forward.3} parent=11 // pred_check_branch
          %419 = sbr.rel (%p417) target = $region40
        $region39: #{basic_bert_forward.3} parent=11 // pred_region
          _
        $region40: #{basic_bert_forward.3} parent=11 // pred_fallthru
          _
        // Predicated region
        $region41: #{basic_bert_forward.3} parent=11 // pred_check
          %p420 = pneg %p248
        $region42: #{basic_bert_forward.3} parent=11 // pred_check_branch
          %422 = sbr.rel (%p420) target = $region44
        $region43: #{basic_bert_forward.3} parent=11 // pred_region
          _
        $region44: #{basic_bert_forward.3} parent=11 // pred_fallthru
          _
        // Predicated region
        $region45: #{basic_bert_forward.3} parent=11 // pred_check
          %p423 = pneg %p269
        $region46: #{basic_bert_forward.3} parent=11 // pred_check_branch
          %425 = sbr.rel (%p423) target = $region48
        $region47: #{basic_bert_forward.3} parent=11 // pred_region
          _
        $region48: #{basic_bert_forward.3} parent=11 // pred_fallthru
          _
        // Predicated region
        $region49: #{basic_bert_forward.3} parent=11 // pred_check
          %p426 = pneg %p290
        $region50: #{basic_bert_forward.3} parent=11 // pred_check_branch
          %428 = sbr.rel (%p426) target = $region52
        $region51: #{basic_bert_forward.3} parent=11 // pred_region
          _
        $region52: #{basic_bert_forward.3} parent=11 // pred_fallthru
          _
        // Predicated region
        $region53: #{basic_bert_forward.3} parent=11 // pred_check
          %p429 = pneg %p311
        $region54: #{basic_bert_forward.3} parent=11 // pred_check_branch
          %431 = sbr.rel (%p429) target = $region56
        $region55: #{basic_bert_forward.3} parent=11 // pred_region
          _
        $region56: #{basic_bert_forward.3} parent=11 // pred_fallthru
          _
        // Predicated region
        $region57: #{basic_bert_forward.3} parent=11 // pred_check
          %p432 = pneg %p332
        $region58: #{basic_bert_forward.3} parent=11 // pred_check_branch
          %434 = sbr.rel (%p432) target = $region60
        $region59: #{basic_bert_forward.3} parent=11 // pred_region
          _
        $region60: #{basic_bert_forward.3} parent=11 // pred_fallthru
          _
      $region12: #{basic_bert_forward.3} parent=5 // pred_fallthru
        _
      %p435 = scmp.lt.s32.totalorder %s28, 2
      // Predicated region
      $region61: #{basic_bert_forward.3} parent=5 // pred_check
        %p436 = pneg %p435
      $region62: #{basic_bert_forward.3} parent=5 // pred_check_branch
        %438 = sbr.rel (%p436) target = $region64
      $region63: #{basic_bert_forward.3} parent=5 // pred_region
        // Predicated region
        $region65: #{basic_bert_forward.3} parent=63 // pred_check
          %p439 = pneg %p48
        $region66: #{basic_bert_forward.3} parent=63 // pred_check_branch
          %441 = sbr.rel (%p439) target = $region68
        $region67: #{basic_bert_forward.3} parent=63 // pred_region
          %p442 = scmp.lt.s32.totalorder %s28, 1
          %s443 = scalar_select %p442, %s28, 1
          %s444 = smul.addr %s443, 8
          %s445 = scalar_lea.vmem %s0, %s444
        $region68: #{basic_bert_forward.3} parent=63 // pred_fallthru
          _
        // Predicated region
        $region69: #{basic_bert_forward.3} parent=63 // pred_check
          %p446 = pneg %p74
        $region70: #{basic_bert_forward.3} parent=63 // pred_check_branch
          %448 = sbr.rel (%p446) target = $region72
        $region71: #{basic_bert_forward.3} parent=63 // pred_region
          %p449 = scmp.lt.s32.totalorder %s28, 1
          %s450 = scalar_select %p449, %s28, 1
          %s451 = scalar_lea.vmem %s1, %s450
        $region72: #{basic_bert_forward.3} parent=63 // pred_fallthru
          _
      $region64: #{basic_bert_forward.3} parent=5 // pred_fallthru
        _
      %p452 = scmp.le.s32.totalorder 1, %s28
      %p453 = scmp.lt.s32.totalorder %s28, 3
      %p454 = pnand %p452, %p453
      %p455 = pneg %p454
      // Predicated region
      $region73: #{basic_bert_forward.3} parent=5 // pred_check
        _
      $region74: #{basic_bert_forward.3} parent=5 // pred_check_branch
        %457 = sbr.rel (%p454) target = $region76
      $region75: #{basic_bert_forward.3} parent=5 // pred_region
        %s458 = ssub.s32 %s28, 1
        %p459 = scmp.lt.s32.totalorder %s33, 1
        %s460 = scalar_select %p459, %s33, 1
        %s461 = smul.addr %s460, 8
        %s462 = scalar_lea.vmem %s0, %s461
        %p463 = pneg %p54
        %p464 = pneg %p51
        %p465 = scmp.lt.s32.totalorder %s33, 1
        %s466 = scalar_select %p465, %s33, 1
        %s467 = scalar_lea.vmem %s1, %s466
        %p468 = pneg %p80
        %p469 = pneg %p77
        %p470 = pneg %p101
        %p471 = pneg %p98
        %p472 = pneg %p122
        %p473 = pneg %p119
        %p474 = pneg %p143
        %p475 = pneg %p140
        %p476 = pneg %p164
        %p477 = pneg %p161
        %p478 = pneg %p185
        %p479 = pneg %p182
        %p480 = pneg %p206
        %p481 = pneg %p203
        %p482 = pneg %p227
        %p483 = pneg %p224
        %p484 = pneg %p248
        %p485 = pneg %p245
        %p486 = pneg %p269
        %p487 = pneg %p266
        %p488 = pneg %p290
        %p489 = pneg %p287
        %p490 = pneg %p311
        %p491 = pneg %p308
        %p492 = pneg %p332
        %p493 = pneg %p329
        %p494 = pneg %p358
        %p495 = pneg %p355
        %s496 = sand.u32 %s345, 1
        %s497 = scalar_lea.sflag [#allocation3], %s496
        %s498 = sand.u32 %s345, 1
        %s499 = smul.addr %s498, 8
        %s500 = scalar_lea.vmem [#allocation2], %s499
        %p501 = pneg %p384
        %p502 = pneg %p381
        %s503 = sand.u32 %s371, 1
        %s504 = scalar_lea.sflag [#allocation5], %s503
        %s505 = sand.u32 %s371, 1
        %s506 = scalar_lea.vmem [#allocation4], %s505
        %p507 = scmp.lt.s32.totalorder %s33, 1
        %s508 = scalar_select %p507, %s33, 1
        %s509 = smul.addr %s508, 8
        %s510 = scalar_lea.vmem %s0, %s509
        %p511 = scmp.lt.s32.totalorder %s33, 1
        %s512 = scalar_select %p511, %s33, 1
        %s513 = scalar_lea.vmem %s1, %s512
        %v515 = vld [vmem:[%s510] sm:$0xff]
        %v516 = vld [vmem:[%s513] sm:$0x1]
        %v517 = vld [vmem:[%s6] sm:$0xf]
        %v518 = vld [vmem:[%s6 + $0x4] sm:$0xf]
        %v519 = vld [vmem:[%s6 + $0x8] sm:$0xf]
        %v520 = vld [vmem:[%s6 + $0xc] sm:$0xf]
        %v521 = vpack.c.bf16 %v515, %v515
        %v522 = vld [vmem:[%s7] sm:$0x1]
        %v527 = vunpack.c.l.b16 %v517
        %v528 = vunpack.c.l.b16 %v518
        %v529 = vunpack.c.l.b16 %v519
        %v530 = vunpack.c.l.b16 %v520
        %v531 = vpack.c.b16 %v528, %v527
        %v532 = vpack.c.b16 %v530, %v529
        %vm535 = vcmask 261120
        %v537 = vsel %vm535, %v521, 0
        %539 = vmatprep.subr.bf16.mxu0 0
        %540 = vmatpush1.bf16.msra.mxu0 %v531
        %541 = vmatprep.subr.bf16.mxu0 0
        %542 = vmatpush1.bf16.msra.mxu0 %v532
        %543 = vmatprep.subr.bf16.mxu0 0
        %544 = vmatpush1.bf16.msra.mxu0 0
        %545 = vmatprep.subr.bf16.mxu0 0
        %546 = vmatpush1.bf16.msra.mxu0 0
        %547 = vmatprep.subr.bf16.mxu0 0
        %548 = vmatpush1.bf16.msra.mxu0 0
        %549 = vmatprep.subr.bf16.mxu0 0
        %550 = vmatpush1.bf16.msra.mxu0 0
        %551 = vmatprep.subr.bf16.mxu0 0
        %552 = vmatpush1.bf16.msra.mxu0 0
        %553 = vmatprep.subr.bf16.mxu0 0
        %554 = vmatpush1.bf16.msra.mxu0 0
        %555 = vmatprep.subr.bf16.mxu0 0
        %556 = vmatpush1.bf16.msra.mxu0 0
        %557 = vmatprep.subr.bf16.mxu0 0
        %558 = vmatpush1.bf16.msra.mxu0 0
        %559 = vmatprep.subr.bf16.mxu0 0
        %560 = vmatpush1.bf16.msra.mxu0 0
        %561 = vmatprep.subr.bf16.mxu0 0
        %562 = vmatpush1.bf16.msra.mxu0 0
        %563 = vmatprep.subr.bf16.mxu0 0
        %564 = vmatpush1.bf16.msra.mxu0 0
        %565 = vmatprep.subr.bf16.mxu0 0
        %566 = vmatpush1.bf16.msra.mxu0 0
        %567 = vmatprep.subr.bf16.mxu0 0
        %568 = vmatpush1.bf16.msra.mxu0 0
        %569 = vmatprep.subr.bf16.mxu0 0
        %570 = vmatpush1.bf16.msra.mxu0 0
        %571 = vmatprep.mubr.bf16.mxu0 0
        %572 = vmatmul.mubr.bf16.gmra.mrb[0].mxu0 %v537
        %v573 = vpop.f32.mrb[0].mxu0
        %v574 = vadd.f32 %v522, %v573
        %v575 = vpop.f32.mrb[0].mxu0
        %v576 = vpop.f32.mrb[0].mxu0
        %v577 = vpop.f32.mrb[0].mxu0
        %578 = vdwg.mxu0
        %v579 = vtanh.pop %v574
        %vm580 = vcmask 253952
        %581 = vst.msk [vmem:[%s506] sm:$0x1] %vm580, %v579
        %v582 = vld [vmem:[%s4] sm:$0x1]
        %v583 = vld [vmem:[%s2] sm:$0xf]
        %v584 = vld [vmem:[%s2 + $0x4] sm:$0xf]
        %v585 = vld [vmem:[%s2 + $0x8] sm:$0xf]
        %v586 = vld [vmem:[%s2 + $0xc] sm:$0xf]
        %v587 = vpack.c.bf16 %v516, %v516
        %v592 = vunpack.c.l.b16 %v583
        %v593 = vunpack.c.l.b16 %v584
        %v594 = vunpack.c.l.b16 %v585
        %v595 = vunpack.c.l.b16 %v586
        %v596 = vpack.c.b16 %v593, %v592
        %v597 = vpack.c.b16 %v595, %v594
        %v601 = vsel %vm535, %v587, 0
        %603 = vmatprep.subr.bf16.mxu0 0
        %604 = vmatpush1.bf16.msra.mxu0 %v596
        %605 = vmatprep.subr.bf16.mxu0 0
        %606 = vmatpush1.bf16.msra.mxu0 %v597
        %607 = vmatprep.subr.bf16.mxu0 0
        %608 = vmatpush1.bf16.msra.mxu0 0
        %609 = vmatprep.subr.bf16.mxu0 0
        %610 = vmatpush1.bf16.msra.mxu0 0
        %611 = vmatprep.subr.bf16.mxu0 0
        %612 = vmatpush1.bf16.msra.mxu0 0
        %613 = vmatprep.subr.bf16.mxu0 0
        %614 = vmatpush1.bf16.msra.mxu0 0
        %615 = vmatprep.subr.bf16.mxu0 0
        %616 = vmatpush1.bf16.msra.mxu0 0
        %617 = vmatprep.subr.bf16.mxu0 0
        %618 = vmatpush1.bf16.msra.mxu0 0
        %619 = vmatprep.subr.bf16.mxu0 0
        %620 = vmatpush1.bf16.msra.mxu0 0
        %621 = vmatprep.subr.bf16.mxu0 0
        %622 = vmatpush1.bf16.msra.mxu0 0
        %623 = vmatprep.subr.bf16.mxu0 0
        %624 = vmatpush1.bf16.msra.mxu0 0
        %625 = vmatprep.subr.bf16.mxu0 0
        %626 = vmatpush1.bf16.msra.mxu0 0
        %627 = vmatprep.subr.bf16.mxu0 0
        %628 = vmatpush1.bf16.msra.mxu0 0
        %629 = vmatprep.subr.bf16.mxu0 0
        %630 = vmatpush1.bf16.msra.mxu0 0
        %631 = vmatprep.subr.bf16.mxu0 0
        %632 = vmatpush1.bf16.msra.mxu0 0
        %633 = vmatprep.subr.bf16.mxu0 0
        %634 = vmatpush1.bf16.msra.mxu0 0
        %635 = vmatprep.mubr.bf16.mxu0 0
        %636 = vmatmul.mubr.bf16.gmra.mrb[0].mxu0 %v601
        %v637 = vpop.f32.mrb[0].mxu0
        %v638 = vadd.f32 0.0, %v637
        %v639 = vpop.f32.mrb[0].mxu0
        %v640 = vpop.f32.mrb[0].mxu0
        %v641 = vpop.f32.mrb[0].mxu0
        %642 = vdwg.mxu0
        %v643 = vadd.f32 %v582, %v638
        %v644 = vld [vmem:[%s5] sm:$0x1]
        %v645 = vld [vmem:[%s3] sm:$0xf]
        %v646 = vld [vmem:[%s3 + $0x4] sm:$0xf]
        %v647 = vld [vmem:[%s3 + $0x8] sm:$0xf]
        %v648 = vld [vmem:[%s3 + $0xc] sm:$0xf]
        %v653 = vunpack.c.l.b16 %v645
        %v654 = vunpack.c.l.b16 %v646
        %v655 = vunpack.c.l.b16 %v647
        %v656 = vunpack.c.l.b16 %v648
        %v657 = vpack.c.b16 %v654, %v653
        %v658 = vpack.c.b16 %v656, %v655
        %661 = vmatprep.subr.bf16.mxu0 0
        %662 = vmatpush1.bf16.msra.mxu0 %v657
        %663 = vmatprep.subr.bf16.mxu0 0
        %664 = vmatpush1.bf16.msra.mxu0 %v658
        %665 = vmatprep.subr.bf16.mxu0 0
        %666 = vmatpush1.bf16.msra.mxu0 0
        %667 = vmatprep.subr.bf16.mxu0 0
        %668 = vmatpush1.bf16.msra.mxu0 0
        %669 = vmatprep.subr.bf16.mxu0 0
        %670 = vmatpush1.bf16.msra.mxu0 0
        %671 = vmatprep.subr.bf16.mxu0 0
        %672 = vmatpush1.bf16.msra.mxu0 0
        %673 = vmatprep.subr.bf16.mxu0 0
        %674 = vmatpush1.bf16.msra.mxu0 0
        %675 = vmatprep.subr.bf16.mxu0 0
        %676 = vmatpush1.bf16.msra.mxu0 0
        %677 = vmatprep.subr.bf16.mxu0 0
        %678 = vmatpush1.bf16.msra.mxu0 0
        %679 = vmatprep.subr.bf16.mxu0 0
        %680 = vmatpush1.bf16.msra.mxu0 0
        %681 = vmatprep.subr.bf16.mxu0 0
        %682 = vmatpush1.bf16.msra.mxu0 0
        %683 = vmatprep.subr.bf16.mxu0 0
        %684 = vmatpush1.bf16.msra.mxu0 0
        %685 = vmatprep.subr.bf16.mxu0 0
        %686 = vmatpush1.bf16.msra.mxu0 0
        %687 = vmatprep.subr.bf16.mxu0 0
        %688 = vmatpush1.bf16.msra.mxu0 0
        %689 = vmatprep.subr.bf16.mxu0 0
        %690 = vmatpush1.bf16.msra.mxu0 0
        %691 = vmatprep.subr.bf16.mxu0 0
        %692 = vmatpush1.bf16.msra.mxu0 0
        %693 = vmatprep.mubr.bf16.mxu0 0
        %694 = vmatmul.mubr.bf16.gmra.mrb[0].mxu0 %v601
        %v695 = vpop.f32.mrb[0].mxu0
        %v696 = vadd.f32 0.0, %v695
        %v697 = vpop.f32.mrb[0].mxu0
        %v698 = vpop.f32.mrb[0].mxu0
        %v699 = vpop.f32.mrb[0].mxu0
        %700 = vdwg.mxu0
        %v701 = vadd.f32 %v644, %v696
        %v702 = vsel %vm535, %v515, 0.0
        %703 = vadd.xlane.f32.xlu0 %v702
        %v704 = vpop.xlane.xlu0 %703
        %v705 = vrcp.pop 32.0
        %v706 = vmul.f32 %v704, %v705
        %v707 = vsub.f32 %v515, %v706
        %v708 = vmul.f32 %v707, %v707
        %v709 = vsel %vm535, %v708, 0.0
        %710 = vadd.xlane.f32.xlu0 %v709
        %v711 = vpop.xlane.xlu0 %710
        %v712 = vmul.f32 %v711, %v705
        %v713 = vadd.f32 %v712, 1e-12
        %v714 = vrsqrt.pop %v713
        %v715 = vmul.f32 %v707, %v714
        %v717 = vlaneseq
        %v718 = vshrl.u32 %v717, 7
        %v719 = vsub.s32 0, %v718
        %v720 = vrot.slane %v643, %v719
        %v722 = vmul.f32 %v715, %v720
        %v724 = vlaneseq
        %v725 = vshrl.u32 %v724, 7
        %v726 = vsub.s32 0, %v725
        %v727 = vrot.slane %v701, %v726
        %v729 = vadd.f32 %v722, %v727
        %v730 = vld [vmem:[%s8] sm:$0xf]
        %v731 = vld [vmem:[%s8 + $0x4] sm:$0xf]
        %v732 = vld [vmem:[%s8 + $0x8] sm:$0xf]
        %v733 = vld [vmem:[%s8 + $0xc] sm:$0xf]
        %v734 = vpack.c.bf16 %v729, %v729
        %v735 = vld [vmem:[%s9] sm:$0x1]
        %v737 = vlaneseq
        %v738 = vshrl.u32 %v737, 7
        %v739 = vsub.s32 0, %v738
        %v740 = vrot.slane %v735, %v739
        %v746 = vunpack.c.l.b16 %v730
        %v747 = vunpack.c.l.b16 %v731
        %v748 = vunpack.c.l.b16 %v732
        %v749 = vunpack.c.l.b16 %v733
        %v750 = vpack.c.b16 %v747, %v746
        %v751 = vpack.c.b16 %v749, %v748
        %v755 = vsel %vm535, %v734, 0
        %757 = vmatprep.subr.bf16.mxu0 0
        %758 = vmatpush1.bf16.msra.mxu0 %v750
        %759 = vmatprep.subr.bf16.mxu0 0
        %760 = vmatpush1.bf16.msra.mxu0 %v751
        %761 = vmatprep.subr.bf16.mxu0 0
        %762 = vmatpush1.bf16.msra.mxu0 0
        %763 = vmatprep.subr.bf16.mxu0 0
        %764 = vmatpush1.bf16.msra.mxu0 0
        %765 = vmatprep.subr.bf16.mxu0 0
        %766 = vmatpush1.bf16.msra.mxu0 0
        %767 = vmatprep.subr.bf16.mxu0 0
        %768 = vmatpush1.bf16.msra.mxu0 0
        %769 = vmatprep.subr.bf16.mxu0 0
        %770 = vmatpush1.bf16.msra.mxu0 0
        %771 = vmatprep.subr.bf16.mxu0 0
        %772 = vmatpush1.bf16.msra.mxu0 0
        %773 = vmatprep.subr.bf16.mxu0 0
        %774 = vmatpush1.bf16.msra.mxu0 0
        %775 = vmatprep.subr.bf16.mxu0 0
        %776 = vmatpush1.bf16.msra.mxu0 0
        %777 = vmatprep.subr.bf16.mxu0 0
        %778 = vmatpush1.bf16.msra.mxu0 0
        %779 = vmatprep.subr.bf16.mxu0 0
        %780 = vmatpush1.bf16.msra.mxu0 0
        %781 = vmatprep.subr.bf16.mxu0 0
        %782 = vmatpush1.bf16.msra.mxu0 0
        %783 = vmatprep.subr.bf16.mxu0 0
        %784 = vmatpush1.bf16.msra.mxu0 0
        %785 = vmatprep.subr.bf16.mxu0 0
        %786 = vmatpush1.bf16.msra.mxu0 0
        %787 = vmatprep.subr.bf16.mxu0 0
        %788 = vmatpush1.bf16.msra.mxu0 0
        %789 = vmatprep.mubr.bf16.mxu0 0
        %790 = vmatmul.mubr.bf16.gmra.mrb[0].mxu0 %v755
        %v791 = vpop.f32.mrb[0].mxu0
        %v792 = vadd.f32 %v740, %v791
        %v793 = vpop.f32.mrb[0].mxu0
        %v794 = vpop.f32.mrb[0].mxu0
        %v795 = vpop.f32.mrb[0].mxu0
        %796 = vdwg.mxu0
        %v797 = vmul.f32 %v792, 0.5
        %v798 = vmul.f32 %v792, 0.044715
        %v799 = vmul.f32 %v798, %v792
        %v800 = vmul.f32 %v799, %v792
        %v801 = vadd.f32 %v792, %v800
        %v802 = vmul.f32 %v801, 0.7978846
        %v803 = vtanh.pop %v802
        %v804 = vadd.f32 %v803, 1.0
        %v805 = vmul.f32 %v797, %v804
        %v806 = vld [vmem:[%s10] sm:$0x1]
        %v807 = vld [vmem:[%s11] sm:$0x1]
        %v808 = vsel %vm535, %v805, 0.0
        %809 = vadd.xlane.f32.xlu0 %v808
        %v810 = vpop.xlane.xlu0 %809
        %v811 = vmul.f32 %v810, %v705
        %v812 = vsub.f32 %v805, %v811
        %v813 = vmul.f32 %v812, %v812
        %v814 = vsel %vm535, %v813, 0.0
        %815 = vadd.xlane.f32.xlu0 %v814
        %v816 = vpop.xlane.xlu0 %815
        %v817 = vmul.f32 %v816, %v705
        %v818 = vadd.f32 %v817, 1e-12
        %v819 = vrsqrt.pop %v818
        %v820 = vmul.f32 %v812, %v819
        %v822 = vlaneseq
        %v823 = vshrl.u32 %v822, 7
        %v824 = vsub.s32 0, %v823
        %v825 = vrot.slane %v806, %v824
        %v827 = vmul.f32 %v820, %v825
        %v829 = vlaneseq
        %v830 = vshrl.u32 %v829, 7
        %v831 = vsub.s32 0, %v830
        %v832 = vrot.slane %v807, %v831
        %v834 = vadd.f32 %v827, %v832
        %v835 = vld [vmem:[%s12] sm:$0xf]
        %v836 = vld [vmem:[%s12 + $0x4] sm:$0xf]
        %v837 = vld [vmem:[%s12 + $0x8] sm:$0xf]
        %v838 = vld [vmem:[%s12 + $0xc] sm:$0xf]
        %v839 = vpack.c.bf16 %v834, %v834
        %v840 = vld [vmem:[%s13] sm:$0x1]
        %v842 = vlaneseq
        %v843 = vshrl.u32 %v842, 7
        %v844 = vsub.s32 0, %v843
        %v845 = vrot.slane %v840, %v844
        %v851 = vunpack.c.l.b16 %v835
        %v852 = vunpack.c.l.b16 %v836
        %v853 = vunpack.c.l.b16 %v837
        %v854 = vunpack.c.l.b16 %v838
        %v855 = vpack.c.b16 %v852, %v851
        %v856 = vpack.c.b16 %v854, %v853
        %v860 = vsel %vm535, %v839, 0
        %862 = vmatprep.subr.bf16.mxu0 0
        %863 = vmatpush1.bf16.msra.mxu0 %v855
        %864 = vmatprep.subr.bf16.mxu0 0
        %865 = vmatpush1.bf16.msra.mxu0 %v856
        %866 = vmatprep.subr.bf16.mxu0 0
        %867 = vmatpush1.bf16.msra.mxu0 0
        %868 = vmatprep.subr.bf16.mxu0 0
        %869 = vmatpush1.bf16.msra.mxu0 0
        %870 = vmatprep.subr.bf16.mxu0 0
        %871 = vmatpush1.bf16.msra.mxu0 0
        %872 = vmatprep.subr.bf16.mxu0 0
        %873 = vmatpush1.bf16.msra.mxu0 0
        %874 = vmatprep.subr.bf16.mxu0 0
        %875 = vmatpush1.bf16.msra.mxu0 0
        %876 = vmatprep.subr.bf16.mxu0 0
        %877 = vmatpush1.bf16.msra.mxu0 0
        %878 = vmatprep.subr.bf16.mxu0 0
        %879 = vmatpush1.bf16.msra.mxu0 0
        %880 = vmatprep.subr.bf16.mxu0 0
        %881 = vmatpush1.bf16.msra.mxu0 0
        %882 = vmatprep.subr.bf16.mxu0 0
        %883 = vmatpush1.bf16.msra.mxu0 0
        %884 = vmatprep.subr.bf16.mxu0 0
        %885 = vmatpush1.bf16.msra.mxu0 0
        %886 = vmatprep.subr.bf16.mxu0 0
        %887 = vmatpush1.bf16.msra.mxu0 0
        %888 = vmatprep.subr.bf16.mxu0 0
        %889 = vmatpush1.bf16.msra.mxu0 0
        %890 = vmatprep.subr.bf16.mxu0 0
        %891 = vmatpush1.bf16.msra.mxu0 0
        %892 = vmatprep.subr.bf16.mxu0 0
        %893 = vmatpush1.bf16.msra.mxu0 0
        %894 = vmatprep.mubr.bf16.mxu0 0
        %895 = vmatmul.mubr.bf16.gmra.mrb[0].mxu0 %v860
        %v896 = vpop.f32.mrb[0].mxu0
        %v897 = vadd.f32 %v845, %v896
        %v898 = vpop.f32.mrb[0].mxu0
        %v899 = vpop.f32.mrb[0].mxu0
        %v900 = vpop.f32.mrb[0].mxu0
        %901 = vdwg.mxu0
        %902 = vst.msk [vmem:[%s500] sm:$0xff] %vm535, %v897
        %s903 = sand.u32 %s345, 1
        %s904 = scalar_lea.sflag [#allocation3], %s903
        %s905 = sand.u32 %s345, 1
        %s906 = smul.addr %s905, 8
        %s907 = scalar_lea.vmem [#allocation2], %s906
        %s908 = sand.u32 %s371, 1
        %s909 = scalar_lea.sflag [#allocation5], %s908
        %s910 = sand.u32 %s371, 1
        %s911 = scalar_lea.vmem [#allocation4], %s910
        // Predicated region
        $region77: #{basic_bert_forward.3} parent=75 // pred_check
          %p912 = pneg %p355
        $region78: #{basic_bert_forward.3} parent=75 // pred_check_branch
          %914 = sbr.rel (%p912) target = $region80
        $region79: #{basic_bert_forward.3} parent=75 // pred_region
          %s916 = ssub.s32 128, 128
          %917 = vsyncadd %s904, %s916
          %s918 = smul.addr %s33, 128
          %s919 = scalar_lea.hbm %s14, %s918
          %s921 = sshll.u32 %s907, 4
          %s922 = int_to_ptr.vmem [resolvable:$true] %s921
          %924 = dma.vmem_to_hbm [thread:$0]  %s922, 128, %s919, %s904
        $region80: #{basic_bert_forward.3} parent=75 // pred_fallthru
          _
        // Predicated region
        $region81: #{basic_bert_forward.3} parent=75 // pred_check
          %p925 = pneg %p381
        $region82: #{basic_bert_forward.3} parent=75 // pred_check_branch
          %927 = sbr.rel (%p925) target = $region84
        $region83: #{basic_bert_forward.3} parent=75 // pred_region
          %s929 = ssub.s32 16, 16
          %930 = vsyncadd %s909, %s929
          %s931 = smul.addr %s33, 16
          %s932 = scalar_lea.hbm %s15, %s931
          %s934 = sshll.u32 %s911, 4
          %s935 = int_to_ptr.vmem [resolvable:$true] %s934
          %937 = dma.vmem_to_hbm [thread:$0]  %s935, 16, %s932, %s909
        $region84: #{basic_bert_forward.3} parent=75 // pred_fallthru
          _
      $region76: #{basic_bert_forward.3} parent=5 // pred_fallthru
        _
      %p938 = scmp.le.s32.totalorder 2, %s28
      // Predicated region
      $region85: #{basic_bert_forward.3} parent=5 // pred_check
        %p939 = pneg %p938
      $region86: #{basic_bert_forward.3} parent=5 // pred_check_branch
        %941 = sbr.rel (%p939) target = $region88
      $region87: #{basic_bert_forward.3} parent=5 // pred_region
        %s942 = ssub.s32 %s28, 2
        // Predicated region
        $region89: #{basic_bert_forward.3} parent=87 // pred_check
          %p943 = pneg %p361
        $region90: #{basic_bert_forward.3} parent=87 // pred_check_branch
          %945 = sbr.rel (%p943) target = $region92
        $region91: #{basic_bert_forward.3} parent=87 // pred_region
          %s946 = sand.u32 %s346, 1
          %s947 = scalar_lea.sflag [#allocation3], %s946
          %s948 = sand.u32 %s346, 1
          %s949 = smul.addr %s948, 8
          %s950 = scalar_lea.vmem [#allocation2], %s949
          %951 = dma.done %s947, 128
        $region92: #{basic_bert_forward.3} parent=87 // pred_fallthru
          _
        // Predicated region
        $region93: #{basic_bert_forward.3} parent=87 // pred_check
          %p952 = pneg %p387
        $region94: #{basic_bert_forward.3} parent=87 // pred_check_branch
          %954 = sbr.rel (%p952) target = $region96
        $region95: #{basic_bert_forward.3} parent=87 // pred_region
          %s955 = sand.u32 %s372, 1
          %s956 = scalar_lea.sflag [#allocation5], %s955
          %s957 = sand.u32 %s372, 1
          %s958 = scalar_lea.vmem [#allocation4], %s957
          %959 = dma.done %s956, 16
        $region96: #{basic_bert_forward.3} parent=87 // pred_fallthru
          _
      $region88: #{basic_bert_forward.3} parent=5 // pred_fallthru
        _
    $region6: #{basic_bert_forward.3} parent=1 // loop_footer
      %s32 = sadd.s32 1, %s28
    $region7: #{basic_bert_forward.3} parent=1 // loop_footer_branch
      %27 = sbr.rel target = $region3
    $region8: #{basic_bert_forward.3} parent=1 // loop_exit
      _
    %960 = vsyncpa [#allocation3], 1
    %s961 = scalar_lea.sflag [#allocation3], 1
    %962 = vsyncpa %s961, 1
    %963 = vsyncpa [#allocation5], 1
    %s964 = scalar_lea.sflag [#allocation5], 1
    %965 = vsyncpa %s964, 1

// kernel: basic_bert_forward.2
$region0: #{basic_bert_forward.2}
  #allocation0 [shape = 'u32[]', space=smem, size = 0x4, offset = 0x4, fixed_abs, tag = 'smem constant byte address 0x4 - core index']
  #allocation1 [shape = 'u32[144,128]{1,0:T(1,128)}', space=vmem, size = 0x12000, scoped, tag = 'internal scratch']
  %s0 = inlined_call_operand.vmem [shape: f32[16,32], index: 0, kind: input, shape index: {}]
  %s1 = inlined_call_operand.vmem [shape: f32[2,1,8], index: 1, kind: input, shape index: {}]
  %s2 = inlined_call_operand.vmem [shape: f32[1,32], index: 2, kind: input, shape index: {}]
  %s3 = inlined_call_operand.vmem [shape: f32[1,32], index: 3, kind: input, shape index: {}]
  %s4 = inlined_call_operand.vmem [shape: bf16[2,32,96], index: 4, kind: input, shape index: {}]
  %s5 = inlined_call_operand.vmem [shape: f32[2,1,96], index: 5, kind: input, shape index: {}]
  %s6 = inlined_call_operand.vmem [shape: bf16[2,32,32], index: 6, kind: input, shape index: {}]
  %s7 = inlined_call_operand.vmem [shape: f32[2,1,32], index: 7, kind: input, shape index: {}]
  %s8 = inlined_call_operand.vmem [shape: f32[2,1,32], index: 8, kind: input, shape index: {}]
  %s9 = inlined_call_operand.vmem [shape: f32[2,1,32], index: 9, kind: input, shape index: {}]
  %s10 = inlined_call_operand.vmem [shape: bf16[2,32,64], index: 10, kind: input, shape index: {}]
  %s11 = inlined_call_operand.vmem [shape: f32[2,1,64], index: 11, kind: input, shape index: {}]
  %s12 = inlined_call_operand.vmem [shape: bf16[2,64,32], index: 12, kind: input, shape index: {}]
  %s13 = inlined_call_operand.vmem [shape: f32[2,1,32], index: 13, kind: input, shape index: {}]
  %s14 = inlined_call_operand.vmem [shape: f32[2,1,32], index: 14, kind: input, shape index: {}]
  %s15 = inlined_call_operand.vmem [shape: f32[2,1,32], index: 15, kind: input, shape index: {}]
  %s16 = inlined_call_operand.vmem [shape: f32[16,32], index: 16, kind: output, shape index: {}]
  %s17 = sld [smem:[#allocation0]]
  $region101: #{basic_bert_forward.2} parent=0
    _
  %s19 = ssub.s32 1, %s17
  %s20 = scalar_select 0, %s19, %s17
  loop: start=0, step=1, limit=6
  $region2: #{basic_bert_forward.2} parent=0 // loop_pre_header
    _
  $region3: #{basic_bert_forward.2} parent=0 // loop_header
    %s22 = sphi 0, %s26
    %p23 = scmp.ge.s32.totalorder %s22, 6
    %s29 = sphi 0, %s41
    %s30 = sphi 0, %s37
    %s31 = sphi 0, %s29
    %s32 = sphi 0, %s30
    %s33 = sphi 0, %s31
    %s34 = sphi 0, %s32
    %s44 = sphi 0, %s46
    %s47 = sphi 0, %s44
    %s48 = sphi 0, %s47
    %s64 = sphi 0, %s48
    %s70 = sphi 0, %s72
    %s73 = sphi 0, %s70
    %s74 = sphi 0, %s73
    %s90 = sphi 0, %s74
    %s94 = sphi 0, %s94
    %s96 = sphi 0, %s94
    %s97 = sphi 0, %s96
    %s111 = sphi 0, %s97
    %s115 = sphi 0, %s115
    %s117 = sphi 0, %s115
    %s118 = sphi 0, %s117
    %s132 = sphi 0, %s118
    %s138 = sphi 0, %s140
    %s141 = sphi 0, %s138
    %s142 = sphi 0, %s141
    %s158 = sphi 0, %s142
    %s164 = sphi 0, %s166
    %s167 = sphi 0, %s164
    %s168 = sphi 0, %s167
    %s184 = sphi 0, %s168
    %s190 = sphi 0, %s192
    %s193 = sphi 0, %s190
    %s194 = sphi 0, %s193
    %s210 = sphi 0, %s194
    %s216 = sphi 0, %s218
    %s219 = sphi 0, %s216
    %s220 = sphi 0, %s219
    %s236 = sphi 0, %s220
    %s242 = sphi 0, %s244
    %s245 = sphi 0, %s242
    %s246 = sphi 0, %s245
    %s262 = sphi 0, %s246
    %s268 = sphi 0, %s270
    %s271 = sphi 0, %s268
    %s272 = sphi 0, %s271
    %s288 = sphi 0, %s272
    %s294 = sphi 0, %s296
    %s297 = sphi 0, %s294
    %s298 = sphi 0, %s297
    %s314 = sphi 0, %s298
    %s320 = sphi 0, %s322
    %s323 = sphi 0, %s320
    %s324 = sphi 0, %s323
    %s340 = sphi 0, %s324
    %s346 = sphi 0, %s348
    %s349 = sphi 0, %s346
    %s350 = sphi 0, %s349
    %s366 = sphi 0, %s350
    %s372 = sphi 0, %s374
    %s375 = sphi 0, %s372
    %s376 = sphi 0, %s375
    %s392 = sphi 0, %s376
    %s398 = sphi 0, %s400
    %s401 = sphi 0, %s398
    %s402 = sphi 0, %s401
    %s418 = sphi 0, %s402
    %s424 = sphi 0, %s426
    %s427 = sphi 0, %s424
    %s428 = sphi 0, %s427
    %s444 = sphi 0, %s428
    %s450 = sphi 0, %s452
    %s453 = sphi 0, %s450
    %s454 = sphi 0, %s453
    %s470 = sphi 0, %s454
  $region4: #{basic_bert_forward.2} parent=0 // loop_header_branch
    %25 = sbr.rel (%p23) target = $region8
  $region5: #{basic_bert_forward.2} parent=0 // loop_body
    %s27 = ssub.s32 %s22, 1
    %s28 = ssub.s32 %s22, 2
    %s35 = sadd.s32 1, %s30
    %p36 = scmp.ge.s32.totalorder %s35, 2
    %s37 = scalar_select %p36, 0, %s35
    %s38 = sadd.s32 1, %s29
    %s39 = scalar_select %p36, %s38, %s29
    %p40 = scmp.ge.s32.totalorder %s39, 2
    %s41 = scalar_select %p40, 0, %s39
    %s42 = ssub.s32 %s29, %s41
    %p43 = scmp.eq.s32.totalorder %s42, 0
    %s45 = sadd.s32 %s44, 1
    %s46 = scalar_select %p43, %s44, %s45
    %p49 = pneg %p43
    %p50 = scmp.eq.s32.totalorder %s22, 3
    %p51 = por %p49, %p50
    %p52 = scmp.ne.s32.totalorder %s44, %s47
    %p53 = scmp.eq.s32.totalorder %s22, 0
    %p54 = por %p52, %p53
    %p55 = scmp.ne.s32.totalorder %s44, %s47
    %p56 = scmp.eq.s32.totalorder %s27, 3
    %p57 = por %p55, %p56
    %p58 = scmp.ne.s32.totalorder %s47, %s48
    %p59 = scmp.eq.s32.totalorder %s27, 0
    %p60 = por %p58, %p59
    %p61 = scmp.ne.s32.totalorder %s47, %s48
    %p62 = scmp.eq.s32.totalorder %s28, 3
    %p63 = por %p61, %p62
    %p65 = scmp.ne.s32.totalorder %s48, %s64
    %p66 = scmp.eq.s32.totalorder %s28, 0
    %p67 = por %p65, %p66
    %s68 = ssub.s32 %s29, %s41
    %p69 = scmp.eq.s32.totalorder %s68, 0
    %s71 = sadd.s32 %s70, 1
    %s72 = scalar_select %p69, %s70, %s71
    %p75 = pneg %p69
    %p76 = scmp.eq.s32.totalorder %s22, 3
    %p77 = por %p75, %p76
    %p78 = scmp.ne.s32.totalorder %s70, %s73
    %p79 = scmp.eq.s32.totalorder %s22, 0
    %p80 = por %p78, %p79
    %p81 = scmp.ne.s32.totalorder %s70, %s73
    %p82 = scmp.eq.s32.totalorder %s27, 3
    %p83 = por %p81, %p82
    %p84 = scmp.ne.s32.totalorder %s73, %s74
    %p85 = scmp.eq.s32.totalorder %s27, 0
    %p86 = por %p84, %p85
    %p87 = scmp.ne.s32.totalorder %s73, %s74
    %p88 = scmp.eq.s32.totalorder %s28, 3
    %p89 = por %p87, %p88
    %p91 = scmp.ne.s32.totalorder %s74, %s90
    %p92 = scmp.eq.s32.totalorder %s28, 0
    %p93 = por %p91, %p92
    %s95 = sadd.s32 %s94, 1
    %p98 = scmp.eq.s32.totalorder %s22, 3
    %p99 = scmp.ne.s32.totalorder %s94, %s96
    %p100 = scmp.eq.s32.totalorder %s22, 0
    %p101 = por %p99, %p100
    %p102 = scmp.ne.s32.totalorder %s94, %s96
    %p103 = scmp.eq.s32.totalorder %s27, 3
    %p104 = por %p102, %p103
    %p105 = scmp.ne.s32.totalorder %s96, %s97
    %p106 = scmp.eq.s32.totalorder %s27, 0
    %p107 = por %p105, %p106
    %p108 = scmp.ne.s32.totalorder %s96, %s97
    %p109 = scmp.eq.s32.totalorder %s28, 3
    %p110 = por %p108, %p109
    %p112 = scmp.ne.s32.totalorder %s97, %s111
    %p113 = scmp.eq.s32.totalorder %s28, 0
    %p114 = por %p112, %p113
    %s116 = sadd.s32 %s115, 1
    %p119 = scmp.eq.s32.totalorder %s22, 3
    %p120 = scmp.ne.s32.totalorder %s115, %s117
    %p121 = scmp.eq.s32.totalorder %s22, 0
    %p122 = por %p120, %p121
    %p123 = scmp.ne.s32.totalorder %s115, %s117
    %p124 = scmp.eq.s32.totalorder %s27, 3
    %p125 = por %p123, %p124
    %p126 = scmp.ne.s32.totalorder %s117, %s118
    %p127 = scmp.eq.s32.totalorder %s27, 0
    %p128 = por %p126, %p127
    %p129 = scmp.ne.s32.totalorder %s117, %s118
    %p130 = scmp.eq.s32.totalorder %s28, 3
    %p131 = por %p129, %p130
    %p133 = scmp.ne.s32.totalorder %s118, %s132
    %p134 = scmp.eq.s32.totalorder %s28, 0
    %p135 = por %p133, %p134
    %s136 = ssub.s32 %s30, %s37
    %p137 = scmp.eq.s32.totalorder %s136, 0
    %s139 = sadd.s32 %s138, 1
    %s140 = scalar_select %p137, %s138, %s139
    %p143 = pneg %p137
    %p144 = scmp.eq.s32.totalorder %s22, 3
    %p145 = por %p143, %p144
    %p146 = scmp.ne.s32.totalorder %s138, %s141
    %p147 = scmp.eq.s32.totalorder %s22, 0
    %p148 = por %p146, %p147
    %p149 = scmp.ne.s32.totalorder %s138, %s141
    %p150 = scmp.eq.s32.totalorder %s27, 3
    %p151 = por %p149, %p150
    %p152 = scmp.ne.s32.totalorder %s141, %s142
    %p153 = scmp.eq.s32.totalorder %s27, 0
    %p154 = por %p152, %p153
    %p155 = scmp.ne.s32.totalorder %s141, %s142
    %p156 = scmp.eq.s32.totalorder %s28, 3
    %p157 = por %p155, %p156
    %p159 = scmp.ne.s32.totalorder %s142, %s158
    %p160 = scmp.eq.s32.totalorder %s28, 0
    %p161 = por %p159, %p160
    %s162 = ssub.s32 %s30, %s37
    %p163 = scmp.eq.s32.totalorder %s162, 0
    %s165 = sadd.s32 %s164, 1
    %s166 = scalar_select %p163, %s164, %s165
    %p169 = pneg %p163
    %p170 = scmp.eq.s32.totalorder %s22, 3
    %p171 = por %p169, %p170
    %p172 = scmp.ne.s32.totalorder %s164, %s167
    %p173 = scmp.eq.s32.totalorder %s22, 0
    %p174 = por %p172, %p173
    %p175 = scmp.ne.s32.totalorder %s164, %s167
    %p176 = scmp.eq.s32.totalorder %s27, 3
    %p177 = por %p175, %p176
    %p178 = scmp.ne.s32.totalorder %s167, %s168
    %p179 = scmp.eq.s32.totalorder %s27, 0
    %p180 = por %p178, %p179
    %p181 = scmp.ne.s32.totalorder %s167, %s168
    %p182 = scmp.eq.s32.totalorder %s28, 3
    %p183 = por %p181, %p182
    %p185 = scmp.ne.s32.totalorder %s168, %s184
    %p186 = scmp.eq.s32.totalorder %s28, 0
    %p187 = por %p185, %p186
    %s188 = ssub.s32 %s30, %s37
    %p189 = scmp.eq.s32.totalorder %s188, 0
    %s191 = sadd.s32 %s190, 1
    %s192 = scalar_select %p189, %s190, %s191
    %p195 = pneg %p189
    %p196 = scmp.eq.s32.totalorder %s22, 3
    %p197 = por %p195, %p196
    %p198 = scmp.ne.s32.totalorder %s190, %s193
    %p199 = scmp.eq.s32.totalorder %s22, 0
    %p200 = por %p198, %p199
    %p201 = scmp.ne.s32.totalorder %s190, %s193
    %p202 = scmp.eq.s32.totalorder %s27, 3
    %p203 = por %p201, %p202
    %p204 = scmp.ne.s32.totalorder %s193, %s194
    %p205 = scmp.eq.s32.totalorder %s27, 0
    %p206 = por %p204, %p205
    %p207 = scmp.ne.s32.totalorder %s193, %s194
    %p208 = scmp.eq.s32.totalorder %s28, 3
    %p209 = por %p207, %p208
    %p211 = scmp.ne.s32.totalorder %s194, %s210
    %p212 = scmp.eq.s32.totalorder %s28, 0
    %p213 = por %p211, %p212
    %s214 = ssub.s32 %s30, %s37
    %p215 = scmp.eq.s32.totalorder %s214, 0
    %s217 = sadd.s32 %s216, 1
    %s218 = scalar_select %p215, %s216, %s217
    %p221 = pneg %p215
    %p222 = scmp.eq.s32.totalorder %s22, 3
    %p223 = por %p221, %p222
    %p224 = scmp.ne.s32.totalorder %s216, %s219
    %p225 = scmp.eq.s32.totalorder %s22, 0
    %p226 = por %p224, %p225
    %p227 = scmp.ne.s32.totalorder %s216, %s219
    %p228 = scmp.eq.s32.totalorder %s27, 3
    %p229 = por %p227, %p228
    %p230 = scmp.ne.s32.totalorder %s219, %s220
    %p231 = scmp.eq.s32.totalorder %s27, 0
    %p232 = por %p230, %p231
    %p233 = scmp.ne.s32.totalorder %s219, %s220
    %p234 = scmp.eq.s32.totalorder %s28, 3
    %p235 = por %p233, %p234
    %p237 = scmp.ne.s32.totalorder %s220, %s236
    %p238 = scmp.eq.s32.totalorder %s28, 0
    %p239 = por %p237, %p238
    %s240 = ssub.s32 %s30, %s37
    %p241 = scmp.eq.s32.totalorder %s240, 0
    %s243 = sadd.s32 %s242, 1
    %s244 = scalar_select %p241, %s242, %s243
    %p247 = pneg %p241
    %p248 = scmp.eq.s32.totalorder %s22, 3
    %p249 = por %p247, %p248
    %p250 = scmp.ne.s32.totalorder %s242, %s245
    %p251 = scmp.eq.s32.totalorder %s22, 0
    %p252 = por %p250, %p251
    %p253 = scmp.ne.s32.totalorder %s242, %s245
    %p254 = scmp.eq.s32.totalorder %s27, 3
    %p255 = por %p253, %p254
    %p256 = scmp.ne.s32.totalorder %s245, %s246
    %p257 = scmp.eq.s32.totalorder %s27, 0
    %p258 = por %p256, %p257
    %p259 = scmp.ne.s32.totalorder %s245, %s246
    %p260 = scmp.eq.s32.totalorder %s28, 3
    %p261 = por %p259, %p260
    %p263 = scmp.ne.s32.totalorder %s246, %s262
    %p264 = scmp.eq.s32.totalorder %s28, 0
    %p265 = por %p263, %p264
    %s266 = ssub.s32 %s30, %s37
    %p267 = scmp.eq.s32.totalorder %s266, 0
    %s269 = sadd.s32 %s268, 1
    %s270 = scalar_select %p267, %s268, %s269
    %p273 = pneg %p267
    %p274 = scmp.eq.s32.totalorder %s22, 3
    %p275 = por %p273, %p274
    %p276 = scmp.ne.s32.totalorder %s268, %s271
    %p277 = scmp.eq.s32.totalorder %s22, 0
    %p278 = por %p276, %p277
    %p279 = scmp.ne.s32.totalorder %s268, %s271
    %p280 = scmp.eq.s32.totalorder %s27, 3
    %p281 = por %p279, %p280
    %p282 = scmp.ne.s32.totalorder %s271, %s272
    %p283 = scmp.eq.s32.totalorder %s27, 0
    %p284 = por %p282, %p283
    %p285 = scmp.ne.s32.totalorder %s271, %s272
    %p286 = scmp.eq.s32.totalorder %s28, 3
    %p287 = por %p285, %p286
    %p289 = scmp.ne.s32.totalorder %s272, %s288
    %p290 = scmp.eq.s32.totalorder %s28, 0
    %p291 = por %p289, %p290
    %s292 = ssub.s32 %s30, %s37
    %p293 = scmp.eq.s32.totalorder %s292, 0
    %s295 = sadd.s32 %s294, 1
    %s296 = scalar_select %p293, %s294, %s295
    %p299 = pneg %p293
    %p300 = scmp.eq.s32.totalorder %s22, 3
    %p301 = por %p299, %p300
    %p302 = scmp.ne.s32.totalorder %s294, %s297
    %p303 = scmp.eq.s32.totalorder %s22, 0
    %p304 = por %p302, %p303
    %p305 = scmp.ne.s32.totalorder %s294, %s297
    %p306 = scmp.eq.s32.totalorder %s27, 3
    %p307 = por %p305, %p306
    %p308 = scmp.ne.s32.totalorder %s297, %s298
    %p309 = scmp.eq.s32.totalorder %s27, 0
    %p310 = por %p308, %p309
    %p311 = scmp.ne.s32.totalorder %s297, %s298
    %p312 = scmp.eq.s32.totalorder %s28, 3
    %p313 = por %p311, %p312
    %p315 = scmp.ne.s32.totalorder %s298, %s314
    %p316 = scmp.eq.s32.totalorder %s28, 0
    %p317 = por %p315, %p316
    %s318 = ssub.s32 %s30, %s37
    %p319 = scmp.eq.s32.totalorder %s318, 0
    %s321 = sadd.s32 %s320, 1
    %s322 = scalar_select %p319, %s320, %s321
    %p325 = pneg %p319
    %p326 = scmp.eq.s32.totalorder %s22, 3
    %p327 = por %p325, %p326
    %p328 = scmp.ne.s32.totalorder %s320, %s323
    %p329 = scmp.eq.s32.totalorder %s22, 0
    %p330 = por %p328, %p329
    %p331 = scmp.ne.s32.totalorder %s320, %s323
    %p332 = scmp.eq.s32.totalorder %s27, 3
    %p333 = por %p331, %p332
    %p334 = scmp.ne.s32.totalorder %s323, %s324
    %p335 = scmp.eq.s32.totalorder %s27, 0
    %p336 = por %p334, %p335
    %p337 = scmp.ne.s32.totalorder %s323, %s324
    %p338 = scmp.eq.s32.totalorder %s28, 3
    %p339 = por %p337, %p338
    %p341 = scmp.ne.s32.totalorder %s324, %s340
    %p342 = scmp.eq.s32.totalorder %s28, 0
    %p343 = por %p341, %p342
    %s344 = ssub.s32 %s30, %s37
    %p345 = scmp.eq.s32.totalorder %s344, 0
    %s347 = sadd.s32 %s346, 1
    %s348 = scalar_select %p345, %s346, %s347
    %p351 = pneg %p345
    %p352 = scmp.eq.s32.totalorder %s22, 3
    %p353 = por %p351, %p352
    %p354 = scmp.ne.s32.totalorder %s346, %s349
    %p355 = scmp.eq.s32.totalorder %s22, 0
    %p356 = por %p354, %p355
    %p357 = scmp.ne.s32.totalorder %s346, %s349
    %p358 = scmp.eq.s32.totalorder %s27, 3
    %p359 = por %p357, %p358
    %p360 = scmp.ne.s32.totalorder %s349, %s350
    %p361 = scmp.eq.s32.totalorder %s27, 0
    %p362 = por %p360, %p361
    %p363 = scmp.ne.s32.totalorder %s349, %s350
    %p364 = scmp.eq.s32.totalorder %s28, 3
    %p365 = por %p363, %p364
    %p367 = scmp.ne.s32.totalorder %s350, %s366
    %p368 = scmp.eq.s32.totalorder %s28, 0
    %p369 = por %p367, %p368
    %s370 = ssub.s32 %s30, %s37
    %p371 = scmp.eq.s32.totalorder %s370, 0
    %s373 = sadd.s32 %s372, 1
    %s374 = scalar_select %p371, %s372, %s373
    %p377 = pneg %p371
    %p378 = scmp.eq.s32.totalorder %s22, 3
    %p379 = por %p377, %p378
    %p380 = scmp.ne.s32.totalorder %s372, %s375
    %p381 = scmp.eq.s32.totalorder %s22, 0
    %p382 = por %p380, %p381
    %p383 = scmp.ne.s32.totalorder %s372, %s375
    %p384 = scmp.eq.s32.totalorder %s27, 3
    %p385 = por %p383, %p384
    %p386 = scmp.ne.s32.totalorder %s375, %s376
    %p387 = scmp.eq.s32.totalorder %s27, 0
    %p388 = por %p386, %p387
    %p389 = scmp.ne.s32.totalorder %s375, %s376
    %p390 = scmp.eq.s32.totalorder %s28, 3
    %p391 = por %p389, %p390
    %p393 = scmp.ne.s32.totalorder %s376, %s392
    %p394 = scmp.eq.s32.totalorder %s28, 0
    %p395 = por %p393, %p394
    %s396 = ssub.s32 %s30, %s37
    %p397 = scmp.eq.s32.totalorder %s396, 0
    %s399 = sadd.s32 %s398, 1
    %s400 = scalar_select %p397, %s398, %s399
    %p403 = pneg %p397
    %p404 = scmp.eq.s32.totalorder %s22, 3
    %p405 = por %p403, %p404
    %p406 = scmp.ne.s32.totalorder %s398, %s401
    %p407 = scmp.eq.s32.totalorder %s22, 0
    %p408 = por %p406, %p407
    %p409 = scmp.ne.s32.totalorder %s398, %s401
    %p410 = scmp.eq.s32.totalorder %s27, 3
    %p411 = por %p409, %p410
    %p412 = scmp.ne.s32.totalorder %s401, %s402
    %p413 = scmp.eq.s32.totalorder %s27, 0
    %p414 = por %p412, %p413
    %p415 = scmp.ne.s32.totalorder %s401, %s402
    %p416 = scmp.eq.s32.totalorder %s28, 3
    %p417 = por %p415, %p416
    %p419 = scmp.ne.s32.totalorder %s402, %s418
    %p420 = scmp.eq.s32.totalorder %s28, 0
    %p421 = por %p419, %p420
    %s422 = ssub.s32 %s30, %s37
    %p423 = scmp.eq.s32.totalorder %s422, 0
    %s425 = sadd.s32 %s424, 1
    %s426 = scalar_select %p423, %s424, %s425
    %p429 = pneg %p423
    %p430 = scmp.eq.s32.totalorder %s22, 3
    %p431 = por %p429, %p430
    %p432 = scmp.ne.s32.totalorder %s424, %s427
    %p433 = scmp.eq.s32.totalorder %s22, 0
    %p434 = por %p432, %p433
    %p435 = scmp.ne.s32.totalorder %s424, %s427
    %p436 = scmp.eq.s32.totalorder %s27, 3
    %p437 = por %p435, %p436
    %p438 = scmp.ne.s32.totalorder %s427, %s428
    %p439 = scmp.eq.s32.totalorder %s27, 0
    %p440 = por %p438, %p439
    %p441 = scmp.ne.s32.totalorder %s427, %s428
    %p442 = scmp.eq.s32.totalorder %s28, 3
    %p443 = por %p441, %p442
    %p445 = scmp.ne.s32.totalorder %s428, %s444
    %p446 = scmp.eq.s32.totalorder %s28, 0
    %p447 = por %p445, %p446
    %s448 = ssub.s32 %s29, %s41
    %p449 = scmp.eq.s32.totalorder %s448, 0
    %s451 = sadd.s32 %s450, 1
    %s452 = scalar_select %p449, %s450, %s451
    %p455 = pneg %p449
    %p456 = scmp.eq.s32.totalorder %s22, 3
    %p457 = por %p455, %p456
    %p458 = scmp.ne.s32.totalorder %s450, %s453
    %p459 = scmp.eq.s32.totalorder %s22, 0
    %p460 = por %p458, %p459
    %p461 = scmp.ne.s32.totalorder %s450, %s453
    %p462 = scmp.eq.s32.totalorder %s27, 3
    %p463 = por %p461, %p462
    %p464 = scmp.ne.s32.totalorder %s453, %s454
    %p465 = scmp.eq.s32.totalorder %s27, 0
    %p466 = por %p464, %p465
    %p467 = scmp.ne.s32.totalorder %s453, %s454
    %p468 = scmp.eq.s32.totalorder %s28, 3
    %p469 = por %p467, %p468
    %p471 = scmp.ne.s32.totalorder %s454, %s470
    %p472 = scmp.eq.s32.totalorder %s28, 0
    %p473 = por %p471, %p472
    %p474 = scmp.le.s32.totalorder 1, %s22
    %p475 = scmp.lt.s32.totalorder %s22, 5
    %p476 = pnand %p474, %p475
    %p477 = pneg %p476
    // Predicated region
    $region9: #{basic_bert_forward.2} parent=5 // pred_check
      _
    $region10: #{basic_bert_forward.2} parent=5 // pred_check_branch
      %479 = sbr.rel (%p476) target = $region12
    $region11: #{basic_bert_forward.2} parent=5 // pred_region
      %s480 = ssub.s32 %s22, 1
      // Predicated region
      $region13: #{basic_bert_forward.2} parent=11 // pred_check
        %p481 = pneg %p107
      $region14: #{basic_bert_forward.2} parent=11 // pred_check_branch
        %483 = sbr.rel (%p481) target = $region16
      $region15: #{basic_bert_forward.2} parent=11 // pred_region
        _
      $region16: #{basic_bert_forward.2} parent=11 // pred_fallthru
        _
      // Predicated region
      $region17: #{basic_bert_forward.2} parent=11 // pred_check
        %p484 = pneg %p128
      $region18: #{basic_bert_forward.2} parent=11 // pred_check_branch
        %486 = sbr.rel (%p484) target = $region20
      $region19: #{basic_bert_forward.2} parent=11 // pred_region
        _
      $region20: #{basic_bert_forward.2} parent=11 // pred_fallthru
        _
    $region12: #{basic_bert_forward.2} parent=5 // pred_fallthru
      _
    %p487 = scmp.lt.s32.totalorder %s22, 4
    // Predicated region
    $region21: #{basic_bert_forward.2} parent=5 // pred_check
      %p488 = pneg %p487
    $region22: #{basic_bert_forward.2} parent=5 // pred_check_branch
      %490 = sbr.rel (%p488) target = $region24
    $region23: #{basic_bert_forward.2} parent=5 // pred_region
      // Predicated region
      $region25: #{basic_bert_forward.2} parent=23 // pred_check
        %p491 = pneg %p54
      $region26: #{basic_bert_forward.2} parent=23 // pred_check_branch
        %493 = sbr.rel (%p491) target = $region28
      $region27: #{basic_bert_forward.2} parent=23 // pred_region
        %p494 = scmp.lt.s32.totalorder %s29, 1
        %s495 = scalar_select %p494, %s29, 1
        %s496 = smul.addr %s495, 8
        %s497 = scalar_lea.vmem %s0, %s496
      $region28: #{basic_bert_forward.2} parent=23 // pred_fallthru
        _
      // Predicated region
      $region29: #{basic_bert_forward.2} parent=23 // pred_check
        %p498 = pneg %p80
      $region30: #{basic_bert_forward.2} parent=23 // pred_check_branch
        %500 = sbr.rel (%p498) target = $region32
      $region31: #{basic_bert_forward.2} parent=23 // pred_region
        %p501 = scmp.lt.s32.totalorder %s29, 1
        %s502 = scalar_select %p501, %s29, 1
        %s503 = scalar_lea.vmem %s1, %s502
      $region32: #{basic_bert_forward.2} parent=23 // pred_fallthru
        _
      // Predicated region
      $region33: #{basic_bert_forward.2} parent=23 // pred_check
        %p504 = pneg %p148
      $region34: #{basic_bert_forward.2} parent=23 // pred_check_branch
        %506 = sbr.rel (%p504) target = $region36
      $region35: #{basic_bert_forward.2} parent=23 // pred_region
        %p507 = scmp.lt.s32.totalorder %s30, 1
        %s508 = scalar_select %p507, %s30, 1
        %s509 = smul.addr %s508, 4
        %s510 = smul.addr %s509, 4
        %s511 = scalar_lea.vmem %s4, %s510
      $region36: #{basic_bert_forward.2} parent=23 // pred_fallthru
        _
      // Predicated region
      $region37: #{basic_bert_forward.2} parent=23 // pred_check
        %p512 = pneg %p174
      $region38: #{basic_bert_forward.2} parent=23 // pred_check_branch
        %514 = sbr.rel (%p512) target = $region40
      $region39: #{basic_bert_forward.2} parent=23 // pred_region
        %p515 = scmp.lt.s32.totalorder %s30, 1
        %s516 = scalar_select %p515, %s30, 1
        %s517 = scalar_lea.vmem %s5, %s516
      $region40: #{basic_bert_forward.2} parent=23 // pred_fallthru
        _
      // Predicated region
      $region41: #{basic_bert_forward.2} parent=23 // pred_check
        %p518 = pneg %p200
      $region42: #{basic_bert_forward.2} parent=23 // pred_check_branch
        %520 = sbr.rel (%p518) target = $region44
      $region43: #{basic_bert_forward.2} parent=23 // pred_region
        %p521 = scmp.lt.s32.totalorder %s30, 1
        %s522 = scalar_select %p521, %s30, 1
        %s523 = smul.addr %s522, 4
        %s524 = smul.addr %s523, 4
        %s525 = scalar_lea.vmem %s6, %s524
      $region44: #{basic_bert_forward.2} parent=23 // pred_fallthru
        _
      // Predicated region
      $region45: #{basic_bert_forward.2} parent=23 // pred_check
        %p526 = pneg %p226
      $region46: #{basic_bert_forward.2} parent=23 // pred_check_branch
        %528 = sbr.rel (%p526) target = $region48
      $region47: #{basic_bert_forward.2} parent=23 // pred_region
        %p529 = scmp.lt.s32.totalorder %s30, 1
        %s530 = scalar_select %p529, %s30, 1
        %s531 = scalar_lea.vmem %s7, %s530
      $region48: #{basic_bert_forward.2} parent=23 // pred_fallthru
        _
      // Predicated region
      $region49: #{basic_bert_forward.2} parent=23 // pred_check
        %p532 = pneg %p252
      $region50: #{basic_bert_forward.2} parent=23 // pred_check_branch
        %534 = sbr.rel (%p532) target = $region52
      $region51: #{basic_bert_forward.2} parent=23 // pred_region
        %p535 = scmp.lt.s32.totalorder %s30, 1
        %s536 = scalar_select %p535, %s30, 1
        %s537 = scalar_lea.vmem %s8, %s536
      $region52: #{basic_bert_forward.2} parent=23 // pred_fallthru
        _
      // Predicated region
      $region53: #{basic_bert_forward.2} parent=23 // pred_check
        %p538 = pneg %p278
      $region54: #{basic_bert_forward.2} parent=23 // pred_check_branch
        %540 = sbr.rel (%p538) target = $region56
      $region55: #{basic_bert_forward.2} parent=23 // pred_region
        %p541 = scmp.lt.s32.totalorder %s30, 1
        %s542 = scalar_select %p541, %s30, 1
        %s543 = scalar_lea.vmem %s9, %s542
      $region56: #{basic_bert_forward.2} parent=23 // pred_fallthru
        _
      // Predicated region
      $region57: #{basic_bert_forward.2} parent=23 // pred_check
        %p544 = pneg %p304
      $region58: #{basic_bert_forward.2} parent=23 // pred_check_branch
        %546 = sbr.rel (%p544) target = $region60
      $region59: #{basic_bert_forward.2} parent=23 // pred_region
        %p547 = scmp.lt.s32.totalorder %s30, 1
        %s548 = scalar_select %p547, %s30, 1
        %s549 = smul.addr %s548, 4
        %s550 = smul.addr %s549, 4
        %s551 = scalar_lea.vmem %s10, %s550
      $region60: #{basic_bert_forward.2} parent=23 // pred_fallthru
        _
      // Predicated region
      $region61: #{basic_bert_forward.2} parent=23 // pred_check
        %p552 = pneg %p330
      $region62: #{basic_bert_forward.2} parent=23 // pred_check_branch
        %554 = sbr.rel (%p552) target = $region64
      $region63: #{basic_bert_forward.2} parent=23 // pred_region
        %p555 = scmp.lt.s32.totalorder %s30, 1
        %s556 = scalar_select %p555, %s30, 1
        %s557 = scalar_lea.vmem %s11, %s556
      $region64: #{basic_bert_forward.2} parent=23 // pred_fallthru
        _
      // Predicated region
      $region65: #{basic_bert_forward.2} parent=23 // pred_check
        %p558 = pneg %p356
      $region66: #{basic_bert_forward.2} parent=23 // pred_check_branch
        %560 = sbr.rel (%p558) target = $region68
      $region67: #{basic_bert_forward.2} parent=23 // pred_region
        %p561 = scmp.lt.s32.totalorder %s30, 1
        %s562 = scalar_select %p561, %s30, 1
        %s563 = smul.addr %s562, 8
        %s564 = smul.addr %s563, 4
        %s565 = scalar_lea.vmem %s12, %s564
      $region68: #{basic_bert_forward.2} parent=23 // pred_fallthru
        _
      // Predicated region
      $region69: #{basic_bert_forward.2} parent=23 // pred_check
        %p566 = pneg %p382
      $region70: #{basic_bert_forward.2} parent=23 // pred_check_branch
        %568 = sbr.rel (%p566) target = $region72
      $region71: #{basic_bert_forward.2} parent=23 // pred_region
        %p569 = scmp.lt.s32.totalorder %s30, 1
        %s570 = scalar_select %p569, %s30, 1
        %s571 = scalar_lea.vmem %s13, %s570
      $region72: #{basic_bert_forward.2} parent=23 // pred_fallthru
        _
      // Predicated region
      $region73: #{basic_bert_forward.2} parent=23 // pred_check
        %p572 = pneg %p408
      $region74: #{basic_bert_forward.2} parent=23 // pred_check_branch
        %574 = sbr.rel (%p572) target = $region76
      $region75: #{basic_bert_forward.2} parent=23 // pred_region
        %p575 = scmp.lt.s32.totalorder %s30, 1
        %s576 = scalar_select %p575, %s30, 1
        %s577 = scalar_lea.vmem %s14, %s576
      $region76: #{basic_bert_forward.2} parent=23 // pred_fallthru
        _
      // Predicated region
      $region77: #{basic_bert_forward.2} parent=23 // pred_check
        %p578 = pneg %p434
      $region78: #{basic_bert_forward.2} parent=23 // pred_check_branch
        %580 = sbr.rel (%p578) target = $region80
      $region79: #{basic_bert_forward.2} parent=23 // pred_region
        %p581 = scmp.lt.s32.totalorder %s30, 1
        %s582 = scalar_select %p581, %s30, 1
        %s583 = scalar_lea.vmem %s15, %s582
      $region80: #{basic_bert_forward.2} parent=23 // pred_fallthru
        _
    $region24: #{basic_bert_forward.2} parent=5 // pred_fallthru
      _
    %p584 = scmp.le.s32.totalorder 1, %s22
    %p585 = scmp.lt.s32.totalorder %s22, 5
    %p586 = pnand %p584, %p585
    %p587 = pneg %p586
    // Predicated region
    $region81: #{basic_bert_forward.2} parent=5 // pred_check
      _
    $region82: #{basic_bert_forward.2} parent=5 // pred_check_branch
      %589 = sbr.rel (%p586) target = $region84
    $region83: #{basic_bert_forward.2} parent=5 // pred_region
      %s590 = ssub.s32 %s22, 1
      %p591 = scmp.lt.s32.totalorder %s31, 1
      %s592 = scalar_select %p591, %s31, 1
      %s593 = smul.addr %s592, 8
      %s594 = scalar_lea.vmem %s0, %s593
      %p595 = pneg %p60
      %p596 = pneg %p57
      %p597 = scmp.lt.s32.totalorder %s31, 1
      %s598 = scalar_select %p597, %s31, 1
      %s599 = scalar_lea.vmem %s1, %s598
      %p600 = pneg %p86
      %p601 = pneg %p83
      %p602 = pneg %p107
      %p603 = pneg %p104
      %p604 = pneg %p128
      %p605 = pneg %p125
      %p606 = scmp.lt.s32.totalorder %s32, 1
      %s607 = scalar_select %p606, %s32, 1
      %s608 = smul.addr %s607, 4
      %s609 = smul.addr %s608, 4
      %s610 = scalar_lea.vmem %s4, %s609
      %p611 = pneg %p154
      %p612 = pneg %p151
      %p613 = scmp.lt.s32.totalorder %s32, 1
      %s614 = scalar_select %p613, %s32, 1
      %s615 = scalar_lea.vmem %s5, %s614
      %p616 = pneg %p180
      %p617 = pneg %p177
      %p618 = scmp.lt.s32.totalorder %s32, 1
      %s619 = scalar_select %p618, %s32, 1
      %s620 = smul.addr %s619, 4
      %s621 = smul.addr %s620, 4
      %s622 = scalar_lea.vmem %s6, %s621
      %p623 = pneg %p206
      %p624 = pneg %p203
      %p625 = scmp.lt.s32.totalorder %s32, 1
      %s626 = scalar_select %p625, %s32, 1
      %s627 = scalar_lea.vmem %s7, %s626
      %p628 = pneg %p232
      %p629 = pneg %p229
      %p630 = scmp.lt.s32.totalorder %s32, 1
      %s631 = scalar_select %p630, %s32, 1
      %s632 = scalar_lea.vmem %s8, %s631
      %p633 = pneg %p258
      %p634 = pneg %p255
      %p635 = scmp.lt.s32.totalorder %s32, 1
      %s636 = scalar_select %p635, %s32, 1
      %s637 = scalar_lea.vmem %s9, %s636
      %p638 = pneg %p284
      %p639 = pneg %p281
      %p640 = scmp.lt.s32.totalorder %s32, 1
      %s641 = scalar_select %p640, %s32, 1
      %s642 = smul.addr %s641, 4
      %s643 = smul.addr %s642, 4
      %s644 = scalar_lea.vmem %s10, %s643
      %p645 = pneg %p310
      %p646 = pneg %p307
      %p647 = scmp.lt.s32.totalorder %s32, 1
      %s648 = scalar_select %p647, %s32, 1
      %s649 = scalar_lea.vmem %s11, %s648
      %p650 = pneg %p336
      %p651 = pneg %p333
      %p652 = scmp.lt.s32.totalorder %s32, 1
      %s653 = scalar_select %p652, %s32, 1
      %s654 = smul.addr %s653, 8
      %s655 = smul.addr %s654, 4
      %s656 = scalar_lea.vmem %s12, %s655
      %p657 = pneg %p362
      %p658 = pneg %p359
      %p659 = scmp.lt.s32.totalorder %s32, 1
      %s660 = scalar_select %p659, %s32, 1
      %s661 = scalar_lea.vmem %s13, %s660
      %p662 = pneg %p388
      %p663 = pneg %p385
      %p664 = scmp.lt.s32.totalorder %s32, 1
      %s665 = scalar_select %p664, %s32, 1
      %s666 = scalar_lea.vmem %s14, %s665
      %p667 = pneg %p414
      %p668 = pneg %p411
      %p669 = scmp.lt.s32.totalorder %s32, 1
      %s670 = scalar_select %p669, %s32, 1
      %s671 = scalar_lea.vmem %s15, %s670
      %p672 = pneg %p440
      %p673 = pneg %p437
      %p674 = pneg %p466
      %p675 = pneg %p463
      %p676 = scmp.lt.s32.totalorder %s31, 1
      %s677 = scalar_select %p676, %s31, 1
      %s678 = smul.addr %s677, 8
      %s679 = scalar_lea.vmem %s16, %s678
      %p680 = scmp.lt.s32.totalorder %s31, 1
      %s681 = scalar_select %p680, %s31, 1
      %s682 = smul.addr %s681, 8
      %s683 = scalar_lea.vmem %s0, %s682
      %p684 = scmp.lt.s32.totalorder %s31, 1
      %s685 = scalar_select %p684, %s31, 1
      %s686 = scalar_lea.vmem %s1, %s685
      %p687 = scmp.lt.s32.totalorder %s32, 1
      %s688 = scalar_select %p687, %s32, 1
      %s689 = smul.addr %s688, 4
      %s690 = smul.addr %s689, 4
      %s691 = scalar_lea.vmem %s4, %s690
      %p692 = scmp.lt.s32.totalorder %s32, 1
      %s693 = scalar_select %p692, %s32, 1
      %s694 = scalar_lea.vmem %s5, %s693
      %p695 = scmp.lt.s32.totalorder %s32, 1
      %s696 = scalar_select %p695, %s32, 1
      %s697 = smul.addr %s696, 4
      %s698 = smul.addr %s697, 4
      %s699 = scalar_lea.vmem %s6, %s698
      %p700 = scmp.lt.s32.totalorder %s32, 1
      %s701 = scalar_select %p700, %s32, 1
      %s702 = scalar_lea.vmem %s7, %s701
      %p703 = scmp.lt.s32.totalorder %s32, 1
      %s704 = scalar_select %p703, %s32, 1
      %s705 = scalar_lea.vmem %s8, %s704
      %p706 = scmp.lt.s32.totalorder %s32, 1
      %s707 = scalar_select %p706, %s32, 1
      %s708 = scalar_lea.vmem %s9, %s707
      %p709 = scmp.lt.s32.totalorder %s32, 1
      %s710 = scalar_select %p709, %s32, 1
      %s711 = smul.addr %s710, 4
      %s712 = smul.addr %s711, 4
      %s713 = scalar_lea.vmem %s10, %s712
      %p714 = scmp.lt.s32.totalorder %s32, 1
      %s715 = scalar_select %p714, %s32, 1
      %s716 = scalar_lea.vmem %s11, %s715
      %p717 = scmp.lt.s32.totalorder %s32, 1
      %s718 = scalar_select %p717, %s32, 1
      %s719 = smul.addr %s718, 8
      %s720 = smul.addr %s719, 4
      %s721 = scalar_lea.vmem %s12, %s720
      %p722 = scmp.lt.s32.totalorder %s32, 1
      %s723 = scalar_select %p722, %s32, 1
      %s724 = scalar_lea.vmem %s13, %s723
      %p725 = scmp.lt.s32.totalorder %s32, 1
      %s726 = scalar_select %p725, %s32, 1
      %s727 = scalar_lea.vmem %s14, %s726
      %p728 = scmp.lt.s32.totalorder %s32, 1
      %s729 = scalar_select %p728, %s32, 1
      %s730 = scalar_lea.vmem %s15, %s729
      %p731 = scmp.lt.s32.totalorder %s31, 1
      %s732 = scalar_select %p731, %s31, 1
      %s733 = smul.addr %s732, 8
      %s734 = scalar_lea.vmem %s16, %s733
      %p736 = scmp.eq.s32.totalorder %s32, 0
      // Predicated region
      $region85: #{basic_bert_forward.2} parent=83 // pred_check
        %p737 = pneg %p736
      $region86: #{basic_bert_forward.2} parent=83 // pred_check_branch
        %739 = sbr.rel (%p737) target = $region88
      $region87: #{basic_bert_forward.2} parent=83 // pred_region
        %v740 = vld [vmem:[%s683] sm:$0xff]
        %v741 = vld [vmem:[%s2] sm:$0x1]
        %v742 = vld [vmem:[%s3] sm:$0x1]
        %vm743 = vcmask 261120
        %v744 = vsel %vm743, %v740, 0.0
        %745 = vadd.xlane.f32.xlu0 %v744
        %v746 = vpop.xlane.xlu0 %745
        %v747 = vrcp.pop 32.0
        %v748 = vmul.f32 %v746, %v747
        %v749 = vsub.f32 %v740, %v748
        %v750 = vmul.f32 %v749, %v749
        %v751 = vsel %vm743, %v750, 0.0
        %752 = vadd.xlane.f32.xlu0 %v751
        %v753 = vpop.xlane.xlu0 %752
        %v754 = vmul.f32 %v753, %v747
        %v755 = vadd.f32 %v754, 1e-12
        %v756 = vrsqrt.pop %v755
        %v757 = vmul.f32 %v749, %v756
        %v759 = vlaneseq
        %v760 = vshrl.u32 %v759, 7
        %v761 = vsub.s32 0, %v760
        %v762 = vrot.slane %v741, %v761
        %v764 = vmul.f32 %v757, %v762
        %v766 = vlaneseq
        %v767 = vshrl.u32 %v766, 7
        %v768 = vsub.s32 0, %v767
        %v769 = vrot.slane %v742, %v768
        %v771 = vadd.f32 %v764, %v769
        %772 = vst.msk [vmem:[%s734] sm:$0xff] %vm743, %v771
      $region88: #{basic_bert_forward.2} parent=83 // pred_fallthru
        _
      %v773 = vld [vmem:[%s734] sm:$0xff]
      %v774 = vld [vmem:[%s686] sm:$0x1]
      %v775 = vld [vmem:[%s691] sm:$0xf]
      %v776 = vld [vmem:[%s691 + $0x4] sm:$0xf]
      %v777 = vld [vmem:[%s691 + $0x8] sm:$0xf]
      %v778 = vld [vmem:[%s691 + $0xc] sm:$0xf]
      %v779 = vpack.c.bf16 %v773, %v773
      %v780 = vld [vmem:[%s694] sm:$0x1]
      %v782 = vlaneseq
      %v783 = vshrl.u32 %v782, 7
      %v784 = vsub.s32 0, %v783
      %v785 = vrot.slane %v780, %v784
      %v791 = vunpack.c.l.b16 %v775
      %v792 = vunpack.c.l.b16 %v776
      %v793 = vunpack.c.l.b16 %v777
      %v794 = vunpack.c.l.b16 %v778
      %v795 = vpack.c.b16 %v792, %v791
      %v796 = vpack.c.b16 %v794, %v793
      %vm799 = vcmask 261120
      %v801 = vsel %vm799, %v779, 0
      %803 = vmatprep.subr.bf16.mxu0 0
      %804 = vmatpush1.bf16.msra.mxu0 %v795
      %805 = vmatprep.subr.bf16.mxu0 0
      %806 = vmatpush1.bf16.msra.mxu0 %v796
      %807 = vmatprep.subr.bf16.mxu0 0
      %808 = vmatpush1.bf16.msra.mxu0 0
      %809 = vmatprep.subr.bf16.mxu0 0
      %810 = vmatpush1.bf16.msra.mxu0 0
      %811 = vmatprep.subr.bf16.mxu0 0
      %812 = vmatpush1.bf16.msra.mxu0 0
      %813 = vmatprep.subr.bf16.mxu0 0
      %814 = vmatpush1.bf16.msra.mxu0 0
      %815 = vmatprep.subr.bf16.mxu0 0
      %816 = vmatpush1.bf16.msra.mxu0 0
      %817 = vmatprep.subr.bf16.mxu0 0
      %818 = vmatpush1.bf16.msra.mxu0 0
      %819 = vmatprep.subr.bf16.mxu0 0
      %820 = vmatpush1.bf16.msra.mxu0 0
      %821 = vmatprep.subr.bf16.mxu0 0
      %822 = vmatpush1.bf16.msra.mxu0 0
      %823 = vmatprep.subr.bf16.mxu0 0
      %824 = vmatpush1.bf16.msra.mxu0 0
      %825 = vmatprep.subr.bf16.mxu0 0
      %826 = vmatpush1.bf16.msra.mxu0 0
      %827 = vmatprep.subr.bf16.mxu0 0
      %828 = vmatpush1.bf16.msra.mxu0 0
      %829 = vmatprep.subr.bf16.mxu0 0
      %830 = vmatpush1.bf16.msra.mxu0 0
      %831 = vmatprep.subr.bf16.mxu0 0
      %832 = vmatpush1.bf16.msra.mxu0 0
      %833 = vmatprep.subr.bf16.mxu0 0
      %834 = vmatpush1.bf16.msra.mxu0 0
      %835 = vmatprep.mubr.bf16.mxu0 0
      %836 = vmatmul.mubr.bf16.gmra.mrb[0].mxu0 %v801
      %v837 = vpop.f32.mrb[0].mxu0
      %v838 = vadd.f32 %v785, %v837
      %v839 = vpop.f32.mrb[0].mxu0
      %v840 = vpop.f32.mrb[0].mxu0
      %v841 = vpop.f32.mrb[0].mxu0
      %842 = vdwg.mxu0
      %844 = vrot.lane.b32.xlu0 %v838, 96
      %v845 = vpop.permute.xlu0 %844
      %vm846 = vcmask 64512
      %v847 = vsel %vm846, %v838, 0
      %v849 = vsel %vm846, %v845, 0
      %851 = vmatprep.subr.mxu0 0.0
      %852 = vmatpush1.xpose.msra.mxu0 %v849
      %853 = vmatprep.subr.mxu0 0.0
      %854 = vmatpush1.xpose.msra.mxu0 0.0
      %855 = vmatprep.subr.mxu0 0.0
      %856 = vmatpush1.xpose.msra.mxu0 0.0
      %857 = vmatprep.subr.mxu0 0.0
      %858 = vmatpush1.xpose.msra.mxu0 0.0
      %859 = vmatprep.subr.mxu0 0.0
      %860 = vmatpush1.xpose.msra.mxu0 0.0
      %861 = vmatprep.subr.mxu0 0.0
      %862 = vmatpush1.xpose.msra.mxu0 0.0
      %863 = vmatprep.subr.mxu0 0.0
      %864 = vmatpush1.xpose.msra.mxu0 0.0
      %865 = vmatprep.subr.mxu0 0.0
      %866 = vmatpush1.xpose.msra.mxu0 0.0
      %867 = vmatprep.subr.mxu0 0.0
      %868 = vmatpush1.xpose.msra.mxu0 0.0
      %869 = vmatprep.subr.mxu0 0.0
      %870 = vmatpush1.xpose.msra.mxu0 0.0
      %871 = vmatprep.subr.mxu0 0.0
      %872 = vmatpush1.xpose.msra.mxu0 0.0
      %873 = vmatprep.subr.mxu0 0.0
      %874 = vmatpush1.xpose.msra.mxu0 0.0
      %875 = vmatprep.subr.mxu0 0.0
      %876 = vmatpush1.xpose.msra.mxu0 0.0
      %877 = vmatprep.subr.mxu0 0.0
      %878 = vmatpush1.xpose.msra.mxu0 0.0
      %879 = vmatprep.subr.mxu0 0.0
      %880 = vmatpush1.xpose.msra.mxu0 0.0
      %881 = vmatprep.subr.mxu0 0.0
      %882 = vmatpush1.xpose.msra.mxu0 0.0
      %883 = vmatprep.subr.mxu0 0.0
      %884 = vmatpush1.xpose.msra.mxu0 0.0
      %885 = vmatprep.subr.mxu0 0.0
      %886 = vmatpush1.xpose.msra.mxu0 0.0
      %887 = vmatprep.subr.mxu0 0.0
      %888 = vmatpush1.xpose.msra.mxu0 0.0
      %889 = vmatprep.subr.mxu0 0.0
      %890 = vmatpush1.xpose.msra.mxu0 0.0
      %891 = vmatprep.subr.mxu0 0.0
      %892 = vmatpush1.xpose.msra.mxu0 0.0
      %893 = vmatprep.subr.mxu0 0.0
      %894 = vmatpush1.xpose.msra.mxu0 0.0
      %895 = vmatprep.subr.mxu0 0.0
      %896 = vmatpush1.xpose.msra.mxu0 0.0
      %897 = vmatprep.subr.mxu0 0.0
      %898 = vmatpush1.xpose.msra.mxu0 0.0
      %899 = vmatprep.subr.mxu0 0.0
      %900 = vmatpush1.xpose.msra.mxu0 0.0
      %901 = vmatprep.subr.mxu0 0.0
      %902 = vmatpush1.xpose.msra.mxu0 0.0
      %903 = vmatprep.subr.mxu0 0.0
      %904 = vmatpush1.xpose.msra.mxu0 0.0
      %905 = vmatprep.subr.mxu0 0.0
      %906 = vmatpush1.xpose.msra.mxu0 0.0
      %907 = vmatprep.subr.mxu0 0.0
      %908 = vmatpush1.xpose.msra.mxu0 0.0
      %909 = vmatprep.subr.mxu0 0.0
      %910 = vmatpush1.xpose.msra.mxu0 0.0
      %911 = vmatprep.subr.mxu0 0.0
      %912 = vmatpush1.xpose.msra.mxu0 0.0
      %913 = vmatprep.subr.mxu0 0.0
      %914 = vmatpush1.xpose.msra.mxu0 0.0
      %915 = vmatprep.mubr.f32.mxu0 0.0
      %916 = vmatmul.mubr.f32.gmra.mrb[0].mxu0 %v847
      %v917 = vpop.f32.mrb[0].mxu0
      %v918 = vadd.f32 0.0, %v917
      %v919 = vpop.f32.mrb[0].mxu0
      %920 = vdwg.mxu0
      %v921 = vmul.f32 %v918, 0.35355338
      %v923 = vlaneseq
      %v924 = vshrl.u32 %v923, 7
      %v925 = vsub.s32 0, %v924
      %v926 = vrot.slane %v774, %v925
      %v928 = vadd.f32 %v921, %v926
      %v929 = vsel %vm846, %v928, -inf
      %930 = vmax.xlane.f32.xlu0 %v929
      %v931 = vpop.xlane.xlu0 %930
      %v932 = vsub.f32 %v928, %v931
      %v933 = vmul.f32 %v932, 1.442695
      %v934 = vpow.pop %v933
      %v935 = vsel %vm846, %v934, 0.0
      %936 = vadd.xlane.f32.xlu0 %v935
      %v937 = vpop.xlane.xlu0 %936
      %v938 = vrcp.pop %v937
      %v939 = vmul.f32 %v934, %v938
      %940 = vrot.lane.b32.xlu0 %v838, 64
      %v941 = vpop.permute.xlu0 %940
      %v944 = vsel %vm846, %v939, 0
      %946 = vmatprep.subr.mxu0 0.0
      %947 = vmatpush1.msra.mxu0 %v941
      %948 = vmatprep.subr.mxu0 0.0
      %949 = vmatpush1.msra.mxu0 0.0
      %950 = vmatprep.subr.mxu0 0.0
      %951 = vmatpush1.msra.mxu0 0.0
      %952 = vmatprep.subr.mxu0 0.0
      %953 = vmatpush1.msra.mxu0 0.0
      %954 = vmatprep.subr.mxu0 0.0
      %955 = vmatpush1.msra.mxu0 0.0
      %956 = vmatprep.subr.mxu0 0.0
      %957 = vmatpush1.msra.mxu0 0.0
      %958 = vmatprep.subr.mxu0 0.0
      %959 = vmatpush1.msra.mxu0 0.0
      %960 = vmatprep.subr.mxu0 0.0
      %961 = vmatpush1.msra.mxu0 0.0
      %962 = vmatprep.subr.mxu0 0.0
      %963 = vmatpush1.msra.mxu0 0.0
      %964 = vmatprep.subr.mxu0 0.0
      %965 = vmatpush1.msra.mxu0 0.0
      %966 = vmatprep.subr.mxu0 0.0
      %967 = vmatpush1.msra.mxu0 0.0
      %968 = vmatprep.subr.mxu0 0.0
      %969 = vmatpush1.msra.mxu0 0.0
      %970 = vmatprep.subr.mxu0 0.0
      %971 = vmatpush1.msra.mxu0 0.0
      %972 = vmatprep.subr.mxu0 0.0
      %973 = vmatpush1.msra.mxu0 0.0
      %974 = vmatprep.subr.mxu0 0.0
      %975 = vmatpush1.msra.mxu0 0.0
      %976 = vmatprep.subr.mxu0 0.0
      %977 = vmatpush1.msra.mxu0 0.0
      %978 = vmatprep.subr.mxu0 0.0
      %979 = vmatpush1.msra.mxu0 0.0
      %980 = vmatprep.subr.mxu0 0.0
      %981 = vmatpush1.msra.mxu0 0.0
      %982 = vmatprep.subr.mxu0 0.0
      %983 = vmatpush1.msra.mxu0 0.0
      %984 = vmatprep.subr.mxu0 0.0
      %985 = vmatpush1.msra.mxu0 0.0
      %986 = vmatprep.subr.mxu0 0.0
      %987 = vmatpush1.msra.mxu0 0.0
      %988 = vmatprep.subr.mxu0 0.0
      %989 = vmatpush1.msra.mxu0 0.0
      %990 = vmatprep.subr.mxu0 0.0
      %991 = vmatpush1.msra.mxu0 0.0
      %992 = vmatprep.subr.mxu0 0.0
      %993 = vmatpush1.msra.mxu0 0.0
      %994 = vmatprep.subr.mxu0 0.0
      %995 = vmatpush1.msra.mxu0 0.0
      %996 = vmatprep.subr.mxu0 0.0
      %997 = vmatpush1.msra.mxu0 0.0
      %998 = vmatprep.subr.mxu0 0.0
      %999 = vmatpush1.msra.mxu0 0.0
      %1000 = vmatprep.subr.mxu0 0.0
      %1001 = vmatpush1.msra.mxu0 0.0
      %1002 = vmatprep.subr.mxu0 0.0
      %1003 = vmatpush1.msra.mxu0 0.0
      %1004 = vmatprep.subr.mxu0 0.0
      %1005 = vmatpush1.msra.mxu0 0.0
      %1006 = vmatprep.subr.mxu0 0.0
      %1007 = vmatpush1.msra.mxu0 0.0
      %1008 = vmatprep.subr.mxu0 0.0
      %1009 = vmatpush1.msra.mxu0 0.0
      %1010 = vmatprep.mubr.f32.mxu0 0.0
      %1011 = vmatmul.mubr.f32.gmra.mrb[0].mxu0 %v944
      %v1012 = vpop.f32.mrb[0].mxu0
      %v1013 = vadd.f32 0.0, %v1012
      %v1014 = vpop.f32.mrb[0].mxu0
      %1015 = vdwg.mxu0
      %1016 = vrot.lane.b32.xlu0 %v838, 120
      %v1017 = vpop.permute.xlu0 %1016
      %1018 = vrot.lane.b32.xlu0 %v838, 88
      %v1019 = vpop.permute.xlu0 %1018
      %v1020 = vsel %vm846, %v1017, 0
      %v1022 = vsel %vm846, %v1019, 0
      %1024 = vmatprep.subr.mxu0 0.0
      %1025 = vmatpush1.xpose.msra.mxu0 %v1022
      %1026 = vmatprep.subr.mxu0 0.0
      %1027 = vmatpush1.xpose.msra.mxu0 0.0
      %1028 = vmatprep.subr.mxu0 0.0
      %1029 = vmatpush1.xpose.msra.mxu0 0.0
      %1030 = vmatprep.subr.mxu0 0.0
      %1031 = vmatpush1.xpose.msra.mxu0 0.0
      %1032 = vmatprep.subr.mxu0 0.0
      %1033 = vmatpush1.xpose.msra.mxu0 0.0
      %1034 = vmatprep.subr.mxu0 0.0
      %1035 = vmatpush1.xpose.msra.mxu0 0.0
      %1036 = vmatprep.subr.mxu0 0.0
      %1037 = vmatpush1.xpose.msra.mxu0 0.0
      %1038 = vmatprep.subr.mxu0 0.0
      %1039 = vmatpush1.xpose.msra.mxu0 0.0
      %1040 = vmatprep.subr.mxu0 0.0
      %1041 = vmatpush1.xpose.msra.mxu0 0.0
      %1042 = vmatprep.subr.mxu0 0.0
      %1043 = vmatpush1.xpose.msra.mxu0 0.0
      %1044 = vmatprep.subr.mxu0 0.0
      %1045 = vmatpush1.xpose.msra.mxu0 0.0
      %1046 = vmatprep.subr.mxu0 0.0
      %1047 = vmatpush1.xpose.msra.mxu0 0.0
      %1048 = vmatprep.subr.mxu0 0.0
      %1049 = vmatpush1.xpose.msra.mxu0 0.0
      %1050 = vmatprep.subr.mxu0 0.0
      %1051 = vmatpush1.xpose.msra.mxu0 0.0
      %1052 = vmatprep.subr.mxu0 0.0
      %1053 = vmatpush1.xpose.msra.mxu0 0.0
      %1054 = vmatprep.subr.mxu0 0.0
      %1055 = vmatpush1.xpose.msra.mxu0 0.0
      %1056 = vmatprep.subr.mxu0 0.0
      %1057 = vmatpush1.xpose.msra.mxu0 0.0
      %1058 = vmatprep.subr.mxu0 0.0
      %1059 = vmatpush1.xpose.msra.mxu0 0.0
      %1060 = vmatprep.subr.mxu0 0.0
      %1061 = vmatpush1.xpose.msra.mxu0 0.0
      %1062 = vmatprep.subr.mxu0 0.0
      %1063 = vmatpush1.xpose.msra.mxu0 0.0
      %1064 = vmatprep.subr.mxu0 0.0
      %1065 = vmatpush1.xpose.msra.mxu0 0.0
      %1066 = vmatprep.subr.mxu0 0.0
      %1067 = vmatpush1.xpose.msra.mxu0 0.0
      %1068 = vmatprep.subr.mxu0 0.0
      %1069 = vmatpush1.xpose.msra.mxu0 0.0
      %1070 = vmatprep.subr.mxu0 0.0
      %1071 = vmatpush1.xpose.msra.mxu0 0.0
      %1072 = vmatprep.subr.mxu0 0.0
      %1073 = vmatpush1.xpose.msra.mxu0 0.0
      %1074 = vmatprep.subr.mxu0 0.0
      %1075 = vmatpush1.xpose.msra.mxu0 0.0
      %1076 = vmatprep.subr.mxu0 0.0
      %1077 = vmatpush1.xpose.msra.mxu0 0.0
      %1078 = vmatprep.subr.mxu0 0.0
      %1079 = vmatpush1.xpose.msra.mxu0 0.0
      %1080 = vmatprep.subr.mxu0 0.0
      %1081 = vmatpush1.xpose.msra.mxu0 0.0
      %1082 = vmatprep.subr.mxu0 0.0
      %1083 = vmatpush1.xpose.msra.mxu0 0.0
      %1084 = vmatprep.subr.mxu0 0.0
      %1085 = vmatpush1.xpose.msra.mxu0 0.0
      %1086 = vmatprep.subr.mxu0 0.0
      %1087 = vmatpush1.xpose.msra.mxu0 0.0
      %1088 = vmatprep.mubr.f32.mxu0 0.0
      %1089 = vmatmul.mubr.f32.gmra.mrb[0].mxu0 %v1020
      %v1090 = vpop.f32.mrb[0].mxu0
      %v1091 = vadd.f32 0.0, %v1090
      %v1092 = vpop.f32.mrb[0].mxu0
      %1093 = vdwg.mxu0
      %v1094 = vmul.f32 %v1091, 0.35355338
      %v1095 = vadd.f32 %v1094, %v926
      %v1096 = vsel %vm846, %v1095, -inf
      %1097 = vmax.xlane.f32.xlu0 %v1096
      %v1098 = vpop.xlane.xlu0 %1097
      %v1099 = vsub.f32 %v1095, %v1098
      %v1100 = vmul.f32 %v1099, 1.442695
      %v1101 = vpow.pop %v1100
      %v1102 = vsel %vm846, %v1101, 0.0
      %1103 = vadd.xlane.f32.xlu0 %v1102
      %v1104 = vpop.xlane.xlu0 %1103
      %v1105 = vrcp.pop %v1104
      %v1106 = vmul.f32 %v1101, %v1105
      %1107 = vrot.lane.b32.xlu0 %v838, 56
      %v1108 = vpop.permute.xlu0 %1107
      %v1111 = vsel %vm846, %v1106, 0
      %1113 = vmatprep.subr.mxu0 0.0
      %1114 = vmatpush1.msra.mxu0 %v1108
      %1115 = vmatprep.subr.mxu0 0.0
      %1116 = vmatpush1.msra.mxu0 0.0
      %1117 = vmatprep.subr.mxu0 0.0
      %1118 = vmatpush1.msra.mxu0 0.0
      %1119 = vmatprep.subr.mxu0 0.0
      %1120 = vmatpush1.msra.mxu0 0.0
      %1121 = vmatprep.subr.mxu0 0.0
      %1122 = vmatpush1.msra.mxu0 0.0
      %1123 = vmatprep.subr.mxu0 0.0
      %1124 = vmatpush1.msra.mxu0 0.0
      %1125 = vmatprep.subr.mxu0 0.0
      %1126 = vmatpush1.msra.mxu0 0.0
      %1127 = vmatprep.subr.mxu0 0.0
      %1128 = vmatpush1.msra.mxu0 0.0
      %1129 = vmatprep.subr.mxu0 0.0
      %1130 = vmatpush1.msra.mxu0 0.0
      %1131 = vmatprep.subr.mxu0 0.0
      %1132 = vmatpush1.msra.mxu0 0.0
      %1133 = vmatprep.subr.mxu0 0.0
      %1134 = vmatpush1.msra.mxu0 0.0
      %1135 = vmatprep.subr.mxu0 0.0
      %1136 = vmatpush1.msra.mxu0 0.0
      %1137 = vmatprep.subr.mxu0 0.0
      %1138 = vmatpush1.msra.mxu0 0.0
      %1139 = vmatprep.subr.mxu0 0.0
      %1140 = vmatpush1.msra.mxu0 0.0
      %1141 = vmatprep.subr.mxu0 0.0
      %1142 = vmatpush1.msra.mxu0 0.0
      %1143 = vmatprep.subr.mxu0 0.0
      %1144 = vmatpush1.msra.mxu0 0.0
      %1145 = vmatprep.subr.mxu0 0.0
      %1146 = vmatpush1.msra.mxu0 0.0
      %1147 = vmatprep.subr.mxu0 0.0
      %1148 = vmatpush1.msra.mxu0 0.0
      %1149 = vmatprep.subr.mxu0 0.0
      %1150 = vmatpush1.msra.mxu0 0.0
      %1151 = vmatprep.subr.mxu0 0.0
      %1152 = vmatpush1.msra.mxu0 0.0
      %1153 = vmatprep.subr.mxu0 0.0
      %1154 = vmatpush1.msra.mxu0 0.0
      %1155 = vmatprep.subr.mxu0 0.0
      %1156 = vmatpush1.msra.mxu0 0.0
      %1157 = vmatprep.subr.mxu0 0.0
      %1158 = vmatpush1.msra.mxu0 0.0
      %1159 = vmatprep.subr.mxu0 0.0
      %1160 = vmatpush1.msra.mxu0 0.0
      %1161 = vmatprep.subr.mxu0 0.0
      %1162 = vmatpush1.msra.mxu0 0.0
      %1163 = vmatprep.subr.mxu0 0.0
      %1164 = vmatpush1.msra.mxu0 0.0
      %1165 = vmatprep.subr.mxu0 0.0
      %1166 = vmatpush1.msra.mxu0 0.0
      %1167 = vmatprep.subr.mxu0 0.0
      %1168 = vmatpush1.msra.mxu0 0.0
      %1169 = vmatprep.subr.mxu0 0.0
      %1170 = vmatpush1.msra.mxu0 0.0
      %1171 = vmatprep.subr.mxu0 0.0
      %1172 = vmatpush1.msra.mxu0 0.0
      %1173 = vmatprep.subr.mxu0 0.0
      %1174 = vmatpush1.msra.mxu0 0.0
      %1175 = vmatprep.subr.mxu0 0.0
      %1176 = vmatpush1.msra.mxu0 0.0
      %1177 = vmatprep.mubr.f32.mxu0 0.0
      %1178 = vmatmul.mubr.f32.gmra.mrb[0].mxu0 %v1111
      %v1179 = vpop.f32.mrb[0].mxu0
      %v1180 = vadd.f32 0.0, %v1179
      %v1181 = vpop.f32.mrb[0].mxu0
      %1182 = vdwg.mxu0
      %1183 = vrot.lane.b32.xlu0 %v838, 112
      %v1184 = vpop.permute.xlu0 %1183
      %1185 = vrot.lane.b32.xlu0 %v838, 80
      %v1186 = vpop.permute.xlu0 %1185
      %v1187 = vsel %vm846, %v1184, 0
      %v1189 = vsel %vm846, %v1186, 0
      %1191 = vmatprep.subr.mxu0 0.0
      %1192 = vmatpush1.xpose.msra.mxu0 %v1189
      %1193 = vmatprep.subr.mxu0 0.0
      %1194 = vmatpush1.xpose.msra.mxu0 0.0
      %1195 = vmatprep.subr.mxu0 0.0
      %1196 = vmatpush1.xpose.msra.mxu0 0.0
      %1197 = vmatprep.subr.mxu0 0.0
      %1198 = vmatpush1.xpose.msra.mxu0 0.0
      %1199 = vmatprep.subr.mxu0 0.0
      %1200 = vmatpush1.xpose.msra.mxu0 0.0
      %1201 = vmatprep.subr.mxu0 0.0
      %1202 = vmatpush1.xpose.msra.mxu0 0.0
      %1203 = vmatprep.subr.mxu0 0.0
      %1204 = vmatpush1.xpose.msra.mxu0 0.0
      %1205 = vmatprep.subr.mxu0 0.0
      %1206 = vmatpush1.xpose.msra.mxu0 0.0
      %1207 = vmatprep.subr.mxu0 0.0
      %1208 = vmatpush1.xpose.msra.mxu0 0.0
      %1209 = vmatprep.subr.mxu0 0.0
      %1210 = vmatpush1.xpose.msra.mxu0 0.0
      %1211 = vmatprep.subr.mxu0 0.0
      %1212 = vmatpush1.xpose.msra.mxu0 0.0
      %1213 = vmatprep.subr.mxu0 0.0
      %1214 = vmatpush1.xpose.msra.mxu0 0.0
      %1215 = vmatprep.subr.mxu0 0.0
      %1216 = vmatpush1.xpose.msra.mxu0 0.0
      %1217 = vmatprep.subr.mxu0 0.0
      %1218 = vmatpush1.xpose.msra.mxu0 0.0
      %1219 = vmatprep.subr.mxu0 0.0
      %1220 = vmatpush1.xpose.msra.mxu0 0.0
      %1221 = vmatprep.subr.mxu0 0.0
      %1222 = vmatpush1.xpose.msra.mxu0 0.0
      %1223 = vmatprep.subr.mxu0 0.0
      %1224 = vmatpush1.xpose.msra.mxu0 0.0
      %1225 = vmatprep.subr.mxu0 0.0
      %1226 = vmatpush1.xpose.msra.mxu0 0.0
      %1227 = vmatprep.subr.mxu0 0.0
      %1228 = vmatpush1.xpose.msra.mxu0 0.0
      %1229 = vmatprep.subr.mxu0 0.0
      %1230 = vmatpush1.xpose.msra.mxu0 0.0
      %1231 = vmatprep.subr.mxu0 0.0
      %1232 = vmatpush1.xpose.msra.mxu0 0.0
      %1233 = vmatprep.subr.mxu0 0.0
      %1234 = vmatpush1.xpose.msra.mxu0 0.0
      %1235 = vmatprep.subr.mxu0 0.0
      %1236 = vmatpush1.xpose.msra.mxu0 0.0
      %1237 = vmatprep.subr.mxu0 0.0
      %1238 = vmatpush1.xpose.msra.mxu0 0.0
      %1239 = vmatprep.subr.mxu0 0.0
      %1240 = vmatpush1.xpose.msra.mxu0 0.0
      %1241 = vmatprep.subr.mxu0 0.0
      %1242 = vmatpush1.xpose.msra.mxu0 0.0
      %1243 = vmatprep.subr.mxu0 0.0
      %1244 = vmatpush1.xpose.msra.mxu0 0.0
      %1245 = vmatprep.subr.mxu0 0.0
      %1246 = vmatpush1.xpose.msra.mxu0 0.0
      %1247 = vmatprep.subr.mxu0 0.0
      %1248 = vmatpush1.xpose.msra.mxu0 0.0
      %1249 = vmatprep.subr.mxu0 0.0
      %1250 = vmatpush1.xpose.msra.mxu0 0.0
      %1251 = vmatprep.subr.mxu0 0.0
      %1252 = vmatpush1.xpose.msra.mxu0 0.0
      %1253 = vmatprep.subr.mxu0 0.0
      %1254 = vmatpush1.xpose.msra.mxu0 0.0
      %1255 = vmatprep.mubr.f32.mxu0 0.0
      %1256 = vmatmul.mubr.f32.gmra.mrb[0].mxu0 %v1187
      %v1257 = vpop.f32.mrb[0].mxu0
      %v1258 = vadd.f32 0.0, %v1257
      %v1259 = vpop.f32.mrb[0].mxu0
      %1260 = vdwg.mxu0
      %v1261 = vmul.f32 %v1258, 0.35355338
      %v1262 = vadd.f32 %v1261, %v926
      %v1263 = vsel %vm846, %v1262, -inf
      %1264 = vmax.xlane.f32.xlu0 %v1263
      %v1265 = vpop.xlane.xlu0 %1264
      %v1266 = vsub.f32 %v1262, %v1265
      %v1267 = vmul.f32 %v1266, 1.442695
      %v1268 = vpow.pop %v1267
      %v1269 = vsel %vm846, %v1268, 0.0
      %1270 = vadd.xlane.f32.xlu0 %v1269
      %v1271 = vpop.xlane.xlu0 %1270
      %v1272 = vrcp.pop %v1271
      %v1273 = vmul.f32 %v1268, %v1272
      %1274 = vrot.lane.b32.xlu0 %v838, 48
      %v1275 = vpop.permute.xlu0 %1274
      %v1278 = vsel %vm846, %v1273, 0
      %1280 = vmatprep.subr.mxu0 0.0
      %1281 = vmatpush1.msra.mxu0 %v1275
      %1282 = vmatprep.subr.mxu0 0.0
      %1283 = vmatpush1.msra.mxu0 0.0
      %1284 = vmatprep.subr.mxu0 0.0
      %1285 = vmatpush1.msra.mxu0 0.0
      %1286 = vmatprep.subr.mxu0 0.0
      %1287 = vmatpush1.msra.mxu0 0.0
      %1288 = vmatprep.subr.mxu0 0.0
      %1289 = vmatpush1.msra.mxu0 0.0
      %1290 = vmatprep.subr.mxu0 0.0
      %1291 = vmatpush1.msra.mxu0 0.0
      %1292 = vmatprep.subr.mxu0 0.0
      %1293 = vmatpush1.msra.mxu0 0.0
      %1294 = vmatprep.subr.mxu0 0.0
      %1295 = vmatpush1.msra.mxu0 0.0
      %1296 = vmatprep.subr.mxu0 0.0
      %1297 = vmatpush1.msra.mxu0 0.0
      %1298 = vmatprep.subr.mxu0 0.0
      %1299 = vmatpush1.msra.mxu0 0.0
      %1300 = vmatprep.subr.mxu0 0.0
      %1301 = vmatpush1.msra.mxu0 0.0
      %1302 = vmatprep.subr.mxu0 0.0
      %1303 = vmatpush1.msra.mxu0 0.0
      %1304 = vmatprep.subr.mxu0 0.0
      %1305 = vmatpush1.msra.mxu0 0.0
      %1306 = vmatprep.subr.mxu0 0.0
      %1307 = vmatpush1.msra.mxu0 0.0
      %1308 = vmatprep.subr.mxu0 0.0
      %1309 = vmatpush1.msra.mxu0 0.0
      %1310 = vmatprep.subr.mxu0 0.0
      %1311 = vmatpush1.msra.mxu0 0.0
      %1312 = vmatprep.subr.mxu0 0.0
      %1313 = vmatpush1.msra.mxu0 0.0
      %1314 = vmatprep.subr.mxu0 0.0
      %1315 = vmatpush1.msra.mxu0 0.0
      %1316 = vmatprep.subr.mxu0 0.0
      %1317 = vmatpush1.msra.mxu0 0.0
      %1318 = vmatprep.subr.mxu0 0.0
      %1319 = vmatpush1.msra.mxu0 0.0
      %1320 = vmatprep.subr.mxu0 0.0
      %1321 = vmatpush1.msra.mxu0 0.0
      %1322 = vmatprep.subr.mxu0 0.0
      %1323 = vmatpush1.msra.mxu0 0.0
      %1324 = vmatprep.subr.mxu0 0.0
      %1325 = vmatpush1.msra.mxu0 0.0
      %1326 = vmatprep.subr.mxu0 0.0
      %1327 = vmatpush1.msra.mxu0 0.0
      %1328 = vmatprep.subr.mxu0 0.0
      %1329 = vmatpush1.msra.mxu0 0.0
      %1330 = vmatprep.subr.mxu0 0.0
      %1331 = vmatpush1.msra.mxu0 0.0
      %1332 = vmatprep.subr.mxu0 0.0
      %1333 = vmatpush1.msra.mxu0 0.0
      %1334 = vmatprep.subr.mxu0 0.0
      %1335 = vmatpush1.msra.mxu0 0.0
      %1336 = vmatprep.subr.mxu0 0.0
      %1337 = vmatpush1.msra.mxu0 0.0
      %1338 = vmatprep.subr.mxu0 0.0
      %1339 = vmatpush1.msra.mxu0 0.0
      %1340 = vmatprep.subr.mxu0 0.0
      %1341 = vmatpush1.msra.mxu0 0.0
      %1342 = vmatprep.subr.mxu0 0.0
      %1343 = vmatpush1.msra.mxu0 0.0
      %1344 = vmatprep.mubr.f32.mxu0 0.0
      %1345 = vmatmul.mubr.f32.gmra.mrb[0].mxu0 %v1278
      %v1346 = vpop.f32.mrb[0].mxu0
      %v1347 = vadd.f32 0.0, %v1346
      %v1348 = vpop.f32.mrb[0].mxu0
      %1349 = vdwg.mxu0
      %1350 = vrot.lane.b32.xlu0 %v838, 104
      %v1351 = vpop.permute.xlu0 %1350
      %1352 = vrot.lane.b32.xlu0 %v838, 72
      %v1353 = vpop.permute.xlu0 %1352
      %v1354 = vsel %vm846, %v1351, 0
      %v1356 = vsel %vm846, %v1353, 0
      %1358 = vmatprep.subr.mxu0 0.0
      %1359 = vmatpush1.xpose.msra.mxu0 %v1356
      %1360 = vmatprep.subr.mxu0 0.0
      %1361 = vmatpush1.xpose.msra.mxu0 0.0
      %1362 = vmatprep.subr.mxu0 0.0
      %1363 = vmatpush1.xpose.msra.mxu0 0.0
      %1364 = vmatprep.subr.mxu0 0.0
      %1365 = vmatpush1.xpose.msra.mxu0 0.0
      %1366 = vmatprep.subr.mxu0 0.0
      %1367 = vmatpush1.xpose.msra.mxu0 0.0
      %1368 = vmatprep.subr.mxu0 0.0
      %1369 = vmatpush1.xpose.msra.mxu0 0.0
      %1370 = vmatprep.subr.mxu0 0.0
      %1371 = vmatpush1.xpose.msra.mxu0 0.0
      %1372 = vmatprep.subr.mxu0 0.0
      %1373 = vmatpush1.xpose.msra.mxu0 0.0
      %1374 = vmatprep.subr.mxu0 0.0
      %1375 = vmatpush1.xpose.msra.mxu0 0.0
      %1376 = vmatprep.subr.mxu0 0.0
      %1377 = vmatpush1.xpose.msra.mxu0 0.0
      %1378 = vmatprep.subr.mxu0 0.0
      %1379 = vmatpush1.xpose.msra.mxu0 0.0
      %1380 = vmatprep.subr.mxu0 0.0
      %1381 = vmatpush1.xpose.msra.mxu0 0.0
      %1382 = vmatprep.subr.mxu0 0.0
      %1383 = vmatpush1.xpose.msra.mxu0 0.0
      %1384 = vmatprep.subr.mxu0 0.0
      %1385 = vmatpush1.xpose.msra.mxu0 0.0
      %1386 = vmatprep.subr.mxu0 0.0
      %1387 = vmatpush1.xpose.msra.mxu0 0.0
      %1388 = vmatprep.subr.mxu0 0.0
      %1389 = vmatpush1.xpose.msra.mxu0 0.0
      %1390 = vmatprep.subr.mxu0 0.0
      %1391 = vmatpush1.xpose.msra.mxu0 0.0
      %1392 = vmatprep.subr.mxu0 0.0
      %1393 = vmatpush1.xpose.msra.mxu0 0.0
      %1394 = vmatprep.subr.mxu0 0.0
      %1395 = vmatpush1.xpose.msra.mxu0 0.0
      %1396 = vmatprep.subr.mxu0 0.0
      %1397 = vmatpush1.xpose.msra.mxu0 0.0
      %1398 = vmatprep.subr.mxu0 0.0
      %1399 = vmatpush1.xpose.msra.mxu0 0.0
      %1400 = vmatprep.subr.mxu0 0.0
      %1401 = vmatpush1.xpose.msra.mxu0 0.0
      %1402 = vmatprep.subr.mxu0 0.0
      %1403 = vmatpush1.xpose.msra.mxu0 0.0
      %1404 = vmatprep.subr.mxu0 0.0
      %1405 = vmatpush1.xpose.msra.mxu0 0.0
      %1406 = vmatprep.subr.mxu0 0.0
      %1407 = vmatpush1.xpose.msra.mxu0 0.0
      %1408 = vmatprep.subr.mxu0 0.0
      %1409 = vmatpush1.xpose.msra.mxu0 0.0
      %1410 = vmatprep.subr.mxu0 0.0
      %1411 = vmatpush1.xpose.msra.mxu0 0.0
      %1412 = vmatprep.subr.mxu0 0.0
      %1413 = vmatpush1.xpose.msra.mxu0 0.0
      %1414 = vmatprep.subr.mxu0 0.0
      %1415 = vmatpush1.xpose.msra.mxu0 0.0
      %1416 = vmatprep.subr.mxu0 0.0
      %1417 = vmatpush1.xpose.msra.mxu0 0.0
      %1418 = vmatprep.subr.mxu0 0.0
      %1419 = vmatpush1.xpose.msra.mxu0 0.0
      %1420 = vmatprep.subr.mxu0 0.0
      %1421 = vmatpush1.xpose.msra.mxu0 0.0
      %1422 = vmatprep.mubr.f32.mxu0 0.0
      %1423 = vmatmul.mubr.f32.gmra.mrb[0].mxu0 %v1354
      %v1424 = vpop.f32.mrb[0].mxu0
      %v1425 = vadd.f32 0.0, %v1424
      %v1426 = vpop.f32.mrb[0].mxu0
      %1427 = vdwg.mxu0
      %v1428 = vmul.f32 %v1425, 0.35355338
      %v1429 = vadd.f32 %v1428, %v926
      %v1430 = vsel %vm846, %v1429, -inf
      %1431 = vmax.xlane.f32.xlu0 %v1430
      %v1432 = vpop.xlane.xlu0 %1431
      %v1433 = vsub.f32 %v1429, %v1432
      %v1434 = vmul.f32 %v1433, 1.442695
      %v1435 = vpow.pop %v1434
      %v1436 = vsel %vm846, %v1435, 0.0
      %1437 = vadd.xlane.f32.xlu0 %v1436
      %v1438 = vpop.xlane.xlu0 %1437
      %v1439 = vrcp.pop %v1438
      %v1440 = vmul.f32 %v1435, %v1439
      %1441 = vrot.lane.b32.xlu0 %v838, 40
      %v1442 = vpop.permute.xlu0 %1441
      %v1445 = vsel %vm846, %v1440, 0
      %1447 = vmatprep.subr.mxu0 0.0
      %1448 = vmatpush1.msra.mxu0 %v1442
      %1449 = vmatprep.subr.mxu0 0.0
      %1450 = vmatpush1.msra.mxu0 0.0
      %1451 = vmatprep.subr.mxu0 0.0
      %1452 = vmatpush1.msra.mxu0 0.0
      %1453 = vmatprep.subr.mxu0 0.0
      %1454 = vmatpush1.msra.mxu0 0.0
      %1455 = vmatprep.subr.mxu0 0.0
      %1456 = vmatpush1.msra.mxu0 0.0
      %1457 = vmatprep.subr.mxu0 0.0
      %1458 = vmatpush1.msra.mxu0 0.0
      %1459 = vmatprep.subr.mxu0 0.0
      %1460 = vmatpush1.msra.mxu0 0.0
      %1461 = vmatprep.subr.mxu0 0.0
      %1462 = vmatpush1.msra.mxu0 0.0
      %1463 = vmatprep.subr.mxu0 0.0
      %1464 = vmatpush1.msra.mxu0 0.0
      %1465 = vmatprep.subr.mxu0 0.0
      %1466 = vmatpush1.msra.mxu0 0.0
      %1467 = vmatprep.subr.mxu0 0.0
      %1468 = vmatpush1.msra.mxu0 0.0
      %1469 = vmatprep.subr.mxu0 0.0
      %1470 = vmatpush1.msra.mxu0 0.0
      %1471 = vmatprep.subr.mxu0 0.0
      %1472 = vmatpush1.msra.mxu0 0.0
      %1473 = vmatprep.subr.mxu0 0.0
      %1474 = vmatpush1.msra.mxu0 0.0
      %1475 = vmatprep.subr.mxu0 0.0
      %1476 = vmatpush1.msra.mxu0 0.0
      %1477 = vmatprep.subr.mxu0 0.0
      %1478 = vmatpush1.msra.mxu0 0.0
      %1479 = vmatprep.subr.mxu0 0.0
      %1480 = vmatpush1.msra.mxu0 0.0
      %1481 = vmatprep.subr.mxu0 0.0
      %1482 = vmatpush1.msra.mxu0 0.0
      %1483 = vmatprep.subr.mxu0 0.0
      %1484 = vmatpush1.msra.mxu0 0.0
      %1485 = vmatprep.subr.mxu0 0.0
      %1486 = vmatpush1.msra.mxu0 0.0
      %1487 = vmatprep.subr.mxu0 0.0
      %1488 = vmatpush1.msra.mxu0 0.0
      %1489 = vmatprep.subr.mxu0 0.0
      %1490 = vmatpush1.msra.mxu0 0.0
      %1491 = vmatprep.subr.mxu0 0.0
      %1492 = vmatpush1.msra.mxu0 0.0
      %1493 = vmatprep.subr.mxu0 0.0
      %1494 = vmatpush1.msra.mxu0 0.0
      %1495 = vmatprep.subr.mxu0 0.0
      %1496 = vmatpush1.msra.mxu0 0.0
      %1497 = vmatprep.subr.mxu0 0.0
      %1498 = vmatpush1.msra.mxu0 0.0
      %1499 = vmatprep.subr.mxu0 0.0
      %1500 = vmatpush1.msra.mxu0 0.0
      %1501 = vmatprep.subr.mxu0 0.0
      %1502 = vmatpush1.msra.mxu0 0.0
      %1503 = vmatprep.subr.mxu0 0.0
      %1504 = vmatpush1.msra.mxu0 0.0
      %1505 = vmatprep.subr.mxu0 0.0
      %1506 = vmatpush1.msra.mxu0 0.0
      %1507 = vmatprep.subr.mxu0 0.0
      %1508 = vmatpush1.msra.mxu0 0.0
      %1509 = vmatprep.subr.mxu0 0.0
      %1510 = vmatpush1.msra.mxu0 0.0
      %1511 = vmatprep.mubr.f32.mxu0 0.0
      %1512 = vmatmul.mubr.f32.gmra.mrb[0].mxu0 %v1445
      %v1513 = vpop.f32.mrb[0].mxu0
      %v1514 = vadd.f32 0.0, %v1513
      %v1515 = vpop.f32.mrb[0].mxu0
      %1516 = vdwg.mxu0
      %1518 = vrot.lane.b32.xlu0 %v1180, 8
      %v1519 = vpop.permute.xlu0 %1518
      %1522 = vrot.lane.b32.xlu0 %v1347, 16
      %v1523 = vpop.permute.xlu0 %1522
      %1526 = vrot.lane.b32.xlu0 %v1514, 24
      %v1527 = vpop.permute.xlu0 %1526
      %v1529 = vsel %vm846, %v1013, %v1519
      %vm1530 = vcmask 130048
      %v1531 = vsel %vm1530, %v1529, %v1523
      %vm1532 = vcmask 195584
      %v1533 = vsel %vm1532, %v1531, %v1527
      %v1534 = vld [vmem:[%s699] sm:$0xf]
      %v1535 = vld [vmem:[%s699 + $0x4] sm:$0xf]
      %v1536 = vld [vmem:[%s699 + $0x8] sm:$0xf]
      %v1537 = vld [vmem:[%s699 + $0xc] sm:$0xf]
      %v1538 = vpack.c.bf16 %v1533, %v1533
      %v1539 = vld [vmem:[%s702] sm:$0x1]
      %v1541 = vlaneseq
      %v1542 = vshrl.u32 %v1541, 7
      %v1543 = vsub.s32 0, %v1542
      %v1544 = vrot.slane %v1539, %v1543
      %v1550 = vunpack.c.l.b16 %v1534
      %v1551 = vunpack.c.l.b16 %v1535
      %v1552 = vunpack.c.l.b16 %v1536
      %v1553 = vunpack.c.l.b16 %v1537
      %v1554 = vpack.c.b16 %v1551, %v1550
      %v1555 = vpack.c.b16 %v1553, %v1552
      %v1559 = vsel %vm799, %v1538, 0
      %1561 = vmatprep.subr.bf16.mxu0 0
      %1562 = vmatpush1.bf16.msra.mxu0 %v1554
      %1563 = vmatprep.subr.bf16.mxu0 0
      %1564 = vmatpush1.bf16.msra.mxu0 %v1555
      %1565 = vmatprep.subr.bf16.mxu0 0
      %1566 = vmatpush1.bf16.msra.mxu0 0
      %1567 = vmatprep.subr.bf16.mxu0 0
      %1568 = vmatpush1.bf16.msra.mxu0 0
      %1569 = vmatprep.subr.bf16.mxu0 0
      %1570 = vmatpush1.bf16.msra.mxu0 0
      %1571 = vmatprep.subr.bf16.mxu0 0
      %1572 = vmatpush1.bf16.msra.mxu0 0
      %1573 = vmatprep.subr.bf16.mxu0 0
      %1574 = vmatpush1.bf16.msra.mxu0 0
      %1575 = vmatprep.subr.bf16.mxu0 0
      %1576 = vmatpush1.bf16.msra.mxu0 0
      %1577 = vmatprep.subr.bf16.mxu0 0
      %1578 = vmatpush1.bf16.msra.mxu0 0
      %1579 = vmatprep.subr.bf16.mxu0 0
      %1580 = vmatpush1.bf16.msra.mxu0 0
      %1581 = vmatprep.subr.bf16.mxu0 0
      %1582 = vmatpush1.bf16.msra.mxu0 0
      %1583 = vmatprep.subr.bf16.mxu0 0
      %1584 = vmatpush1.bf16.msra.mxu0 0
      %1585 = vmatprep.subr.bf16.mxu0 0
      %1586 = vmatpush1.bf16.msra.mxu0 0
      %1587 = vmatprep.subr.bf16.mxu0 0
      %1588 = vmatpush1.bf16.msra.mxu0 0
      %1589 = vmatprep.subr.bf16.mxu0 0
      %1590 = vmatpush1.bf16.msra.mxu0 0
      %1591 = vmatprep.subr.bf16.mxu0 0
      %1592 = vmatpush1.bf16.msra.mxu0 0
      %1593 = vmatprep.mubr.bf16.mxu0 0
      %1594 = vmatmul.mubr.bf16.gmra.mrb[0].mxu0 %v1559
      %v1595 = vpop.f32.mrb[0].mxu0
      %v1596 = vadd.f32 %v1544, %v1595
      %v1597 = vpop.f32.mrb[0].mxu0
      %v1598 = vpop.f32.mrb[0].mxu0
      %v1599 = vpop.f32.mrb[0].mxu0
      %1600 = vdwg.mxu0
      %v1601 = vadd.f32 %v773, %v1596
      %v1602 = vld [vmem:[%s705] sm:$0x1]
      %v1603 = vld [vmem:[%s708] sm:$0x1]
      %v1604 = vsel %vm799, %v1601, 0.0
      %1605 = vadd.xlane.f32.xlu0 %v1604
      %v1606 = vpop.xlane.xlu0 %1605
      %v1607 = vrcp.pop 32.0
      %v1608 = vmul.f32 %v1606, %v1607
      %v1609 = vsub.f32 %v1601, %v1608
      %v1610 = vmul.f32 %v1609, %v1609
      %v1611 = vsel %vm799, %v1610, 0.0
      %1612 = vadd.xlane.f32.xlu0 %v1611
      %v1613 = vpop.xlane.xlu0 %1612
      %v1614 = vmul.f32 %v1613, %v1607
      %v1615 = vadd.f32 %v1614, 1e-12
      %v1616 = vrsqrt.pop %v1615
      %v1617 = vmul.f32 %v1609, %v1616
      %v1619 = vlaneseq
      %v1620 = vshrl.u32 %v1619, 7
      %v1621 = vsub.s32 0, %v1620
      %v1622 = vrot.slane %v1602, %v1621
      %v1624 = vmul.f32 %v1617, %v1622
      %v1626 = vlaneseq
      %v1627 = vshrl.u32 %v1626, 7
      %v1628 = vsub.s32 0, %v1627
      %v1629 = vrot.slane %v1603, %v1628
      %v1631 = vadd.f32 %v1624, %v1629
      %v1632 = vld [vmem:[%s713] sm:$0xf]
      %v1633 = vld [vmem:[%s713 + $0x4] sm:$0xf]
      %v1634 = vld [vmem:[%s713 + $0x8] sm:$0xf]
      %v1635 = vld [vmem:[%s713 + $0xc] sm:$0xf]
      %v1636 = vpack.c.bf16 %v1631, %v1631
      %v1637 = vld [vmem:[%s716] sm:$0x1]
      %v1639 = vlaneseq
      %v1640 = vshrl.u32 %v1639, 7
      %v1641 = vsub.s32 0, %v1640
      %v1642 = vrot.slane %v1637, %v1641
      %v1648 = vunpack.c.l.b16 %v1632
      %v1649 = vunpack.c.l.b16 %v1633
      %v1650 = vunpack.c.l.b16 %v1634
      %v1651 = vunpack.c.l.b16 %v1635
      %v1652 = vpack.c.b16 %v1649, %v1648
      %v1653 = vpack.c.b16 %v1651, %v1650
      %v1657 = vsel %vm799, %v1636, 0
      %1659 = vmatprep.subr.bf16.mxu0 0
      %1660 = vmatpush1.bf16.msra.mxu0 %v1652
      %1661 = vmatprep.subr.bf16.mxu0 0
      %1662 = vmatpush1.bf16.msra.mxu0 %v1653
      %1663 = vmatprep.subr.bf16.mxu0 0
      %1664 = vmatpush1.bf16.msra.mxu0 0
      %1665 = vmatprep.subr.bf16.mxu0 0
      %1666 = vmatpush1.bf16.msra.mxu0 0
      %1667 = vmatprep.subr.bf16.mxu0 0
      %1668 = vmatpush1.bf16.msra.mxu0 0
      %1669 = vmatprep.subr.bf16.mxu0 0
      %1670 = vmatpush1.bf16.msra.mxu0 0
      %1671 = vmatprep.subr.bf16.mxu0 0
      %1672 = vmatpush1.bf16.msra.mxu0 0
      %1673 = vmatprep.subr.bf16.mxu0 0
      %1674 = vmatpush1.bf16.msra.mxu0 0
      %1675 = vmatprep.subr.bf16.mxu0 0
      %1676 = vmatpush1.bf16.msra.mxu0 0
      %1677 = vmatprep.subr.bf16.mxu0 0
      %1678 = vmatpush1.bf16.msra.mxu0 0
      %1679 = vmatprep.subr.bf16.mxu0 0
      %1680 = vmatpush1.bf16.msra.mxu0 0
      %1681 = vmatprep.subr.bf16.mxu0 0
      %1682 = vmatpush1.bf16.msra.mxu0 0
      %1683 = vmatprep.subr.bf16.mxu0 0
      %1684 = vmatpush1.bf16.msra.mxu0 0
      %1685 = vmatprep.subr.bf16.mxu0 0
      %1686 = vmatpush1.bf16.msra.mxu0 0
      %1687 = vmatprep.subr.bf16.mxu0 0
      %1688 = vmatpush1.bf16.msra.mxu0 0
      %1689 = vmatprep.subr.bf16.mxu0 0
      %1690 = vmatpush1.bf16.msra.mxu0 0
      %1691 = vmatprep.mubr.bf16.mxu0 0
      %1692 = vmatmul.mubr.bf16.gmra.mrb[0].mxu0 %v1657
      %v1693 = vpop.f32.mrb[0].mxu0
      %v1694 = vadd.f32 %v1642, %v1693
      %v1695 = vpop.f32.mrb[0].mxu0
      %v1696 = vpop.f32.mrb[0].mxu0
      %v1697 = vpop.f32.mrb[0].mxu0
      %1698 = vdwg.mxu0
      %v1699 = vmul.f32 %v1694, 0.5
      %v1700 = vmul.f32 %v1694, 0.044715
      %v1701 = vmul.f32 %v1700, %v1694
      %v1702 = vmul.f32 %v1701, %v1694
      %v1703 = vadd.f32 %v1694, %v1702
      %v1704 = vmul.f32 %v1703, 0.7978846
      %v1705 = vtanh.pop %v1704
      %v1706 = vadd.f32 %v1705, 1.0
      %v1707 = vmul.f32 %v1699, %v1706
      %v1708 = vld [vmem:[%s721] sm:$0xf]
      %v1709 = vld [vmem:[%s721 + $0x4] sm:$0xf]
      %v1710 = vld [vmem:[%s721 + $0x8] sm:$0xf]
      %v1711 = vld [vmem:[%s721 + $0xc] sm:$0xf]
      %v1712 = vld [vmem:[%s721 + $0x10] sm:$0xf]
      %v1713 = vld [vmem:[%s721 + $0x14] sm:$0xf]
      %v1714 = vld [vmem:[%s721 + $0x18] sm:$0xf]
      %v1715 = vld [vmem:[%s721 + $0x1c] sm:$0xf]
      %v1716 = vpack.c.bf16 %v1707, %v1707
      %v1717 = vld [vmem:[%s724] sm:$0x1]
      %v1719 = vlaneseq
      %v1720 = vshrl.u32 %v1719, 7
      %v1721 = vsub.s32 0, %v1720
      %v1722 = vrot.slane %v1717, %v1721
      %v1732 = vunpack.c.l.b16 %v1708
      %v1733 = vunpack.c.l.b16 %v1709
      %v1734 = vunpack.c.l.b16 %v1710
      %v1735 = vunpack.c.l.b16 %v1711
      %v1736 = vunpack.c.l.b16 %v1712
      %v1737 = vunpack.c.l.b16 %v1713
      %v1738 = vunpack.c.l.b16 %v1714
      %v1739 = vunpack.c.l.b16 %v1715
      %v1740 = vpack.c.b16 %v1733, %v1732
      %v1741 = vpack.c.b16 %v1735, %v1734
      %v1742 = vpack.c.b16 %v1737, %v1736
      %v1743 = vpack.c.b16 %v1739, %v1738
      %vm1748 = vcmask 523264
      %v1750 = vsel %vm1748, %v1716, 0
      %1752 = vmatprep.subr.bf16.mxu0 0
      %1753 = vmatpush1.bf16.msra.mxu0 %v1740
      %1754 = vmatprep.subr.bf16.mxu0 0
      %1755 = vmatpush1.bf16.msra.mxu0 %v1741
      %1756 = vmatprep.subr.bf16.mxu0 0
      %1757 = vmatpush1.bf16.msra.mxu0 %v1742
      %1758 = vmatprep.subr.bf16.mxu0 0
      %1759 = vmatpush1.bf16.msra.mxu0 %v1743
      %1760 = vmatprep.subr.bf16.mxu0 0
      %1761 = vmatpush1.bf16.msra.mxu0 0
      %1762 = vmatprep.subr.bf16.mxu0 0
      %1763 = vmatpush1.bf16.msra.mxu0 0
      %1764 = vmatprep.subr.bf16.mxu0 0
      %1765 = vmatpush1.bf16.msra.mxu0 0
      %1766 = vmatprep.subr.bf16.mxu0 0
      %1767 = vmatpush1.bf16.msra.mxu0 0
      %1768 = vmatprep.subr.bf16.mxu0 0
      %1769 = vmatpush1.bf16.msra.mxu0 0
      %1770 = vmatprep.subr.bf16.mxu0 0
      %1771 = vmatpush1.bf16.msra.mxu0 0
      %1772 = vmatprep.subr.bf16.mxu0 0
      %1773 = vmatpush1.bf16.msra.mxu0 0
      %1774 = vmatprep.subr.bf16.mxu0 0
      %1775 = vmatpush1.bf16.msra.mxu0 0
      %1776 = vmatprep.subr.bf16.mxu0 0
      %1777 = vmatpush1.bf16.msra.mxu0 0
      %1778 = vmatprep.subr.bf16.mxu0 0
      %1779 = vmatpush1.bf16.msra.mxu0 0
      %1780 = vmatprep.subr.bf16.mxu0 0
      %1781 = vmatpush1.bf16.msra.mxu0 0
      %1782 = vmatprep.subr.bf16.mxu0 0
      %1783 = vmatpush1.bf16.msra.mxu0 0
      %1784 = vmatprep.mubr.bf16.mxu0 0
      %1785 = vmatmul.mubr.bf16.gmra.mrb[0].mxu0 %v1750
      %v1786 = vpop.f32.mrb[0].mxu0
      %v1787 = vadd.f32 %v1722, %v1786
      %v1788 = vpop.f32.mrb[0].mxu0
      %v1789 = vpop.f32.mrb[0].mxu0
      %v1790 = vpop.f32.mrb[0].mxu0
      %1791 = vdwg.mxu0
      %v1792 = vadd.f32 %v1631, %v1787
      %v1793 = vld [vmem:[%s727] sm:$0x1]
      %v1794 = vld [vmem:[%s730] sm:$0x1]
      %v1795 = vsel %vm799, %v1792, 0.0
      %1796 = vadd.xlane.f32.xlu0 %v1795
      %v1797 = vpop.xlane.xlu0 %1796
      %v1798 = vmul.f32 %v1797, %v1607
      %v1799 = vsub.f32 %v1792, %v1798
      %v1800 = vmul.f32 %v1799, %v1799
      %v1801 = vsel %vm799, %v1800, 0.0
      %1802 = vadd.xlane.f32.xlu0 %v1801
      %v1803 = vpop.xlane.xlu0 %1802
      %v1804 = vmul.f32 %v1803, %v1607
      %v1805 = vadd.f32 %v1804, 1e-12
      %v1806 = vrsqrt.pop %v1805
      %v1807 = vmul.f32 %v1799, %v1806
      %v1809 = vlaneseq
      %v1810 = vshrl.u32 %v1809, 7
      %v1811 = vsub.s32 0, %v1810
      %v1812 = vrot.slane %v1793, %v1811
      %v1814 = vmul.f32 %v1807, %v1812
      %v1816 = vlaneseq
      %v1817 = vshrl.u32 %v1816, 7
      %v1818 = vsub.s32 0, %v1817
      %v1819 = vrot.slane %v1794, %v1818
      %v1821 = vadd.f32 %v1814, %v1819
      %1822 = vst.msk [vmem:[%s734] sm:$0xff] %vm799, %v1821
      %p1823 = scmp.lt.s32.totalorder %s31, 1
      %s1824 = scalar_select %p1823, %s31, 1
      %s1825 = smul.addr %s1824, 8
      %s1826 = scalar_lea.vmem %s16, %s1825
      // Predicated region
      $region89: #{basic_bert_forward.2} parent=83 // pred_check
        %p1827 = pneg %p463
      $region90: #{basic_bert_forward.2} parent=83 // pred_check_branch
        %1829 = sbr.rel (%p1827) target = $region92
      $region91: #{basic_bert_forward.2} parent=83 // pred_region
        _
      $region92: #{basic_bert_forward.2} parent=83 // pred_fallthru
        _
    $region84: #{basic_bert_forward.2} parent=5 // pred_fallthru
      _
    %p1830 = scmp.le.s32.totalorder 2, %s22
    // Predicated region
    $region93: #{basic_bert_forward.2} parent=5 // pred_check
      %p1831 = pneg %p1830
    $region94: #{basic_bert_forward.2} parent=5 // pred_check_branch
      %1833 = sbr.rel (%p1831) target = $region96
    $region95: #{basic_bert_forward.2} parent=5 // pred_region
      %s1834 = ssub.s32 %s22, 2
      // Predicated region
      $region97: #{basic_bert_forward.2} parent=95 // pred_check
        %p1835 = pneg %p469
      $region98: #{basic_bert_forward.2} parent=95 // pred_check_branch
        %1837 = sbr.rel (%p1835) target = $region100
      $region99: #{basic_bert_forward.2} parent=95 // pred_region
        %p1838 = scmp.lt.s32.totalorder %s33, 1
        %s1839 = scalar_select %p1838, %s33, 1
        %s1840 = smul.addr %s1839, 8
        %s1841 = scalar_lea.vmem %s16, %s1840
      $region100: #{basic_bert_forward.2} parent=95 // pred_fallthru
        _
    $region96: #{basic_bert_forward.2} parent=5 // pred_fallthru
      _
  $region6: #{basic_bert_forward.2} parent=0 // loop_footer
    %s26 = sadd.s32 1, %s22
  $region7: #{basic_bert_forward.2} parent=0 // loop_footer_branch
    %21 = sbr.rel target = $region3
  $region8: #{basic_bert_forward.2} parent=0 // loop_exit
    _

</llo_original>
